<compile_context>
chip_gen: v7x
topology: tpu7x:2x2x1
jax: 0.10.0
libtpu: 0.0.40
codegen_flags: <defaults>
</compile_context>

<pallas_src>
import functools
import math

import jax
import jax.numpy as jnp
from jax import lax
from jax.experimental import pallas as pl
from jax.experimental.pallas import tpu as pltpu


# ----------------------------- kernel 1: fused QKV projection -----------------------------

def qkv_proj_kernel(x_ref, w_ref, b_ref, qkv_ref):
    x = x_ref[...].astype(jnp.bfloat16)                                  # (ts, D)
    acc = jnp.dot(x, w_ref[...], preferred_element_type=jnp.float32)    # (ts, 3D) f32
    qkv_ref[...] = (acc + b_ref[...]).astype(qkv_ref.dtype)


def qkv_projection(x, w_qkv, b_qkv, *, ts):
    B, S, D = x.shape
    D3 = w_qkv.shape[1]
    return pl.pallas_call(
        qkv_proj_kernel,
        out_shape=jax.ShapeDtypeStruct((B, S, D3), jnp.bfloat16),
        grid_spec=pltpu.PrefetchScalarGridSpec(
            num_scalar_prefetch=0,
            grid=(B, S // ts),
            in_specs=[
                pl.BlockSpec((pl.Squeezed(), ts, D), lambda b, i: (b, i, 0)),
                pl.BlockSpec((D, D3), lambda b, i: (0, 0)),
                pl.BlockSpec((1, D3), lambda b, i: (0, 0)),
            ],
            out_specs=pl.BlockSpec((pl.Squeezed(), ts, D3), lambda b, i: (b, i, 0)),
        ),
        compiler_params=pltpu.CompilerParams(
            dimension_semantics=("parallel", "parallel"),
            vmem_limit_bytes=48 * 1024 * 1024),
    )(x, w_qkv, b_qkv)


# ----------------- kernel 2: flash attention + out-proj + LN1 + FFN + LN2 -----------------

def _layer_norm(x, gamma, beta, eps=1e-5):
    mean = jnp.mean(x, axis=-1, keepdims=True)
    var = jnp.mean((x - mean) ** 2, axis=-1, keepdims=True)
    return (x - mean) * lax.rsqrt(var + eps) * gamma + beta


def attn_ffn_kernel(q_ref, k_ref, v_ref, x_ref,
                    wo_ref, bo_ref, g1_ref, be1_ref,
                    w1_ref, fb1_ref, w2_ref, fb2_ref,
                    g2_ref, be2_ref,
                    out_ref,
                    m_sc, l_sc, ctx_sc, oacc_sc,
                    *, scale):
    h = pl.program_id(2)
    kv = pl.program_id(3)
    nh = pl.num_programs(2)
    nkv = pl.num_programs(3)

    # Zero the multi-head output-projection accumulator at the start of each query tile.
    @pl.when((h == 0) & (kv == 0))
    def _():
        oacc_sc[...] = jnp.zeros(oacc_sc.shape, oacc_sc.dtype)

    # Reset the online-softmax state at the start of each head.
    @pl.when(kv == 0)
    def _():
        m_sc[...] = jnp.full(m_sc.shape, -jnp.inf, m_sc.dtype)
        l_sc[...] = jnp.zeros(l_sc.shape, l_sc.dtype)
        ctx_sc[...] = jnp.zeros(ctx_sc.shape, ctx_sc.dtype)

    # --- online softmax update for this (head, kv-tile) ---
    q = q_ref[...]                                          # (tq,  dh) bf16
    k = k_ref[...]                                          # (tkv, dh) bf16
    v = v_ref[...]                                          # (tkv, dh) bf16
    s = lax.dot_general(q, k, (((1,), (1,)), ((), ())),
                        preferred_element_type=jnp.float32) * scale     # (tq, tkv) f32
    # TODO(synk): add the additive attention mask here for the mask != None path.
    m_prev = m_sc[...]
    m_new = jnp.maximum(m_prev, jnp.max(s, axis=-1, keepdims=True))
    alpha = jnp.exp(m_prev - m_new)
    p = jnp.exp(s - m_new)
    l_sc[...] = alpha * l_sc[...] + jnp.sum(p, axis=-1, keepdims=True)
    ctx_sc[...] = alpha * ctx_sc[...] + jnp.dot(
        p.astype(jnp.bfloat16), v, preferred_element_type=jnp.float32)
    m_sc[...] = m_new

    # --- finalize this head: normalize and project against its rows of Wo ---
    @pl.when(kv == nkv - 1)
    def _():
        ctx = ctx_sc[...] * pl.reciprocal(l_sc[...], approx=True)       # (tq, dh) f32
        oacc_sc[...] += jnp.dot(ctx.astype(jnp.bfloat16), wo_ref[...],
                                preferred_element_type=jnp.float32)     # (tq, D)

    # --- epilogue (once per query tile): bias, residual, LN1, FFN, residual, LN2 ---
    @pl.when((h == nh - 1) & (kv == nkv - 1))
    def _():
        x = x_ref[...].astype(jnp.float32)                              # (tq, D)
        attn = oacc_sc[...] + bo_ref[...]
        x1 = _layer_norm(x + attn, g1_ref[...], be1_ref[...])

        h1 = jnp.dot(x1.astype(jnp.bfloat16), w1_ref[...],
                     preferred_element_type=jnp.float32) + fb1_ref[...]
        h1 = jnp.maximum(h1, 0.0)
        ff = jnp.dot(h1.astype(jnp.bfloat16), w2_ref[...],
                     preferred_element_type=jnp.float32) + fb2_ref[...]

        out = _layer_norm(x1 + ff, g2_ref[...], be2_ref[...])
        out_ref[...] = out.astype(out_ref.dtype)


# ----------------------------------------- wrapper ----------------------------------------

@functools.partial(jax.jit, static_argnames=("num_heads", "tq", "tkv"))
def decoder_block(x, params, num_heads, *, tq=128, tkv=128):
    B, S, D = x.shape
    H = num_heads
    assert D % H == 0, "embed_dim must be divisible by num_heads"
    dh = D // H
    F = params["w1"].shape[1]
    tq = min(tq, S)
    tkv = min(tkv, S)
    assert S % tq == 0 and S % tkv == 0

    # ---- parameter packing (wrapper-side layout plumbing; matmul weights in bf16) ----
    w_qkv = jnp.concatenate([params["wq"], params["wk"], params["wv"]],
                            axis=1).astype(jnp.bfloat16)                        # (D, 3D)
    b_qkv = jnp.concatenate([params["bq"], params["bk"], params["bv"]], axis=1) # (1, 3D) f32
    wo_h = params["wo"].reshape(H, dh, D).astype(jnp.bfloat16)                  # per-head rows of Wo
    w1 = params["w1"].astype(jnp.bfloat16)
    w2 = params["w2"].astype(jnp.bfloat16)

    # ---- kernel 1: fused QKV projection, then head-major layout (layout plumbing) ----
    qkv = qkv_projection(x, w_qkv, b_qkv, ts=tq)                         # (B, S, 3D) bf16
    qkv = qkv.reshape(B, S, 3, H, dh)
    q = qkv[:, :, 0].transpose(0, 2, 1, 3)                               # (B, H, S, dh)
    k = qkv[:, :, 1].transpose(0, 2, 1, 3)
    v = qkv[:, :, 2].transpose(0, 2, 1, 3)

    # ---- kernel 2: attention + epilogue ----
    grid = (B, S // tq, H, S // tkv)
    scale = 1.0 / math.sqrt(dh)

    q_spec = pl.BlockSpec((pl.Squeezed(), pl.Squeezed(), tq, dh),
                          lambda b, qi, hh, kv: (b, hh, qi, 0))
    kv_spec = pl.BlockSpec((pl.Squeezed(), pl.Squeezed(), tkv, dh),
                           lambda b, qi, hh, kv: (b, hh, kv, 0))

    def full(shape):
        return pl.BlockSpec(shape, lambda b, qi, hh, kv: tuple(0 for _ in shape))

    in_specs = [
        q_spec, kv_spec, kv_spec,
        pl.BlockSpec((pl.Squeezed(), tq, D), lambda b, qi, hh, kv: (b, qi, 0)),   # x
        pl.BlockSpec((pl.Squeezed(), dh, D), lambda b, qi, hh, kv: (hh, 0, 0)),   # Wo (per head)
        full((1, D)),                                    # bo
        full((1, D)), full((1, D)),                      # norm1 gamma, beta
        full((D, F)), full((1, F)),                      # ff w1, b1
        full((F, D)), full((1, D)),                      # ff w2, b2
        full((1, D)), full((1, D)),                      # norm2 gamma, beta
    ]

    kernel = functools.partial(attn_ffn_kernel, scale=scale)

    return pl.pallas_call(
        kernel,
        out_shape=jax.ShapeDtypeStruct((B, S, D), x.dtype),
        grid_spec=pltpu.PrefetchScalarGridSpec(
            num_scalar_prefetch=0,
            grid=grid,
            in_specs=in_specs,
            out_specs=pl.BlockSpec((pl.Squeezed(), tq, D),
                                   lambda b, qi, hh, kv: (b, qi, 0)),
            scratch_shapes=[
                pltpu.VMEM((tq, 1), jnp.float32),    # m   (online-softmax running max)
                pltpu.VMEM((tq, 1), jnp.float32),    # l   (online-softmax running sum)
                pltpu.VMEM((tq, dh), jnp.float32),   # per-head context accumulator
                pltpu.VMEM((tq, D), jnp.float32),    # multi-head out-projection accumulator
            ]),
        compiler_params=pltpu.CompilerParams(
            dimension_semantics=("parallel", "parallel", "arbitrary", "arbitrary"),
            vmem_limit_bytes=48 * 1024 * 1024),
    )(q, k, v, x,
      wo_h, params["bo"], params["g1"], params["be1"],
      w1, params["fb1"], w2, params["fb2"],
      params["g2"], params["be2"])


# ------------------------------------ params / reference ----------------------------------

def init_params(key, embed_dim, ff_dim):
    D, F = embed_dim, ff_dim
    ks = jax.random.split(key, 8)
    s = 0.05
    return {
        "wq": s * jax.random.normal(ks[0], (D, D), jnp.float32),
        "wk": s * jax.random.normal(ks[1], (D, D), jnp.float32),
        "wv": s * jax.random.normal(ks[2], (D, D), jnp.float32),
        "wo": s * jax.random.normal(ks[3], (D, D), jnp.float32),
        "bq": jnp.zeros((1, D), jnp.float32),
        "bk": jnp.zeros((1, D), jnp.float32),
        "bv": jnp.zeros((1, D), jnp.float32),
        "bo": jnp.zeros((1, D), jnp.float32),
        "g1": jnp.ones((1, D), jnp.float32),
        "be1": jnp.zeros((1, D), jnp.float32),
        "w1": s * jax.random.normal(ks[4], (D, F), jnp.float32),
        "fb1": 0.01 * jax.random.normal(ks[5], (1, F), jnp.float32),
        "w2": s * jax.random.normal(ks[6], (F, D), jnp.float32),
        "fb2": 0.01 * jax.random.normal(ks[7], (1, D), jnp.float32),
        "g2": jnp.ones((1, D), jnp.float32),
        "be2": jnp.zeros((1, D), jnp.float32),
    }


def reference(x, p, num_heads):
    B, S, D = x.shape
    dh = D // num_heads
    q = x @ p["wq"] + p["bq"]
    k = x @ p["wk"] + p["bk"]
    v = x @ p["wv"] + p["bv"]
    qh = q.reshape(B, S, num_heads, dh).transpose(0, 2, 1, 3)
    kh = k.reshape(B, S, num_heads, dh).transpose(0, 2, 1, 3)
    vh = v.reshape(B, S, num_heads, dh).transpose(0, 2, 1, 3)
    s = jnp.einsum("bhqd,bhkd->bhqk", qh, kh) / math.sqrt(dh)
    pmat = jax.nn.softmax(s, axis=-1)
    a = jnp.einsum("bhqk,bhkd->bhqd", pmat, vh).transpose(0, 2, 1, 3).reshape(B, S, D)
    a = a @ p["wo"] + p["bo"]

    def ln(y, g, b, eps=1e-5):
        m = y.mean(-1, keepdims=True)
        vvar = ((y - m) ** 2).mean(-1, keepdims=True)
        return (y - m) * jax.lax.rsqrt(vvar + eps) * g + b

    x1 = ln(x + a, p["g1"], p["be1"])
    ff = jnp.maximum(x1 @ p["w1"] + p["fb1"], 0.0) @ p["w2"] + p["fb2"]
    return ln(x1 + ff, p["g2"], p["be2"])


if __name__ == "__main__":
    # Small but lane-friendly shapes (D multiple of 128; two query and two KV tiles so the
    # online-softmax / head-accumulation grid logic is actually exercised).
    B, S, D, H, F = 2, 256, 128, 4, 256
    key = jax.random.PRNGKey(0)
    kx, kp = jax.random.split(key)
    x = jax.random.normal(kx, (B, S, D), jnp.float32)
    params = init_params(kp, D, F)

    out = decoder_block(x, params, H)
    out = jax.block_until_ready(out)

    ref = reference(x, params, H)
    assert out.shape == (B, S, D)
    max_err = float(jnp.max(jnp.abs(out - ref)))
    mean_err = float(jnp.mean(jnp.abs(out - ref)))
    # bf16 matmul operands => looser tolerance than a pure-f32 implementation.
    assert max_err < 0.1 and mean_err < 0.02, f"mismatch vs reference: max={max_err} mean={mean_err}"
    print("KERNEL_OK")
</pallas_src>

<mosaic_0001>
module attributes {stable_mosaic.version = 11 : i64} {
  func.func @attn_ffn_kernel(%arg0: i32, %arg1: i32, %arg2: i32, %arg3: i32, %arg4: memref<1x1x128x32xbf16, #tpu.memory_space<vmem>>, %arg5: memref<1x1x128x32xbf16, #tpu.memory_space<vmem>>, %arg6: memref<1x1x128x32xbf16, #tpu.memory_space<vmem>>, %arg7: memref<1x128x128xf32, #tpu.memory_space<vmem>>, %arg8: memref<1x32x128xbf16, #tpu.memory_space<vmem>>, %arg9: memref<1x128xf32, #tpu.memory_space<vmem>>, %arg10: memref<1x128xf32, #tpu.memory_space<vmem>>, %arg11: memref<1x128xf32, #tpu.memory_space<vmem>>, %arg12: memref<128x256xbf16, #tpu.memory_space<vmem>>, %arg13: memref<1x256xf32, #tpu.memory_space<vmem>>, %arg14: memref<256x128xbf16, #tpu.memory_space<vmem>>, %arg15: memref<1x128xf32, #tpu.memory_space<vmem>>, %arg16: memref<1x128xf32, #tpu.memory_space<vmem>>, %arg17: memref<1x128xf32, #tpu.memory_space<vmem>>, %arg18: memref<1x128x128xf32, #tpu.memory_space<vmem>>, %arg19: memref<128x1xf32, #tpu.memory_space<vmem>>, %arg20: memref<128x1xf32, #tpu.memory_space<vmem>>, %arg21: memref<128x32xf32, #tpu.memory_space<vmem>>, %arg22: memref<128x128xf32, #tpu.memory_space<vmem>>) attributes {dimension_semantics = [#tpu.dimension_semantics<parallel>, #tpu.dimension_semantics<parallel>, #tpu.dimension_semantics<arbitrary>, #tpu.dimension_semantics<arbitrary>], iteration_bounds = array<i64: 2, 2, 4, 2>, scalar_prefetch = 0 : i64, scratch_operands = 4 : i64, tpu.core_type = #tpu.core_type<tc>, window_params = [{transform_indices = @transform_0, window_bounds = array<i64: 1, 1, 128, 32>}, {transform_indices = @transform_1, window_bounds = array<i64: 1, 1, 128, 32>}, {transform_indices = @transform_2, window_bounds = array<i64: 1, 1, 128, 32>}, {transform_indices = @transform_3, window_bounds = array<i64: 1, 128, 128>}, {transform_indices = @transform_4, window_bounds = array<i64: 1, 32, 128>}, {pipeline_mode = #tpu.pipeline_mode<synchronous>, transform_indices = @transform_5, window_bounds = array<i64: 1, 128>}, {pipeline_mode = #tpu.pipeline_mode<synchronous>, transform_indices = @transform_6, window_bounds = array<i64: 1, 128>}, {pipeline_mode = #tpu.pipeline_mode<synchronous>, transform_indices = @transform_7, window_bounds = array<i64: 1, 128>}, {pipeline_mode = #tpu.pipeline_mode<synchronous>, transform_indices = @transform_8, window_bounds = array<i64: 128, 256>}, {pipeline_mode = #tpu.pipeline_mode<synchronous>, transform_indices = @transform_9, window_bounds = array<i64: 1, 256>}, {pipeline_mode = #tpu.pipeline_mode<synchronous>, transform_indices = @transform_10, window_bounds = array<i64: 256, 128>}, {pipeline_mode = #tpu.pipeline_mode<synchronous>, transform_indices = @transform_11, window_bounds = array<i64: 1, 128>}, {pipeline_mode = #tpu.pipeline_mode<synchronous>, transform_indices = @transform_12, window_bounds = array<i64: 1, 128>}, {pipeline_mode = #tpu.pipeline_mode<synchronous>, transform_indices = @transform_13, window_bounds = array<i64: 1, 128>}, {transform_indices = @transform_14, window_bounds = array<i64: 1, 128, 128>}]} {
    %c0_i32 = arith.constant 0 : i32
    %0 = arith.cmpi eq, %arg2, %c0_i32 : i32
    %c0_i32_0 = arith.constant 0 : i32
    %1 = arith.cmpi eq, %arg3, %c0_i32_0 : i32
    %2 = arith.andi %0, %1 : i1
    %3 = arith.extui %2 : i1 to i32
    %c0_i32_1 = arith.constant 0 : i32
    %4 = arith.cmpi ne, %3, %c0_i32_1 : i32
    scf.if %4 {
      %cst_34 = arith.constant 0.000000e+00 : f32
      %48 = vector.broadcast %cst_34 : f32 to vector<128x128xf32>
      %c0_35 = arith.constant 0 : index
      %c0_36 = arith.constant 0 : index
      %49 = vector.load %arg22[%c0_35, %c0_36] : memref<128x128xf32, #tpu.memory_space<vmem>>, vector<128x128xf32>
      tpu.vector_store %arg22[%c0_35, %c0_36], %48 {strides = array<i32>} : memref<128x128xf32, #tpu.memory_space<vmem>>, vector<128x128xf32>,
    } else {
    }
    %c0_i32_2 = arith.constant 0 : i32
    %5 = arith.cmpi eq, %arg3, %c0_i32_2 : i32
    %6 = arith.extui %5 : i1 to i32
    %c0_i32_3 = arith.constant 0 : i32
    %7 = arith.cmpi ne, %6, %c0_i32_3 : i32
    scf.if %7 {
      %cst_34 = arith.constant 0xFF800000 : f32
      %48 = vector.broadcast %cst_34 : f32 to vector<128x1xf32>
      %c0_35 = arith.constant 0 : index
      %c0_36 = arith.constant 0 : index
      %49 = vector.load %arg19[%c0_35, %c0_36] : memref<128x1xf32, #tpu.memory_space<vmem>>, vector<128x1xf32>
      tpu.vector_store %arg19[%c0_35, %c0_36], %48 {strides = array<i32>} : memref<128x1xf32, #tpu.memory_space<vmem>>, vector<128x1xf32>,
      %cst_37 = arith.constant 0.000000e+00 : f32
      %50 = vector.broadcast %cst_37 : f32 to vector<128x1xf32>
      %c0_38 = arith.constant 0 : index
      %c0_39 = arith.constant 0 : index
      %51 = vector.load %arg20[%c0_38, %c0_39] : memref<128x1xf32, #tpu.memory_space<vmem>>, vector<128x1xf32>
      tpu.vector_store %arg20[%c0_38, %c0_39], %50 {strides = array<i32>} : memref<128x1xf32, #tpu.memory_space<vmem>>, vector<128x1xf32>,
      %cst_40 = arith.constant 0.000000e+00 : f32
      %52 = vector.broadcast %cst_40 : f32 to vector<128x32xf32>
      %c0_41 = arith.constant 0 : index
      %c0_42 = arith.constant 0 : index
      %53 = vector.load %arg21[%c0_41, %c0_42] : memref<128x32xf32, #tpu.memory_space<vmem>>, vector<128x32xf32>
      tpu.vector_store %arg21[%c0_41, %c0_42], %52 {strides = array<i32>} : memref<128x32xf32, #tpu.memory_space<vmem>>, vector<128x32xf32>,
    } else {
    }
    %c0 = arith.constant 0 : index
    %c0_4 = arith.constant 0 : index
    %c0_5 = arith.constant 0 : index
    %c0_6 = arith.constant 0 : index
    %8 = vector.load %arg4[%c0, %c0_4, %c0_5, %c0_6] : memref<1x1x128x32xbf16, #tpu.memory_space<vmem>>, vector<1x1x128x32xbf16>
    %9 = vector.shape_cast %8 : vector<1x1x128x32xbf16> to vector<128x32xbf16>
    %c0_7 = arith.constant 0 : index
    %c0_8 = arith.constant 0 : index
    %c0_9 = arith.constant 0 : index
    %c0_10 = arith.constant 0 : index
    %10 = vector.load %arg5[%c0_7, %c0_8, %c0_9, %c0_10] : memref<1x1x128x32xbf16, #tpu.memory_space<vmem>>, vector<1x1x128x32xbf16>
    %11 = vector.shape_cast %10 : vector<1x1x128x32xbf16> to vector<128x32xbf16>
    %c0_11 = arith.constant 0 : index
    %c0_12 = arith.constant 0 : index
    %c0_13 = arith.constant 0 : index
    %c0_14 = arith.constant 0 : index
    %12 = vector.load %arg6[%c0_11, %c0_12, %c0_13, %c0_14] : memref<1x1x128x32xbf16, #tpu.memory_space<vmem>>, vector<1x1x128x32xbf16>
    %13 = vector.shape_cast %12 : vector<1x1x128x32xbf16> to vector<128x32xbf16>
    %cst = arith.constant dense<0.000000e+00> : vector<128x128xf32>
    %14 = tpu.matmul %9, %11, %cst {dimension_numbers = #tpu.dot_dimension_numbers<[1], [1], [0], [0], [0, 0, 1, 0], [], []>} : vector<128x32xbf16>, vector<128x32xbf16>, vector<128x128xf32> -> vector<128x128xf32>
    %cst_15 = arith.constant 0.176776692 : f32
    %15 = vector.broadcast %cst_15 : f32 to vector<128x128xf32>
    %16 = arith.mulf %14, %15 : vector<128x128xf32>
    %c0_16 = arith.constant 0 : index
    %c0_17 = arith.constant 0 : index
    %17 = vector.load %arg19[%c0_16, %c0_17] : memref<128x1xf32, #tpu.memory_space<vmem>>, vector<128x1xf32>
    %cst_18 = arith.constant dense<0xFF800000> : vector<128xf32>
    %18 = vector.multi_reduction <maximumf>, %16, %cst_18 [1] : vector<128x128xf32> to vector<128xf32>
    %19 = vector.shape_cast %18 : vector<128xf32> to vector<128x1xf32>
    %20 = arith.maximumf %17, %19 : vector<128x1xf32>
    %21 = arith.subf %17, %20 : vector<128x1xf32>
    %22 = math.exp %21 : vector<128x1xf32>
    %23 = vector.broadcast %20 : vector<128x1xf32> to vector<128x128xf32>
    %24 = arith.subf %16, %23 : vector<128x128xf32>
    %25 = math.exp %24 : vector<128x128xf32>
    %c0_19 = arith.constant 0 : index
    %c0_20 = arith.constant 0 : index
    %26 = vector.load %arg20[%c0_19, %c0_20] : memref<128x1xf32, #tpu.memory_space<vmem>>, vector<128x1xf32>
    %27 = arith.mulf %22, %26 : vector<128x1xf32>
    %cst_21 = arith.constant dense<0.000000e+00> : vector<128xf32>
    %28 = vector.multi_reduction <add>, %25, %cst_21 [1] : vector<128x128xf32> to vector<128xf32>
    %29 = vector.shape_cast %28 : vector<128xf32> to vector<128x1xf32>
    %30 = arith.addf %27, %29 : vector<128x1xf32>
    %c0_22 = arith.constant 0 : index
    %c0_23 = arith.constant 0 : index
    %31 = vector.load %arg20[%c0_22, %c0_23] : memref<128x1xf32, #tpu.memory_space<vmem>>, vector<128x1xf32>
    tpu.vector_store %arg20[%c0_22, %c0_23], %30 {strides = array<i32>} : memref<128x1xf32, #tpu.memory_space<vmem>>, vector<128x1xf32>,
    %c0_24 = arith.constant 0 : index
    %c0_25 = arith.constant 0 : index
    %32 = vector.load %arg21[%c0_24, %c0_25] : memref<128x32xf32, #tpu.memory_space<vmem>>, vector<128x32xf32>
    %33 = vector.broadcast %22 : vector<128x1xf32> to vector<128x32xf32>
    %34 = arith.mulf %33, %32 : vector<128x32xf32>
    %35 = arith.truncf %25 : vector<128x128xf32> to vector<128x128xbf16>
    %cst_26 = arith.constant dense<0.000000e+00> : vector<128x32xf32>
    %36 = tpu.matmul %35, %13, %cst_26 {dimension_numbers = #tpu.dot_dimension_numbers<[1], [0], [0], [1], [0, 0, 1, 1], [], []>} : vector<128x128xbf16>, vector<128x32xbf16>, vector<128x32xf32> -> vector<128x32xf32>
    %37 = arith.addf %34, %36 : vector<128x32xf32>
    %c0_27 = arith.constant 0 : index
    %c0_28 = arith.constant 0 : index
    %38 = vector.load %arg21[%c0_27, %c0_28] : memref<128x32xf32, #tpu.memory_space<vmem>>, vector<128x32xf32>
    tpu.vector_store %arg21[%c0_27, %c0_28], %37 {strides = array<i32>} : memref<128x32xf32, #tpu.memory_space<vmem>>, vector<128x32xf32>,
    %c0_29 = arith.constant 0 : index
    %c0_30 = arith.constant 0 : index
    %39 = vector.load %arg19[%c0_29, %c0_30] : memref<128x1xf32, #tpu.memory_space<vmem>>, vector<128x1xf32>
    tpu.vector_store %arg19[%c0_29, %c0_30], %20 {strides = array<i32>} : memref<128x1xf32, #tpu.memory_space<vmem>>, vector<128x1xf32>,
    %c1_i32 = arith.constant 1 : i32
    %40 = arith.cmpi eq, %arg3, %c1_i32 : i32
    %41 = arith.extui %40 : i1 to i32
    %c0_i32_31 = arith.constant 0 : i32
    %42 = arith.cmpi ne, %41, %c0_i32_31 : i32
    scf.if %42 {
      %c0_34 = arith.constant 0 : index
      %c0_35 = arith.constant 0 : index
      %48 = vector.load %arg21[%c0_34, %c0_35] : memref<128x32xf32, #tpu.memory_space<vmem>>, vector<128x32xf32>
      %c0_36 = arith.constant 0 : index
      %c0_37 = arith.constant 0 : index
      %49 = vector.load %arg20[%c0_36, %c0_37] : memref<128x1xf32, #tpu.memory_space<vmem>>, vector<128x1xf32>
      %50 = tpu.reciprocal %49 {approx = true} : vector<128x1xf32> -> vector<128x1xf32>
      %51 = vector.broadcast %50 : vector<128x1xf32> to vector<128x32xf32>
      %52 = arith.mulf %48, %51 : vector<128x32xf32>
      %c0_38 = arith.constant 0 : index
      %c0_39 = arith.constant 0 : index
      %53 = vector.load %arg22[%c0_38, %c0_39] : memref<128x128xf32, #tpu.memory_space<vmem>>, vector<128x128xf32>
      %54 = arith.truncf %52 : vector<128x32xf32> to vector<128x32xbf16>
      %c0_40 = arith.constant 0 : index
      %c0_41 = arith.constant 0 : index
      %c0_42 = arith.constant 0 : index
      %55 = vector.load %arg8[%c0_40, %c0_41, %c0_42] : memref<1x32x128xbf16, #tpu.memory_space<vmem>>, vector<1x32x128xbf16>
      %56 = vector.shape_cast %55 : vector<1x32x128xbf16> to vector<32x128xbf16>
      %cst_43 = arith.constant dense<0.000000e+00> : vector<128x128xf32>
      %57 = tpu.matmul %54, %56, %cst_43 {dimension_numbers = #tpu.dot_dimension_numbers<[1], [0], [0], [1], [0, 0, 1, 1], [], []>} : vector<128x32xbf16>, vector<32x128xbf16>, vector<128x128xf32> -> vector<128x128xf32>
      %58 = arith.addf %53, %57 : vector<128x128xf32>
      %c0_44 = arith.constant 0 : index
      %c0_45 = arith.constant 0 : index
      %59 = vector.load %arg22[%c0_44, %c0_45] : memref<128x128xf32, #tpu.memory_space<vmem>>, vector<128x128xf32>
      tpu.vector_store %arg22[%c0_44, %c0_45], %58 {strides = array<i32>} : memref<128x128xf32, #tpu.memory_space<vmem>>, vector<128x128xf32>,
    } else {
    }
    %c3_i32 = arith.constant 3 : i32
    %43 = arith.cmpi eq, %arg2, %c3_i32 : i32
    %c1_i32_32 = arith.constant 1 : i32
    %44 = arith.cmpi eq, %arg3, %c1_i32_32 : i32
    %45 = arith.andi %43, %44 : i1
    %46 = arith.extui %45 : i1 to i32
    %c0_i32_33 = arith.constant 0 : i32
    %47 = arith.cmpi ne, %46, %c0_i32_33 : i32
    scf.if %47 {
      %c0_34 = arith.constant 0 : index
      %c0_35 = arith.constant 0 : index
      %c0_36 = arith.constant 0 : index
      %48 = vector.load %arg7[%c0_34, %c0_35, %c0_36] : memref<1x128x128xf32, #tpu.memory_space<vmem>>, vector<1x128x128xf32>
      %49 = vector.shape_cast %48 : vector<1x128x128xf32> to vector<128x128xf32>
      %c0_37 = arith.constant 0 : index
      %c0_38 = arith.constant 0 : index
      %50 = vector.load %arg22[%c0_37, %c0_38] : memref<128x128xf32, #tpu.memory_space<vmem>>, vector<128x128xf32>
      %c0_39 = arith.constant 0 : index
      %c0_40 = arith.constant 0 : index
      %51 = vector.load %arg9[%c0_39, %c0_40] : memref<1x128xf32, #tpu.memory_space<vmem>>, vector<1x128xf32>
      %52 = vector.broadcast %51 : vector<1x128xf32> to vector<128x128xf32>
      %53 = arith.addf %50, %52 : vector<128x128xf32>
      %54 = arith.addf %49, %53 : vector<128x128xf32>
      %c0_41 = arith.constant 0 : index
      %c0_42 = arith.constant 0 : index
      %55 = vector.load %arg10[%c0_41, %c0_42] : memref<1x128xf32, #tpu.memory_space<vmem>>, vector<1x128xf32>
      %c0_43 = arith.constant 0 : index
      %c0_44 = arith.constant 0 : index
      %56 = vector.load %arg11[%c0_43, %c0_44] : memref<1x128xf32, #tpu.memory_space<vmem>>, vector<1x128xf32>
      %cst_45 = arith.constant dense<0.000000e+00> : vector<128xf32>
      %57 = vector.multi_reduction <add>, %54, %cst_45 [1] : vector<128x128xf32> to vector<128xf32>
      %58 = vector.shape_cast %57 : vector<128xf32> to vector<128x1xf32>
      %cst_46 = arith.constant 1.280000e+02 : f32
      %59 = vector.broadcast %cst_46 : f32 to vector<128x1xf32>
      %60 = arith.divf %58, %59 : vector<128x1xf32>
      %61 = vector.broadcast %60 : vector<128x1xf32> to vector<128x128xf32>
      %62 = arith.subf %54, %61 : vector<128x128xf32>
      %63 = arith.mulf %62, %62 : vector<128x128xf32>
      %cst_47 = arith.constant dense<0.000000e+00> : vector<128xf32>
      %64 = vector.multi_reduction <add>, %63, %cst_47 [1] : vector<128x128xf32> to vector<128xf32>
      %65 = vector.shape_cast %64 : vector<128xf32> to vector<128x1xf32>
      %cst_48 = arith.constant 1.280000e+02 : f32
      %66 = vector.broadcast %cst_48 : f32 to vector<128x1xf32>
      %67 = arith.divf %65, %66 : vector<128x1xf32>
      %68 = vector.broadcast %60 : vector<128x1xf32> to vector<128x128xf32>
      %69 = arith.subf %54, %68 : vector<128x128xf32>
      %cst_49 = arith.constant 9.99999974E-6 : f32
      %70 = vector.broadcast %cst_49 : f32 to vector<128x1xf32>
      %71 = arith.addf %67, %70 : vector<128x1xf32>
      %72 = math.rsqrt %71 : vector<128x1xf32>
      %73 = vector.broadcast %72 : vector<128x1xf32> to vector<128x128xf32>
      %74 = arith.mulf %69, %73 : vector<128x128xf32>
      %75 = vector.broadcast %55 : vector<1x128xf32> to vector<128x128xf32>
      %76 = arith.mulf %74, %75 : vector<128x128xf32>
      %77 = vector.broadcast %56 : vector<1x128xf32> to vector<128x128xf32>
      %78 = arith.addf %76, %77 : vector<128x128xf32>
      %79 = arith.truncf %78 : vector<128x128xf32> to vector<128x128xbf16>
      %c0_50 = arith.constant 0 : index
      %c0_51 = arith.constant 0 : index
      %80 = vector.load %arg12[%c0_50, %c0_51] : memref<128x256xbf16, #tpu.memory_space<vmem>>, vector<128x256xbf16>
      %cst_52 = arith.constant dense<0.000000e+00> : vector<128x256xf32>
      %81 = tpu.matmul %79, %80, %cst_52 {dimension_numbers = #tpu.dot_dimension_numbers<[1], [0], [0], [1], [0, 0, 1, 1], [], []>} : vector<128x128xbf16>, vector<128x256xbf16>, vector<128x256xf32> -> vector<128x256xf32>
      %c0_53 = arith.constant 0 : index
      %c0_54 = arith.constant 0 : index
      %82 = vector.load %arg13[%c0_53, %c0_54] : memref<1x256xf32, #tpu.memory_space<vmem>>, vector<1x256xf32>
      %83 = vector.broadcast %82 : vector<1x256xf32> to vector<128x256xf32>
      %84 = arith.addf %81, %83 : vector<128x256xf32>
      %cst_55 = arith.constant 0.000000e+00 : f32
      %85 = vector.broadcast %cst_55 : f32 to vector<128x256xf32>
      %86 = arith.maximumf %84, %85 : vector<128x256xf32>
      %87 = arith.truncf %86 : vector<128x256xf32> to vector<128x256xbf16>
      %c0_56 = arith.constant 0 : index
      %c0_57 = arith.constant 0 : index
      %88 = vector.load %arg14[%c0_56, %c0_57] : memref<256x128xbf16, #tpu.memory_space<vmem>>, vector<256x128xbf16>
      %cst_58 = arith.constant dense<0.000000e+00> : vector<128x128xf32>
      %89 = tpu.matmul %87, %88, %cst_58 {dimension_numbers = #tpu.dot_dimension_numbers<[1], [0], [0], [1], [0, 0, 1, 1], [], []>} : vector<128x256xbf16>, vector<256x128xbf16>, vector<128x128xf32> -> vector<128x128xf32>
      %c0_59 = arith.constant 0 : index
      %c0_60 = arith.constant 0 : index
      %90 = vector.load %arg15[%c0_59, %c0_60] : memref<1x128xf32, #tpu.memory_space<vmem>>, vector<1x128xf32>
      %91 = vector.broadcast %90 : vector<1x128xf32> to vector<128x128xf32>
      %92 = arith.addf %89, %91 : vector<128x128xf32>
      %93 = arith.addf %78, %92 : vector<128x128xf32>
      %c0_61 = arith.constant 0 : index
      %c0_62 = arith.constant 0 : index
      %94 = vector.load %arg16[%c0_61, %c0_62] : memref<1x128xf32, #tpu.memory_space<vmem>>, vector<1x128xf32>
      %c0_63 = arith.constant 0 : index
      %c0_64 = arith.constant 0 : index
      %95 = vector.load %arg17[%c0_63, %c0_64] : memref<1x128xf32, #tpu.memory_space<vmem>>, vector<1x128xf32>
      %cst_65 = arith.constant dense<0.000000e+00> : vector<128xf32>
      %96 = vector.multi_reduction <add>, %93, %cst_65 [1] : vector<128x128xf32> to vector<128xf32>
      %97 = vector.shape_cast %96 : vector<128xf32> to vector<128x1xf32>
      %cst_66 = arith.constant 1.280000e+02 : f32
      %98 = vector.broadcast %cst_66 : f32 to vector<128x1xf32>
      %99 = arith.divf %97, %98 : vector<128x1xf32>
      %100 = vector.broadcast %99 : vector<128x1xf32> to vector<128x128xf32>
      %101 = arith.subf %93, %100 : vector<128x128xf32>
      %102 = arith.mulf %101, %101 : vector<128x128xf32>
      %cst_67 = arith.constant dense<0.000000e+00> : vector<128xf32>
      %103 = vector.multi_reduction <add>, %102, %cst_67 [1] : vector<128x128xf32> to vector<128xf32>
      %104 = vector.shape_cast %103 : vector<128xf32> to vector<128x1xf32>
      %cst_68 = arith.constant 1.280000e+02 : f32
      %105 = vector.broadcast %cst_68 : f32 to vector<128x1xf32>
      %106 = arith.divf %104, %105 : vector<128x1xf32>
      %107 = vector.broadcast %99 : vector<128x1xf32> to vector<128x128xf32>
      %108 = arith.subf %93, %107 : vector<128x128xf32>
      %cst_69 = arith.constant 9.99999974E-6 : f32
      %109 = vector.broadcast %cst_69 : f32 to vector<128x1xf32>
      %110 = arith.addf %106, %109 : vector<128x1xf32>
      %111 = math.rsqrt %110 : vector<128x1xf32>
      %112 = vector.broadcast %111 : vector<128x1xf32> to vector<128x128xf32>
      %113 = arith.mulf %108, %112 : vector<128x128xf32>
      %114 = vector.broadcast %94 : vector<1x128xf32> to vector<128x128xf32>
      %115 = arith.mulf %113, %114 : vector<128x128xf32>
      %116 = vector.broadcast %95 : vector<1x128xf32> to vector<128x128xf32>
      %117 = arith.addf %115, %116 : vector<128x128xf32>
      %c0_70 = arith.constant 0 : index
      %c0_71 = arith.constant 0 : index
      %c0_72 = arith.constant 0 : index
      %118 = vector.load %arg18[%c0_70, %c0_71, %c0_72] : memref<1x128x128xf32, #tpu.memory_space<vmem>>, vector<1x128x128xf32>
      %119 = vector.shape_cast %118 : vector<1x128x128xf32> to vector<128x128xf32>
      %120 = vector.shape_cast %117 : vector<128x128xf32> to vector<1x128x128xf32>
      tpu.vector_store %arg18[%c0_70, %c0_71, %c0_72], %120 {strides = array<i32>} : memref<1x128x128xf32, #tpu.memory_space<vmem>>, vector<1x128x128xf32>,
    } else {
    }
    return
  }
  func.func @transform_0(%arg0: i32, %arg1: i32, %arg2: i32, %arg3: i32) -> (i32, i32, i32, i32) {
    %c0_i32 = arith.constant 0 : i32
    %c0_i32_0 = arith.constant 0 : i32
    return %arg0, %arg2, %arg1, %c0_i32 : i32, i32, i32, i32
  }
  func.func @transform_1(%arg0: i32, %arg1: i32, %arg2: i32, %arg3: i32) -> (i32, i32, i32, i32) {
    %c0_i32 = arith.constant 0 : i32
    %c0_i32_0 = arith.constant 0 : i32
    return %arg0, %arg2, %arg3, %c0_i32 : i32, i32, i32, i32
  }
  func.func @transform_2(%arg0: i32, %arg1: i32, %arg2: i32, %arg3: i32) -> (i32, i32, i32, i32) {
    %c0_i32 = arith.constant 0 : i32
    %c0_i32_0 = arith.constant 0 : i32
    return %arg0, %arg2, %arg3, %c0_i32 : i32, i32, i32, i32
  }
  func.func @transform_3(%arg0: i32, %arg1: i32, %arg2: i32, %arg3: i32) -> (i32, i32, i32) {
    %c0_i32 = arith.constant 0 : i32
    %c0_i32_0 = arith.constant 0 : i32
    return %arg0, %arg1, %c0_i32 : i32, i32, i32
  }
  func.func @transform_4(%arg0: i32, %arg1: i32, %arg2: i32, %arg3: i32) -> (i32, i32, i32) {
    %c0_i32 = arith.constant 0 : i32
    %c0_i32_0 = arith.constant 0 : i32
    %c0_i32_1 = arith.constant 0 : i32
    return %arg2, %c0_i32, %c0_i32_0 : i32, i32, i32
  }
  func.func @transform_5(%arg0: i32, %arg1: i32, %arg2: i32, %arg3: i32) -> (i32, i32) {
    %c0_i32 = arith.constant 0 : i32
    %c0_i32_0 = arith.constant 0 : i32
    %c0_i32_1 = arith.constant 0 : i32
    return %c0_i32, %c0_i32_0 : i32, i32
  }
  func.func @transform_6(%arg0: i32, %arg1: i32, %arg2: i32, %arg3: i32) -> (i32, i32) {
    %c0_i32 = arith.constant 0 : i32
    %c0_i32_0 = arith.constant 0 : i32
    %c0_i32_1 = arith.constant 0 : i32
    return %c0_i32, %c0_i32_0 : i32, i32
  }
  func.func @transform_7(%arg0: i32, %arg1: i32, %arg2: i32, %arg3: i32) -> (i32, i32) {
    %c0_i32 = arith.constant 0 : i32
    %c0_i32_0 = arith.constant 0 : i32
    %c0_i32_1 = arith.constant 0 : i32
    return %c0_i32, %c0_i32_0 : i32, i32
  }
  func.func @transform_8(%arg0: i32, %arg1: i32, %arg2: i32, %arg3: i32) -> (i32, i32) {
    %c0_i32 = arith.constant 0 : i32
    %c0_i32_0 = arith.constant 0 : i32
    %c0_i32_1 = arith.constant 0 : i32
    return %c0_i32, %c0_i32_0 : i32, i32
  }
  func.func @transform_9(%arg0: i32, %arg1: i32, %arg2: i32, %arg3: i32) -> (i32, i32) {
    %c0_i32 = arith.constant 0 : i32
    %c0_i32_0 = arith.constant 0 : i32
    %c0_i32_1 = arith.constant 0 : i32
    return %c0_i32, %c0_i32_0 : i32, i32
  }
  func.func @transform_10(%arg0: i32, %arg1: i32, %arg2: i32, %arg3: i32) -> (i32, i32) {
    %c0_i32 = arith.constant 0 : i32
    %c0_i32_0 = arith.constant 0 : i32
    %c0_i32_1 = arith.constant 0 : i32
    return %c0_i32, %c0_i32_0 : i32, i32
  }
  func.func @transform_11(%arg0: i32, %arg1: i32, %arg2: i32, %arg3: i32) -> (i32, i32) {
    %c0_i32 = arith.constant 0 : i32
    %c0_i32_0 = arith.constant 0 : i32
    %c0_i32_1 = arith.constant 0 : i32
    return %c0_i32, %c0_i32_0 : i32, i32
  }
  func.func @transform_12(%arg0: i32, %arg1: i32, %arg2: i32, %arg3: i32) -> (i32, i32) {
    %c0_i32 = arith.constant 0 : i32
    %c0_i32_0 = arith.constant 0 : i32
    %c0_i32_1 = arith.constant 0 : i32
    return %c0_i32, %c0_i32_0 : i32, i32
  }
  func.func @transform_13(%arg0: i32, %arg1: i32, %arg2: i32, %arg3: i32) -> (i32, i32) {
    %c0_i32 = arith.constant 0 : i32
    %c0_i32_0 = arith.constant 0 : i32
    %c0_i32_1 = arith.constant 0 : i32
    return %c0_i32, %c0_i32_0 : i32, i32
  }
  func.func @transform_14(%arg0: i32, %arg1: i32, %arg2: i32, %arg3: i32) -> (i32, i32, i32) {
    %c0_i32 = arith.constant 0 : i32
    %c0_i32_0 = arith.constant 0 : i32
    return %arg0, %arg1, %c0_i32 : i32, i32, i32
  }
}

module attributes {stable_mosaic.version = 11 : i64} {
  func.func @qkv_proj_kernel(%arg0: i32, %arg1: i32, %arg2: memref<1x128x128xf32, #tpu.memory_space<vmem>>, %arg3: memref<128x384xbf16, #tpu.memory_space<vmem>>, %arg4: memref<1x384xf32, #tpu.memory_space<vmem>>, %arg5: memref<1x128x384xbf16, #tpu.memory_space<vmem>>) attributes {dimension_semantics = [#tpu.dimension_semantics<parallel>, #tpu.dimension_semantics<parallel>], iteration_bounds = array<i64: 2, 2>, scalar_prefetch = 0 : i64, scratch_operands = 0 : i64, tpu.core_type = #tpu.core_type<tc>, window_params = [{transform_indices = @transform_0, window_bounds = array<i64: 1, 128, 128>}, {pipeline_mode = #tpu.pipeline_mode<synchronous>, transform_indices = @transform_1, window_bounds = array<i64: 128, 384>}, {pipeline_mode = #tpu.pipeline_mode<synchronous>, transform_indices = @transform_2, window_bounds = array<i64: 1, 384>}, {transform_indices = @transform_3, window_bounds = array<i64: 1, 128, 384>}]} {
    %c0 = arith.constant 0 : index
    %c0_0 = arith.constant 0 : index
    %c0_1 = arith.constant 0 : index
    %0 = vector.load %arg2[%c0, %c0_0, %c0_1] : memref<1x128x128xf32, #tpu.memory_space<vmem>>, vector<1x128x128xf32>
    %1 = vector.shape_cast %0 : vector<1x128x128xf32> to vector<128x128xf32>
    %2 = arith.truncf %1 : vector<128x128xf32> to vector<128x128xbf16>
    %c0_2 = arith.constant 0 : index
    %c0_3 = arith.constant 0 : index
    %3 = vector.load %arg3[%c0_2, %c0_3] : memref<128x384xbf16, #tpu.memory_space<vmem>>, vector<128x384xbf16>
    %cst = arith.constant dense<0.000000e+00> : vector<128x384xf32>
    %4 = tpu.matmul %2, %3, %cst {dimension_numbers = #tpu.dot_dimension_numbers<[1], [0], [0], [1], [0, 0, 1, 1], [], []>} : vector<128x128xbf16>, vector<128x384xbf16>, vector<128x384xf32> -> vector<128x384xf32>
    %c0_4 = arith.constant 0 : index
    %c0_5 = arith.constant 0 : index
    %5 = vector.load %arg4[%c0_4, %c0_5] : memref<1x384xf32, #tpu.memory_space<vmem>>, vector<1x384xf32>
    %6 = vector.broadcast %5 : vector<1x384xf32> to vector<128x384xf32>
    %7 = arith.addf %4, %6 : vector<128x384xf32>
    %8 = arith.truncf %7 : vector<128x384xf32> to vector<128x384xbf16>
    %c0_6 = arith.constant 0 : index
    %c0_7 = arith.constant 0 : index
    %c0_8 = arith.constant 0 : index
    %9 = vector.load %arg5[%c0_6, %c0_7, %c0_8] : memref<1x128x384xbf16, #tpu.memory_space<vmem>>, vector<1x128x384xbf16>
    %10 = vector.shape_cast %9 : vector<1x128x384xbf16> to vector<128x384xbf16>
    %11 = vector.shape_cast %8 : vector<128x384xbf16> to vector<1x128x384xbf16>
    tpu.vector_store %arg5[%c0_6, %c0_7, %c0_8], %11 {strides = array<i32>} : memref<1x128x384xbf16, #tpu.memory_space<vmem>>, vector<1x128x384xbf16>,
    return
  }
  func.func @transform_0(%arg0: i32, %arg1: i32) -> (i32, i32, i32) {
    %c0_i32 = arith.constant 0 : i32
    %c0_i32_0 = arith.constant 0 : i32
    return %arg0, %arg1, %c0_i32 : i32, i32, i32
  }
  func.func @transform_1(%arg0: i32, %arg1: i32) -> (i32, i32) {
    %c0_i32 = arith.constant 0 : i32
    %c0_i32_0 = arith.constant 0 : i32
    %c0_i32_1 = arith.constant 0 : i32
    return %c0_i32, %c0_i32_0 : i32, i32
  }
  func.func @transform_2(%arg0: i32, %arg1: i32) -> (i32, i32) {
    %c0_i32 = arith.constant 0 : i32
    %c0_i32_0 = arith.constant 0 : i32
    %c0_i32_1 = arith.constant 0 : i32
    return %c0_i32, %c0_i32_0 : i32, i32
  }
  func.func @transform_3(%arg0: i32, %arg1: i32) -> (i32, i32, i32) {
    %c0_i32 = arith.constant 0 : i32
    %c0_i32_0 = arith.constant 0 : i32
    return %arg0, %arg1, %c0_i32 : i32, i32, i32
  }
}

</mosaic_0001>

<llo_original>
// kernel: decoder_block.2
$region0: #{decoder_block.2}
  #allocation0 [shape = 'u32[]', space=smem, size = 0x4, offset = 0x4, fixed_abs, tag = 'smem constant byte address 0x4 - core index']
  #allocation1 [shape = 'u32[144,128]{1,0:T(1,128)}', space=vmem, size = 0x12000, scoped, tag = 'internal scratch']
  %s0 = inlined_call_operand.vmem [shape: f32[2,256,128], index: 0, kind: input, shape index: {}]
  %s1 = inlined_call_operand.vmem [shape: bf16[128,384], index: 1, kind: input, shape index: {}]
  %s2 = inlined_call_operand.vmem [shape: f32[1,384], index: 2, kind: input, shape index: {}]
  %s3 = inlined_call_operand.vmem [shape: bf16[2,256,384], index: 3, kind: output, shape index: {}]
  %s4 = sld [smem:[#allocation0]]
  $region45: #{decoder_block.2} parent=0
    _
  %s6 = ssub.s32 1, %s4
  %s7 = scalar_select 0, %s6, %s4
  loop: start=0, step=1, limit=6
  $region2: #{decoder_block.2} parent=0 // loop_pre_header
    _
  $region3: #{decoder_block.2} parent=0 // loop_header
    %s9 = sphi 0, %s13
    %p10 = scmp.ge.s32.totalorder %s9, 6
    %s16 = sphi 0, %s28
    %s17 = sphi 0, %s24
    %s18 = sphi 0, %s16
    %s19 = sphi 0, %s17
    %s20 = sphi 0, %s18
    %s21 = sphi 0, %s19
    %s33 = sphi 0, %s35
    %s36 = sphi 0, %s33
    %s37 = sphi 0, %s36
    %s53 = sphi 0, %s37
    %s57 = sphi 0, %s57
    %s59 = sphi 0, %s57
    %s60 = sphi 0, %s59
    %s74 = sphi 0, %s60
    %s78 = sphi 0, %s78
    %s80 = sphi 0, %s78
    %s81 = sphi 0, %s80
    %s95 = sphi 0, %s81
    %s103 = sphi 0, %s105
    %s106 = sphi 0, %s103
    %s107 = sphi 0, %s106
    %s123 = sphi 0, %s107
  $region4: #{decoder_block.2} parent=0 // loop_header_branch
    %12 = sbr.rel (%p10) target = $region8
  $region5: #{decoder_block.2} parent=0 // loop_body
    %s14 = ssub.s32 %s9, 1
    %s15 = ssub.s32 %s9, 2
    %s22 = sadd.s32 1, %s17
    %p23 = scmp.ge.s32.totalorder %s22, 2
    %s24 = scalar_select %p23, 0, %s22
    %s25 = sadd.s32 1, %s16
    %s26 = scalar_select %p23, %s25, %s16
    %p27 = scmp.ge.s32.totalorder %s26, 2
    %s28 = scalar_select %p27, 0, %s26
    %s29 = ssub.s32 %s16, %s28
    %s30 = ssub.s32 %s17, %s24
    %s31 = sor.u32 %s29, %s30
    %p32 = scmp.eq.s32.totalorder %s31, 0
    %s34 = sadd.s32 %s33, 1
    %s35 = scalar_select %p32, %s33, %s34
    %p38 = pneg %p32
    %p39 = scmp.eq.s32.totalorder %s9, 3
    %p40 = por %p38, %p39
    %p41 = scmp.ne.s32.totalorder %s33, %s36
    %p42 = scmp.eq.s32.totalorder %s9, 0
    %p43 = por %p41, %p42
    %p44 = scmp.ne.s32.totalorder %s33, %s36
    %p45 = scmp.eq.s32.totalorder %s14, 3
    %p46 = por %p44, %p45
    %p47 = scmp.ne.s32.totalorder %s36, %s37
    %p48 = scmp.eq.s32.totalorder %s14, 0
    %p49 = por %p47, %p48
    %p50 = scmp.ne.s32.totalorder %s36, %s37
    %p51 = scmp.eq.s32.totalorder %s15, 3
    %p52 = por %p50, %p51
    %p54 = scmp.ne.s32.totalorder %s37, %s53
    %p55 = scmp.eq.s32.totalorder %s15, 0
    %p56 = por %p54, %p55
    %s58 = sadd.s32 %s57, 1
    %p61 = scmp.eq.s32.totalorder %s9, 3
    %p62 = scmp.ne.s32.totalorder %s57, %s59
    %p63 = scmp.eq.s32.totalorder %s9, 0
    %p64 = por %p62, %p63
    %p65 = scmp.ne.s32.totalorder %s57, %s59
    %p66 = scmp.eq.s32.totalorder %s14, 3
    %p67 = por %p65, %p66
    %p68 = scmp.ne.s32.totalorder %s59, %s60
    %p69 = scmp.eq.s32.totalorder %s14, 0
    %p70 = por %p68, %p69
    %p71 = scmp.ne.s32.totalorder %s59, %s60
    %p72 = scmp.eq.s32.totalorder %s15, 3
    %p73 = por %p71, %p72
    %p75 = scmp.ne.s32.totalorder %s60, %s74
    %p76 = scmp.eq.s32.totalorder %s15, 0
    %p77 = por %p75, %p76
    %s79 = sadd.s32 %s78, 1
    %p82 = scmp.eq.s32.totalorder %s9, 3
    %p83 = scmp.ne.s32.totalorder %s78, %s80
    %p84 = scmp.eq.s32.totalorder %s9, 0
    %p85 = por %p83, %p84
    %p86 = scmp.ne.s32.totalorder %s78, %s80
    %p87 = scmp.eq.s32.totalorder %s14, 3
    %p88 = por %p86, %p87
    %p89 = scmp.ne.s32.totalorder %s80, %s81
    %p90 = scmp.eq.s32.totalorder %s14, 0
    %p91 = por %p89, %p90
    %p92 = scmp.ne.s32.totalorder %s80, %s81
    %p93 = scmp.eq.s32.totalorder %s15, 3
    %p94 = por %p92, %p93
    %p96 = scmp.ne.s32.totalorder %s81, %s95
    %p97 = scmp.eq.s32.totalorder %s15, 0
    %p98 = por %p96, %p97
    %s99 = ssub.s32 %s16, %s28
    %s100 = ssub.s32 %s17, %s24
    %s101 = sor.u32 %s99, %s100
    %p102 = scmp.eq.s32.totalorder %s101, 0
    %s104 = sadd.s32 %s103, 1
    %s105 = scalar_select %p102, %s103, %s104
    %p108 = pneg %p102
    %p109 = scmp.eq.s32.totalorder %s9, 3
    %p110 = por %p108, %p109
    %p111 = scmp.ne.s32.totalorder %s103, %s106
    %p112 = scmp.eq.s32.totalorder %s9, 0
    %p113 = por %p111, %p112
    %p114 = scmp.ne.s32.totalorder %s103, %s106
    %p115 = scmp.eq.s32.totalorder %s14, 3
    %p116 = por %p114, %p115
    %p117 = scmp.ne.s32.totalorder %s106, %s107
    %p118 = scmp.eq.s32.totalorder %s14, 0
    %p119 = por %p117, %p118
    %p120 = scmp.ne.s32.totalorder %s106, %s107
    %p121 = scmp.eq.s32.totalorder %s15, 3
    %p122 = por %p120, %p121
    %p124 = scmp.ne.s32.totalorder %s107, %s123
    %p125 = scmp.eq.s32.totalorder %s15, 0
    %p126 = por %p124, %p125
    %p127 = scmp.le.s32.totalorder 1, %s9
    %p128 = scmp.lt.s32.totalorder %s9, 5
    %p129 = pnand %p127, %p128
    %p130 = pneg %p129
    // Predicated region
    $region9: #{decoder_block.2} parent=5 // pred_check
      _
    $region10: #{decoder_block.2} parent=5 // pred_check_branch
      %132 = sbr.rel (%p129) target = $region12
    $region11: #{decoder_block.2} parent=5 // pred_region
      %s133 = ssub.s32 %s9, 1
      // Predicated region
      $region13: #{decoder_block.2} parent=11 // pred_check
        %p134 = pneg %p70
      $region14: #{decoder_block.2} parent=11 // pred_check_branch
        %136 = sbr.rel (%p134) target = $region16
      $region15: #{decoder_block.2} parent=11 // pred_region
        _
      $region16: #{decoder_block.2} parent=11 // pred_fallthru
        _
      // Predicated region
      $region17: #{decoder_block.2} parent=11 // pred_check
        %p137 = pneg %p91
      $region18: #{decoder_block.2} parent=11 // pred_check_branch
        %139 = sbr.rel (%p137) target = $region20
      $region19: #{decoder_block.2} parent=11 // pred_region
        _
      $region20: #{decoder_block.2} parent=11 // pred_fallthru
        _
    $region12: #{decoder_block.2} parent=5 // pred_fallthru
      _
    %p140 = scmp.lt.s32.totalorder %s9, 4
    // Predicated region
    $region21: #{decoder_block.2} parent=5 // pred_check
      %p141 = pneg %p140
    $region22: #{decoder_block.2} parent=5 // pred_check_branch
      %143 = sbr.rel (%p141) target = $region24
    $region23: #{decoder_block.2} parent=5 // pred_region
      // Predicated region
      $region25: #{decoder_block.2} parent=23 // pred_check
        %p144 = pneg %p43
      $region26: #{decoder_block.2} parent=23 // pred_check_branch
        %146 = sbr.rel (%p144) target = $region28
      $region27: #{decoder_block.2} parent=23 // pred_region
        %s147 = smul.u32 16, %s17
        %p148 = scmp.lt.s32.totalorder %s16, 1
        %s149 = scalar_select %p148, %s16, 1
        %p150 = scmp.lt.s32.totalorder %s147, 31
        %s151 = scalar_select %p150, %s147, 31
        %s152 = smul.addr %s149, 32
        %s153 = sadd.s32 %s151, %s152
        %s154 = smul.addr %s153, 8
        %s155 = scalar_lea.vmem %s0, %s154
        %s156 = smul.u32 16, %s17
      $region28: #{decoder_block.2} parent=23 // pred_fallthru
        _
    $region24: #{decoder_block.2} parent=5 // pred_fallthru
      _
    %p157 = scmp.le.s32.totalorder 1, %s9
    %p158 = scmp.lt.s32.totalorder %s9, 5
    %p159 = pnand %p157, %p158
    %p160 = pneg %p159
    // Predicated region
    $region29: #{decoder_block.2} parent=5 // pred_check
      _
    $region30: #{decoder_block.2} parent=5 // pred_check_branch
      %162 = sbr.rel (%p159) target = $region32
    $region31: #{decoder_block.2} parent=5 // pred_region
      %s163 = ssub.s32 %s9, 1
      %s164 = smul.u32 16, %s19
      %p165 = scmp.lt.s32.totalorder %s18, 1
      %s166 = scalar_select %p165, %s18, 1
      %p167 = scmp.lt.s32.totalorder %s164, 31
      %s168 = scalar_select %p167, %s164, 31
      %s169 = smul.addr %s166, 32
      %s170 = sadd.s32 %s168, %s169
      %s171 = smul.addr %s170, 8
      %s172 = scalar_lea.vmem %s0, %s171
      %p173 = pneg %p49
      %p174 = pneg %p46
      %p175 = pneg %p70
      %p176 = pneg %p67
      %p177 = pneg %p91
      %p178 = pneg %p88
      %p179 = pneg %p119
      %p180 = pneg %p116
      %s181 = smul.u32 16, %s19
      %p182 = scmp.lt.s32.totalorder %s18, 1
      %s183 = scalar_select %p182, %s18, 1
      %p184 = scmp.lt.s32.totalorder %s181, 31
      %s185 = scalar_select %p184, %s181, 31
      %s186 = smul.addr %s185, 3
      %s187 = smul.addr %s183, 96
      %s188 = sadd.s32 %s186, %s187
      %s189 = smul.addr %s188, 4
      %s190 = scalar_lea.vmem %s3, %s189
      %s191 = smul.u32 16, %s19
      %p192 = scmp.lt.s32.totalorder %s18, 1
      %s193 = scalar_select %p192, %s18, 1
      %p194 = scmp.lt.s32.totalorder %s191, 31
      %s195 = scalar_select %p194, %s191, 31
      %s196 = smul.addr %s193, 32
      %s197 = sadd.s32 %s195, %s196
      %s198 = smul.addr %s197, 8
      %s199 = scalar_lea.vmem %s0, %s198
      %s200 = smul.u32 16, %s19
      %s201 = smul.u32 16, %s19
      %p202 = scmp.lt.s32.totalorder %s18, 1
      %s203 = scalar_select %p202, %s18, 1
      %p204 = scmp.lt.s32.totalorder %s201, 31
      %s205 = scalar_select %p204, %s201, 31
      %s206 = smul.addr %s205, 3
      %s207 = smul.addr %s203, 96
      %s208 = sadd.s32 %s206, %s207
      %s209 = smul.addr %s208, 4
      %s210 = scalar_lea.vmem %s3, %s209
      %s211 = smul.u32 16, %s19
      %v213 = vld [vmem:[%s199] sm:$0xff]
      %v214 = vld [vmem:[%s199 + $0x8] sm:$0xff]
      %v215 = vld [vmem:[%s199 + $0x10] sm:$0xff]
      %v216 = vld [vmem:[%s199 + $0x18] sm:$0xff]
      %v217 = vld [vmem:[%s199 + $0x20] sm:$0xff]
      %v218 = vld [vmem:[%s199 + $0x28] sm:$0xff]
      %v219 = vld [vmem:[%s199 + $0x30] sm:$0xff]
      %v220 = vld [vmem:[%s199 + $0x38] sm:$0xff]
      %v221 = vld [vmem:[%s199 + $0x40] sm:$0xff]
      %v222 = vld [vmem:[%s199 + $0x48] sm:$0xff]
      %v223 = vld [vmem:[%s199 + $0x50] sm:$0xff]
      %v224 = vld [vmem:[%s199 + $0x58] sm:$0xff]
      %v225 = vld [vmem:[%s199 + $0x60] sm:$0xff]
      %v226 = vld [vmem:[%s199 + $0x68] sm:$0xff]
      %v227 = vld [vmem:[%s199 + $0x70] sm:$0xff]
      %v228 = vld [vmem:[%s199 + $0x78] sm:$0xff]
      %v229 = vpack.c.bf16 %v214, %v213
      %v230 = vpack.c.bf16 %v216, %v215
      %v231 = vpack.c.bf16 %v218, %v217
      %v232 = vpack.c.bf16 %v220, %v219
      %v233 = vpack.c.bf16 %v222, %v221
      %v234 = vpack.c.bf16 %v224, %v223
      %v235 = vpack.c.bf16 %v226, %v225
      %v236 = vpack.c.bf16 %v228, %v227
      %v237 = vld [vmem:[%s1] sm:$0xff]
      %v238 = vld [vmem:[%s1 + $0x8] sm:$0xf]
      %v239 = vld [vmem:[%s1 + $0xc] sm:$0xff]
      %v240 = vld [vmem:[%s1 + $0x14] sm:$0xf]
      %v241 = vld [vmem:[%s1 + $0x18] sm:$0xff]
      %v242 = vld [vmem:[%s1 + $0x20] sm:$0xf]
      %v243 = vld [vmem:[%s1 + $0x24] sm:$0xff]
      %v244 = vld [vmem:[%s1 + $0x2c] sm:$0xf]
      %v245 = vld [vmem:[%s1 + $0x30] sm:$0xff]
      %v246 = vld [vmem:[%s1 + $0x38] sm:$0xf]
      %v247 = vld [vmem:[%s1 + $0x3c] sm:$0xff]
      %v248 = vld [vmem:[%s1 + $0x44] sm:$0xf]
      %v249 = vld [vmem:[%s1 + $0x48] sm:$0xff]
      %v250 = vld [vmem:[%s1 + $0x50] sm:$0xf]
      %v251 = vld [vmem:[%s1 + $0x54] sm:$0xff]
      %v252 = vld [vmem:[%s1 + $0x5c] sm:$0xf]
      %v253 = vld [vmem:[%s1 + $0x60] sm:$0xff]
      %v254 = vld [vmem:[%s1 + $0x68] sm:$0xf]
      %v255 = vld [vmem:[%s1 + $0x6c] sm:$0xff]
      %v256 = vld [vmem:[%s1 + $0x74] sm:$0xf]
      %v257 = vld [vmem:[%s1 + $0x78] sm:$0xff]
      %v258 = vld [vmem:[%s1 + $0x80] sm:$0xf]
      %v259 = vld [vmem:[%s1 + $0x84] sm:$0xff]
      %v260 = vld [vmem:[%s1 + $0x8c] sm:$0xf]
      %v261 = vld [vmem:[%s1 + $0x90] sm:$0xff]
      %v262 = vld [vmem:[%s1 + $0x98] sm:$0xf]
      %v263 = vld [vmem:[%s1 + $0x9c] sm:$0xff]
      %v264 = vld [vmem:[%s1 + $0xa4] sm:$0xf]
      %v265 = vld [vmem:[%s1 + $0xa8] sm:$0xff]
      %v266 = vld [vmem:[%s1 + $0xb0] sm:$0xf]
      %v267 = vld [vmem:[%s1 + $0xb4] sm:$0xff]
      %v268 = vld [vmem:[%s1 + $0xbc] sm:$0xf]
      %v269 = vld [vmem:[%s2] sm:$0x7]
      %v271 = vlaneseq
      %v272 = vshrl.u32 %v271, 7
      %v273 = vsub.s32 0, %v272
      %v274 = vrot.slane %v269, %v273
      %v275 = vlaneseq
      %v276 = vshrl.u32 %v275, 7
      %v277 = vsub.s32 1, %v276
      %v278 = vrot.slane %v269, %v277
      %v279 = vlaneseq
      %v280 = vshrl.u32 %v279, 7
      %v281 = vsub.s32 2, %v280
      %v282 = vrot.slane %v269, %v281
      %v318 = vunpack.c.l.b16 %v237
      %v319 = vunpack.c.h.b16 %v237
      %v320 = vunpack.c.l.b16 %v238
      %v321 = vunpack.c.l.b16 %v239
      %v322 = vunpack.c.h.b16 %v239
      %v323 = vunpack.c.l.b16 %v240
      %v324 = vunpack.c.l.b16 %v241
      %v325 = vunpack.c.h.b16 %v241
      %v326 = vunpack.c.l.b16 %v242
      %v327 = vunpack.c.l.b16 %v243
      %v328 = vunpack.c.h.b16 %v243
      %v329 = vunpack.c.l.b16 %v244
      %v330 = vunpack.c.l.b16 %v245
      %v331 = vunpack.c.h.b16 %v245
      %v332 = vunpack.c.l.b16 %v246
      %v333 = vunpack.c.l.b16 %v247
      %v334 = vunpack.c.h.b16 %v247
      %v335 = vunpack.c.l.b16 %v248
      %v336 = vunpack.c.l.b16 %v249
      %v337 = vunpack.c.h.b16 %v249
      %v338 = vunpack.c.l.b16 %v250
      %v339 = vunpack.c.l.b16 %v251
      %v340 = vunpack.c.h.b16 %v251
      %v341 = vunpack.c.l.b16 %v252
      %v342 = vunpack.c.l.b16 %v253
      %v343 = vunpack.c.h.b16 %v253
      %v344 = vunpack.c.l.b16 %v254
      %v345 = vunpack.c.l.b16 %v255
      %v346 = vunpack.c.h.b16 %v255
      %v347 = vunpack.c.l.b16 %v256
      %v348 = vunpack.c.l.b16 %v257
      %v349 = vunpack.c.h.b16 %v257
      %v350 = vunpack.c.l.b16 %v258
      %v351 = vunpack.c.l.b16 %v259
      %v352 = vunpack.c.h.b16 %v259
      %v353 = vunpack.c.l.b16 %v260
      %v354 = vunpack.c.l.b16 %v261
      %v355 = vunpack.c.h.b16 %v261
      %v356 = vunpack.c.l.b16 %v262
      %v357 = vunpack.c.l.b16 %v263
      %v358 = vunpack.c.h.b16 %v263
      %v359 = vunpack.c.l.b16 %v264
      %v360 = vunpack.c.l.b16 %v265
      %v361 = vunpack.c.h.b16 %v265
      %v362 = vunpack.c.l.b16 %v266
      %v363 = vunpack.c.l.b16 %v267
      %v364 = vunpack.c.h.b16 %v267
      %v365 = vunpack.c.l.b16 %v268
      %v366 = vpack.c.b16 %v321, %v318
      %v367 = vpack.c.b16 %v322, %v319
      %v368 = vpack.c.b16 %v323, %v320
      %v369 = vpack.c.b16 %v327, %v324
      %v370 = vpack.c.b16 %v328, %v325
      %v371 = vpack.c.b16 %v329, %v326
      %v372 = vpack.c.b16 %v333, %v330
      %v373 = vpack.c.b16 %v334, %v331
      %v374 = vpack.c.b16 %v335, %v332
      %v375 = vpack.c.b16 %v339, %v336
      %v376 = vpack.c.b16 %v340, %v337
      %v377 = vpack.c.b16 %v341, %v338
      %v378 = vpack.c.b16 %v345, %v342
      %v379 = vpack.c.b16 %v346, %v343
      %v380 = vpack.c.b16 %v347, %v344
      %v381 = vpack.c.b16 %v351, %v348
      %v382 = vpack.c.b16 %v352, %v349
      %v383 = vpack.c.b16 %v353, %v350
      %v384 = vpack.c.b16 %v357, %v354
      %v385 = vpack.c.b16 %v358, %v355
      %v386 = vpack.c.b16 %v359, %v356
      %v387 = vpack.c.b16 %v363, %v360
      %v388 = vpack.c.b16 %v364, %v361
      %v389 = vpack.c.b16 %v365, %v362
      %414 = vmatprep.subr.bf16.mxu0 %v367
      %415 = vmatpush1.bf16.msra.mxu0 %v366
      %416 = vmatprep.subr.bf16.mxu0 %v370
      %417 = vmatpush1.bf16.msra.mxu0 %v369
      %418 = vmatprep.subr.bf16.mxu0 %v373
      %419 = vmatpush1.bf16.msra.mxu0 %v372
      %420 = vmatprep.subr.bf16.mxu0 %v376
      %421 = vmatpush1.bf16.msra.mxu0 %v375
      %422 = vmatprep.subr.bf16.mxu0 %v379
      %423 = vmatpush1.bf16.msra.mxu0 %v378
      %424 = vmatprep.subr.bf16.mxu0 %v382
      %425 = vmatpush1.bf16.msra.mxu0 %v381
      %426 = vmatprep.subr.bf16.mxu0 %v385
      %427 = vmatpush1.bf16.msra.mxu0 %v384
      %428 = vmatprep.subr.bf16.mxu0 %v388
      %429 = vmatpush1.bf16.msra.mxu0 %v387
      %430 = vmatprep.subr.bf16.mxu0 0
      %431 = vmatpush1.bf16.msra.mxu0 0
      %432 = vmatprep.subr.bf16.mxu0 0
      %433 = vmatpush1.bf16.msra.mxu0 0
      %434 = vmatprep.subr.bf16.mxu0 0
      %435 = vmatpush1.bf16.msra.mxu0 0
      %436 = vmatprep.subr.bf16.mxu0 0
      %437 = vmatpush1.bf16.msra.mxu0 0
      %438 = vmatprep.subr.bf16.mxu0 0
      %439 = vmatpush1.bf16.msra.mxu0 0
      %440 = vmatprep.subr.bf16.mxu0 0
      %441 = vmatpush1.bf16.msra.mxu0 0
      %442 = vmatprep.subr.bf16.mxu0 0
      %443 = vmatpush1.bf16.msra.mxu0 0
      %444 = vmatprep.subr.bf16.mxu0 0
      %445 = vmatpush1.bf16.msra.mxu0 0
      %446 = vmatprep.mubr.bf16.mxu0 0
      %447 = vmatmul.mubr.bf16.gmra.mrb[0].mxu0 %v229
      %v448 = vpop.f32.mrb[0].mxu0
      %v449 = vadd.f32 %v274, %v448
      %v450 = vpop.f32.mrb[0].mxu0
      %v451 = vadd.f32 %v278, %v450
      %v452 = vpop.f32.mrb[0].mxu0
      %v453 = vadd.f32 %v274, %v452
      %v454 = vpop.f32.mrb[0].mxu0
      %v455 = vadd.f32 %v278, %v454
      %456 = vmatprep.mubr.bf16.mxu0 0
      %457 = vmatmul.mubr.bf16.gmra.mrb[0].mxu0 %v230
      %v458 = vpop.f32.mrb[0].mxu0
      %v459 = vadd.f32 %v274, %v458
      %v460 = vpop.f32.mrb[0].mxu0
      %v461 = vadd.f32 %v278, %v460
      %v462 = vpop.f32.mrb[0].mxu0
      %v463 = vadd.f32 %v274, %v462
      %v464 = vpop.f32.mrb[0].mxu0
      %v465 = vadd.f32 %v278, %v464
      %466 = vmatprep.mubr.bf16.mxu0 0
      %467 = vmatmul.mubr.bf16.gmra.mrb[0].mxu0 %v231
      %v468 = vpop.f32.mrb[0].mxu0
      %v469 = vadd.f32 %v274, %v468
      %v470 = vpop.f32.mrb[0].mxu0
      %v471 = vadd.f32 %v278, %v470
      %v472 = vpop.f32.mrb[0].mxu0
      %v473 = vadd.f32 %v274, %v472
      %v474 = vpop.f32.mrb[0].mxu0
      %v475 = vadd.f32 %v278, %v474
      %476 = vmatprep.mubr.bf16.mxu0 0
      %477 = vmatmul.mubr.bf16.gmra.mrb[0].mxu0 %v232
      %v478 = vpop.f32.mrb[0].mxu0
      %v479 = vadd.f32 %v274, %v478
      %v480 = vpop.f32.mrb[0].mxu0
      %v481 = vadd.f32 %v278, %v480
      %v482 = vpop.f32.mrb[0].mxu0
      %v483 = vadd.f32 %v274, %v482
      %v484 = vpop.f32.mrb[0].mxu0
      %v485 = vadd.f32 %v278, %v484
      %486 = vmatprep.mubr.bf16.mxu0 0
      %487 = vmatmul.mubr.bf16.gmra.mrb[0].mxu0 %v233
      %v488 = vpop.f32.mrb[0].mxu0
      %v489 = vadd.f32 %v274, %v488
      %v490 = vpop.f32.mrb[0].mxu0
      %v491 = vadd.f32 %v278, %v490
      %v492 = vpop.f32.mrb[0].mxu0
      %v493 = vadd.f32 %v274, %v492
      %v494 = vpop.f32.mrb[0].mxu0
      %v495 = vadd.f32 %v278, %v494
      %496 = vmatprep.mubr.bf16.mxu0 0
      %497 = vmatmul.mubr.bf16.gmra.mrb[0].mxu0 %v234
      %v498 = vpop.f32.mrb[0].mxu0
      %v499 = vadd.f32 %v274, %v498
      %v500 = vpop.f32.mrb[0].mxu0
      %v501 = vadd.f32 %v278, %v500
      %v502 = vpop.f32.mrb[0].mxu0
      %v503 = vadd.f32 %v274, %v502
      %v504 = vpop.f32.mrb[0].mxu0
      %v505 = vadd.f32 %v278, %v504
      %506 = vmatprep.mubr.bf16.mxu0 0
      %507 = vmatmul.mubr.bf16.gmra.mrb[0].mxu0 %v235
      %v508 = vpop.f32.mrb[0].mxu0
      %v509 = vadd.f32 %v274, %v508
      %v510 = vpop.f32.mrb[0].mxu0
      %v511 = vadd.f32 %v278, %v510
      %v512 = vpop.f32.mrb[0].mxu0
      %v513 = vadd.f32 %v274, %v512
      %v514 = vpop.f32.mrb[0].mxu0
      %v515 = vadd.f32 %v278, %v514
      %516 = vmatprep.mubr.bf16.mxu0 0
      %517 = vmatmul.mubr.bf16.gmra.mrb[0].mxu0 %v236
      %v518 = vpop.f32.mrb[0].mxu0
      %v519 = vadd.f32 %v274, %v518
      %v520 = vpop.f32.mrb[0].mxu0
      %v521 = vadd.f32 %v278, %v520
      %v522 = vpop.f32.mrb[0].mxu0
      %v523 = vadd.f32 %v274, %v522
      %v524 = vpop.f32.mrb[0].mxu0
      %v525 = vadd.f32 %v278, %v524
      %526 = vdwg.mxu0
      %527 = vmatprep.subr.bf16.mxu0 0
      %528 = vmatpush1.bf16.msra.mxu0 %v368
      %529 = vmatprep.subr.bf16.mxu0 0
      %530 = vmatpush1.bf16.msra.mxu0 %v371
      %531 = vmatprep.subr.bf16.mxu0 0
      %532 = vmatpush1.bf16.msra.mxu0 %v374
      %533 = vmatprep.subr.bf16.mxu0 0
      %534 = vmatpush1.bf16.msra.mxu0 %v377
      %535 = vmatprep.subr.bf16.mxu0 0
      %536 = vmatpush1.bf16.msra.mxu0 %v380
      %537 = vmatprep.subr.bf16.mxu0 0
      %538 = vmatpush1.bf16.msra.mxu0 %v383
      %539 = vmatprep.subr.bf16.mxu0 0
      %540 = vmatpush1.bf16.msra.mxu0 %v386
      %541 = vmatprep.subr.bf16.mxu0 0
      %542 = vmatpush1.bf16.msra.mxu0 %v389
      %543 = vmatprep.subr.bf16.mxu0 0
      %544 = vmatpush1.bf16.msra.mxu0 0
      %545 = vmatprep.subr.bf16.mxu0 0
      %546 = vmatpush1.bf16.msra.mxu0 0
      %547 = vmatprep.subr.bf16.mxu0 0
      %548 = vmatpush1.bf16.msra.mxu0 0
      %549 = vmatprep.subr.bf16.mxu0 0
      %550 = vmatpush1.bf16.msra.mxu0 0
      %551 = vmatprep.subr.bf16.mxu0 0
      %552 = vmatpush1.bf16.msra.mxu0 0
      %553 = vmatprep.subr.bf16.mxu0 0
      %554 = vmatpush1.bf16.msra.mxu0 0
      %555 = vmatprep.subr.bf16.mxu0 0
      %556 = vmatpush1.bf16.msra.mxu0 0
      %557 = vmatprep.subr.bf16.mxu0 0
      %558 = vmatpush1.bf16.msra.mxu0 0
      %559 = vmatprep.mubr.bf16.mxu0 0
      %560 = vmatmul.mubr.bf16.gmra.mrb[0].mxu0 %v229
      %v561 = vpop.f32.mrb[0].mxu0
      %v562 = vadd.f32 %v282, %v561
      %v563 = vpop.f32.mrb[0].mxu0
      %v564 = vpop.f32.mrb[0].mxu0
      %v565 = vadd.f32 %v282, %v564
      %v566 = vpop.f32.mrb[0].mxu0
      %567 = vmatprep.mubr.bf16.mxu0 0
      %568 = vmatmul.mubr.bf16.gmra.mrb[0].mxu0 %v230
      %v569 = vpop.f32.mrb[0].mxu0
      %v570 = vadd.f32 %v282, %v569
      %v571 = vpop.f32.mrb[0].mxu0
      %v572 = vpop.f32.mrb[0].mxu0
      %v573 = vadd.f32 %v282, %v572
      %v574 = vpop.f32.mrb[0].mxu0
      %575 = vmatprep.mubr.bf16.mxu0 0
      %576 = vmatmul.mubr.bf16.gmra.mrb[0].mxu0 %v231
      %v577 = vpop.f32.mrb[0].mxu0
      %v578 = vadd.f32 %v282, %v577
      %v579 = vpop.f32.mrb[0].mxu0
      %v580 = vpop.f32.mrb[0].mxu0
      %v581 = vadd.f32 %v282, %v580
      %v582 = vpop.f32.mrb[0].mxu0
      %583 = vmatprep.mubr.bf16.mxu0 0
      %584 = vmatmul.mubr.bf16.gmra.mrb[0].mxu0 %v232
      %v585 = vpop.f32.mrb[0].mxu0
      %v586 = vadd.f32 %v282, %v585
      %v587 = vpop.f32.mrb[0].mxu0
      %v588 = vpop.f32.mrb[0].mxu0
      %v589 = vadd.f32 %v282, %v588
      %v590 = vpop.f32.mrb[0].mxu0
      %591 = vmatprep.mubr.bf16.mxu0 0
      %592 = vmatmul.mubr.bf16.gmra.mrb[0].mxu0 %v233
      %v593 = vpop.f32.mrb[0].mxu0
      %v594 = vadd.f32 %v282, %v593
      %v595 = vpop.f32.mrb[0].mxu0
      %v596 = vpop.f32.mrb[0].mxu0
      %v597 = vadd.f32 %v282, %v596
      %v598 = vpop.f32.mrb[0].mxu0
      %599 = vmatprep.mubr.bf16.mxu0 0
      %600 = vmatmul.mubr.bf16.gmra.mrb[0].mxu0 %v234
      %v601 = vpop.f32.mrb[0].mxu0
      %v602 = vadd.f32 %v282, %v601
      %v603 = vpop.f32.mrb[0].mxu0
      %v604 = vpop.f32.mrb[0].mxu0
      %v605 = vadd.f32 %v282, %v604
      %v606 = vpop.f32.mrb[0].mxu0
      %607 = vmatprep.mubr.bf16.mxu0 0
      %608 = vmatmul.mubr.bf16.gmra.mrb[0].mxu0 %v235
      %v609 = vpop.f32.mrb[0].mxu0
      %v610 = vadd.f32 %v282, %v609
      %v611 = vpop.f32.mrb[0].mxu0
      %v612 = vpop.f32.mrb[0].mxu0
      %v613 = vadd.f32 %v282, %v612
      %v614 = vpop.f32.mrb[0].mxu0
      %615 = vmatprep.mubr.bf16.mxu0 0
      %616 = vmatmul.mubr.bf16.gmra.mrb[0].mxu0 %v236
      %v617 = vpop.f32.mrb[0].mxu0
      %v618 = vadd.f32 %v282, %v617
      %v619 = vpop.f32.mrb[0].mxu0
      %v620 = vpop.f32.mrb[0].mxu0
      %v621 = vadd.f32 %v282, %v620
      %v622 = vpop.f32.mrb[0].mxu0
      %623 = vdwg.mxu0
      %v624 = vpack.c.bf16 %v453, %v449
      %v625 = vpack.c.bf16 %v455, %v451
      %v626 = vpack.c.bf16 %v565, %v562
      %v627 = vpack.c.bf16 %v463, %v459
      %v628 = vpack.c.bf16 %v465, %v461
      %v629 = vpack.c.bf16 %v573, %v570
      %v630 = vpack.c.bf16 %v473, %v469
      %v631 = vpack.c.bf16 %v475, %v471
      %v632 = vpack.c.bf16 %v581, %v578
      %v633 = vpack.c.bf16 %v483, %v479
      %v634 = vpack.c.bf16 %v485, %v481
      %v635 = vpack.c.bf16 %v589, %v586
      %v636 = vpack.c.bf16 %v493, %v489
      %v637 = vpack.c.bf16 %v495, %v491
      %v638 = vpack.c.bf16 %v597, %v594
      %v639 = vpack.c.bf16 %v503, %v499
      %v640 = vpack.c.bf16 %v505, %v501
      %v641 = vpack.c.bf16 %v605, %v602
      %v642 = vpack.c.bf16 %v513, %v509
      %v643 = vpack.c.bf16 %v515, %v511
      %v644 = vpack.c.bf16 %v613, %v610
      %v645 = vpack.c.bf16 %v523, %v519
      %v646 = vpack.c.bf16 %v525, %v521
      %v647 = vpack.c.bf16 %v621, %v618
      %v672 = vunpack.c.l.b16 %v624
      %v673 = vunpack.c.l.b16 %v625
      %v674 = vunpack.c.l.b16 %v626
      %v675 = vunpack.c.h.b16 %v624
      %v676 = vunpack.c.h.b16 %v625
      %v677 = vunpack.c.h.b16 %v626
      %v678 = vunpack.c.l.b16 %v627
      %v679 = vunpack.c.l.b16 %v628
      %v680 = vunpack.c.l.b16 %v629
      %v681 = vunpack.c.h.b16 %v627
      %v682 = vunpack.c.h.b16 %v628
      %v683 = vunpack.c.h.b16 %v629
      %v684 = vunpack.c.l.b16 %v630
      %v685 = vunpack.c.l.b16 %v631
      %v686 = vunpack.c.l.b16 %v632
      %v687 = vunpack.c.h.b16 %v630
      %v688 = vunpack.c.h.b16 %v631
      %v689 = vunpack.c.h.b16 %v632
      %v690 = vunpack.c.l.b16 %v633
      %v691 = vunpack.c.l.b16 %v634
      %v692 = vunpack.c.l.b16 %v635
      %v693 = vunpack.c.h.b16 %v633
      %v694 = vunpack.c.h.b16 %v634
      %v695 = vunpack.c.h.b16 %v635
      %v696 = vunpack.c.l.b16 %v636
      %v697 = vunpack.c.l.b16 %v637
      %v698 = vunpack.c.l.b16 %v638
      %v699 = vunpack.c.h.b16 %v636
      %v700 = vunpack.c.h.b16 %v637
      %v701 = vunpack.c.h.b16 %v638
      %v702 = vunpack.c.l.b16 %v639
      %v703 = vunpack.c.l.b16 %v640
      %v704 = vunpack.c.l.b16 %v641
      %v705 = vunpack.c.h.b16 %v639
      %v706 = vunpack.c.h.b16 %v640
      %v707 = vunpack.c.h.b16 %v641
      %v708 = vunpack.c.l.b16 %v642
      %v709 = vunpack.c.l.b16 %v643
      %v710 = vunpack.c.l.b16 %v644
      %v711 = vunpack.c.h.b16 %v642
      %v712 = vunpack.c.h.b16 %v643
      %v713 = vunpack.c.h.b16 %v644
      %v714 = vunpack.c.l.b16 %v645
      %v715 = vunpack.c.l.b16 %v646
      %v716 = vunpack.c.l.b16 %v647
      %v717 = vunpack.c.h.b16 %v645
      %v718 = vunpack.c.h.b16 %v646
      %v719 = vunpack.c.h.b16 %v647
      %v720 = vpack.c.b16 %v673, %v672
      %v721 = vpack.c.b16 %v674, %v674
      %v722 = vpack.c.b16 %v676, %v675
      %v723 = vpack.c.b16 %v677, %v677
      %v724 = vpack.c.b16 %v679, %v678
      %v725 = vpack.c.b16 %v680, %v680
      %v726 = vpack.c.b16 %v682, %v681
      %v727 = vpack.c.b16 %v683, %v683
      %v728 = vpack.c.b16 %v685, %v684
      %v729 = vpack.c.b16 %v686, %v686
      %v730 = vpack.c.b16 %v688, %v687
      %v731 = vpack.c.b16 %v689, %v689
      %v732 = vpack.c.b16 %v691, %v690
      %v733 = vpack.c.b16 %v692, %v692
      %v734 = vpack.c.b16 %v694, %v693
      %v735 = vpack.c.b16 %v695, %v695
      %v736 = vpack.c.b16 %v697, %v696
      %v737 = vpack.c.b16 %v698, %v698
      %v738 = vpack.c.b16 %v700, %v699
      %v739 = vpack.c.b16 %v701, %v701
      %v740 = vpack.c.b16 %v703, %v702
      %v741 = vpack.c.b16 %v704, %v704
      %v742 = vpack.c.b16 %v706, %v705
      %v743 = vpack.c.b16 %v707, %v707
      %v744 = vpack.c.b16 %v709, %v708
      %v745 = vpack.c.b16 %v710, %v710
      %v746 = vpack.c.b16 %v712, %v711
      %v747 = vpack.c.b16 %v713, %v713
      %v748 = vpack.c.b16 %v715, %v714
      %v749 = vpack.c.b16 %v716, %v716
      %v750 = vpack.c.b16 %v718, %v717
      %v751 = vpack.c.b16 %v719, %v719
      %784 = vst [vmem:[%s210] sm:$0xff] %v720
      %785 = vst [vmem:[%s210 + $0x8] sm:$0xf] %v721
      %786 = vst [vmem:[%s210 + $0xc] sm:$0xff] %v722
      %787 = vst [vmem:[%s210 + $0x14] sm:$0xf] %v723
      %788 = vst [vmem:[%s210 + $0x18] sm:$0xff] %v724
      %789 = vst [vmem:[%s210 + $0x20] sm:$0xf] %v725
      %790 = vst [vmem:[%s210 + $0x24] sm:$0xff] %v726
      %791 = vst [vmem:[%s210 + $0x2c] sm:$0xf] %v727
      %792 = vst [vmem:[%s210 + $0x30] sm:$0xff] %v728
      %793 = vst [vmem:[%s210 + $0x38] sm:$0xf] %v729
      %794 = vst [vmem:[%s210 + $0x3c] sm:$0xff] %v730
      %795 = vst [vmem:[%s210 + $0x44] sm:$0xf] %v731
      %796 = vst [vmem:[%s210 + $0x48] sm:$0xff] %v732
      %797 = vst [vmem:[%s210 + $0x50] sm:$0xf] %v733
      %798 = vst [vmem:[%s210 + $0x54] sm:$0xff] %v734
      %799 = vst [vmem:[%s210 + $0x5c] sm:$0xf] %v735
      %800 = vst [vmem:[%s210 + $0x60] sm:$0xff] %v736
      %801 = vst [vmem:[%s210 + $0x68] sm:$0xf] %v737
      %802 = vst [vmem:[%s210 + $0x6c] sm:$0xff] %v738
      %803 = vst [vmem:[%s210 + $0x74] sm:$0xf] %v739
      %804 = vst [vmem:[%s210 + $0x78] sm:$0xff] %v740
      %805 = vst [vmem:[%s210 + $0x80] sm:$0xf] %v741
      %806 = vst [vmem:[%s210 + $0x84] sm:$0xff] %v742
      %807 = vst [vmem:[%s210 + $0x8c] sm:$0xf] %v743
      %808 = vst [vmem:[%s210 + $0x90] sm:$0xff] %v744
      %809 = vst [vmem:[%s210 + $0x98] sm:$0xf] %v745
      %810 = vst [vmem:[%s210 + $0x9c] sm:$0xff] %v746
      %811 = vst [vmem:[%s210 + $0xa4] sm:$0xf] %v747
      %812 = vst [vmem:[%s210 + $0xa8] sm:$0xff] %v748
      %813 = vst [vmem:[%s210 + $0xb0] sm:$0xf] %v749
      %814 = vst [vmem:[%s210 + $0xb4] sm:$0xff] %v750
      %815 = vst [vmem:[%s210 + $0xbc] sm:$0xf] %v751
      %s816 = smul.u32 16, %s19
      %p817 = scmp.lt.s32.totalorder %s18, 1
      %s818 = scalar_select %p817, %s18, 1
      %p819 = scmp.lt.s32.totalorder %s816, 31
      %s820 = scalar_select %p819, %s816, 31
      %s821 = smul.addr %s820, 3
      %s822 = smul.addr %s818, 96
      %s823 = sadd.s32 %s821, %s822
      %s824 = smul.addr %s823, 4
      %s825 = scalar_lea.vmem %s3, %s824
      // Predicated region
      $region33: #{decoder_block.2} parent=31 // pred_check
        %p826 = pneg %p116
      $region34: #{decoder_block.2} parent=31 // pred_check_branch
        %828 = sbr.rel (%p826) target = $region36
      $region35: #{decoder_block.2} parent=31 // pred_region
        %s829 = smul.u32 16, %s19
      $region36: #{decoder_block.2} parent=31 // pred_fallthru
        _
    $region32: #{decoder_block.2} parent=5 // pred_fallthru
      _
    %p830 = scmp.le.s32.totalorder 2, %s9
    // Predicated region
    $region37: #{decoder_block.2} parent=5 // pred_check
      %p831 = pneg %p830
    $region38: #{decoder_block.2} parent=5 // pred_check_branch
      %833 = sbr.rel (%p831) target = $region40
    $region39: #{decoder_block.2} parent=5 // pred_region
      %s834 = ssub.s32 %s9, 2
      // Predicated region
      $region41: #{decoder_block.2} parent=39 // pred_check
        %p835 = pneg %p122
      $region42: #{decoder_block.2} parent=39 // pred_check_branch
        %837 = sbr.rel (%p835) target = $region44
      $region43: #{decoder_block.2} parent=39 // pred_region
        %s838 = smul.u32 16, %s21
        %p839 = scmp.lt.s32.totalorder %s20, 1
        %s840 = scalar_select %p839, %s20, 1
        %p841 = scmp.lt.s32.totalorder %s838, 31
        %s842 = scalar_select %p841, %s838, 31
        %s843 = smul.addr %s842, 3
        %s844 = smul.addr %s840, 96
        %s845 = sadd.s32 %s843, %s844
        %s846 = smul.addr %s845, 4
        %s847 = scalar_lea.vmem %s3, %s846
      $region44: #{decoder_block.2} parent=39 // pred_fallthru
        _
    $region40: #{decoder_block.2} parent=5 // pred_fallthru
      _
  $region6: #{decoder_block.2} parent=0 // loop_footer
    %s13 = sadd.s32 1, %s9
  $region7: #{decoder_block.2} parent=0 // loop_footer_branch
    %8 = sbr.rel target = $region3
  $region8: #{decoder_block.2} parent=0 // loop_exit
    _

// kernel: decoder_block.3
$region0: #{decoder_block.3}
  #allocation0 [shape = 'u32[]', space=smem, size = 0x4, offset = 0x4, fixed_abs, tag = 'smem constant byte address 0x4 - core index']
  #allocation1 [shape = 'u32[144,128]{1,0:T(1,128)}', space=vmem, size = 0x12000, scoped, tag = 'internal scratch']
  #allocation2 [shape = 'f32[128,1]{1,0:T(8,128)}', space=vmem, size = 0x10000, scoped, tag = 'scratch operand']
  #allocation3 [shape = 'f32[128,1]{1,0:T(8,128)}', space=vmem, size = 0x10000, scoped, tag = 'scratch operand']
  #allocation4 [shape = 'f32[128,32]{1,0:T(8,128)}', space=vmem, size = 0x10000, scoped, tag = 'scratch operand']
  #allocation5 [shape = 'f32[128,128]{1,0:T(8,128)}', space=vmem, size = 0x10000, scoped, tag = 'scratch operand']
  %s0 = inlined_call_operand.vmem [shape: bf16[2,4,256,32], index: 0, kind: input, shape index: {}]
  %s1 = inlined_call_operand.vmem [shape: bf16[2,4,256,32], index: 1, kind: input, shape index: {}]
  %s2 = inlined_call_operand.vmem [shape: bf16[2,4,256,32], index: 2, kind: input, shape index: {}]
  %s3 = inlined_call_operand.vmem [shape: f32[2,256,128], index: 3, kind: input, shape index: {}]
  %s4 = inlined_call_operand.vmem [shape: bf16[4,32,128], index: 4, kind: input, shape index: {}]
  %s5 = inlined_call_operand.vmem [shape: f32[1,128], index: 5, kind: input, shape index: {}]
  %s6 = inlined_call_operand.vmem [shape: f32[1,128], index: 6, kind: input, shape index: {}]
  %s7 = inlined_call_operand.vmem [shape: f32[1,128], index: 7, kind: input, shape index: {}]
  %s8 = inlined_call_operand.vmem [shape: bf16[128,256], index: 8, kind: input, shape index: {}]
  %s9 = inlined_call_operand.vmem [shape: f32[1,256], index: 9, kind: input, shape index: {}]
  %s10 = inlined_call_operand.vmem [shape: bf16[256,128], index: 10, kind: input, shape index: {}]
  %s11 = inlined_call_operand.vmem [shape: f32[1,128], index: 11, kind: input, shape index: {}]
  %s12 = inlined_call_operand.vmem [shape: f32[1,128], index: 12, kind: input, shape index: {}]
  %s13 = inlined_call_operand.vmem [shape: f32[1,128], index: 13, kind: input, shape index: {}]
  %s14 = inlined_call_operand.hbm [shape: f32[2,256,128], index: 14, kind: output, shape index: {}]
  %s15 = sld [smem:[#allocation0]]
  $region105: #{decoder_block.3} parent=0
    _
  %s17 = ssub.s32 1, %s15
  %s18 = scalar_select 0, %s17, %s15
  $region1: #{decoder_block.3} parent=0
    #allocation6 [shape = 'u8[131072]{0}', space=vmem, size = 0x20000, scoped, tag = 'output window, operand 0']
    #allocation7 [shape = 's32[2]{0}', space=sflag, size = 0x8, scoped, tag = 'scoped memory for decoder_block.3']
    %19 = vsyncpa [#allocation7], 0
    %s20 = scalar_lea.sflag [#allocation7], 1
    %21 = vsyncpa %s20, 0
    loop: start=0, step=1, limit=34
    $region2: #{decoder_block.3} parent=1 // loop_pre_header
      _
    $region3: #{decoder_block.3} parent=1 // loop_header
      %s23 = sphi 0, %s27
      %p24 = scmp.ge.s32.totalorder %s23, 34
      %s30 = sphi 0, %s56
      %s31 = sphi 0, %s52
      %s32 = sphi 0, %s48
      %s33 = sphi 0, %s44
      %s34 = sphi 0, %s30
      %s35 = sphi 0, %s31
      %s36 = sphi 0, %s32
      %s37 = sphi 0, %s33
      %s38 = sphi 0, %s34
      %s39 = sphi 0, %s35
      %s40 = sphi 0, %s36
      %s41 = sphi 0, %s37
      %s63 = sphi 0, %s65
      %s66 = sphi 0, %s63
      %s67 = sphi 0, %s66
      %s83 = sphi 0, %s67
      %s93 = sphi 0, %s95
      %s96 = sphi 0, %s93
      %s97 = sphi 0, %s96
      %s113 = sphi 0, %s97
      %s123 = sphi 0, %s125
      %s126 = sphi 0, %s123
      %s127 = sphi 0, %s126
      %s143 = sphi 0, %s127
      %s151 = sphi 0, %s153
      %s154 = sphi 0, %s151
      %s155 = sphi 0, %s154
      %s171 = sphi 0, %s155
      %s177 = sphi 0, %s179
      %s180 = sphi 0, %s177
      %s181 = sphi 0, %s180
      %s197 = sphi 0, %s181
      %s201 = sphi 0, %s201
      %s203 = sphi 0, %s201
      %s204 = sphi 0, %s203
      %s218 = sphi 0, %s204
      %s222 = sphi 0, %s222
      %s224 = sphi 0, %s222
      %s225 = sphi 0, %s224
      %s239 = sphi 0, %s225
      %s243 = sphi 0, %s243
      %s245 = sphi 0, %s243
      %s246 = sphi 0, %s245
      %s260 = sphi 0, %s246
      %s264 = sphi 0, %s264
      %s266 = sphi 0, %s264
      %s267 = sphi 0, %s266
      %s281 = sphi 0, %s267
      %s285 = sphi 0, %s285
      %s287 = sphi 0, %s285
      %s288 = sphi 0, %s287
      %s302 = sphi 0, %s288
      %s306 = sphi 0, %s306
      %s308 = sphi 0, %s306
      %s309 = sphi 0, %s308
      %s323 = sphi 0, %s309
      %s327 = sphi 0, %s327
      %s329 = sphi 0, %s327
      %s330 = sphi 0, %s329
      %s344 = sphi 0, %s330
      %s348 = sphi 0, %s348
      %s350 = sphi 0, %s348
      %s351 = sphi 0, %s350
      %s365 = sphi 0, %s351
      %s369 = sphi 0, %s369
      %s371 = sphi 0, %s369
      %s372 = sphi 0, %s371
      %s386 = sphi 0, %s372
      %s394 = sphi 0, %s396
      %s397 = sphi 0, %s394
      %s398 = sphi 0, %s397
      %s414 = sphi 0, %s398
    $region4: #{decoder_block.3} parent=1 // loop_header_branch
      %26 = sbr.rel (%p24) target = $region8
    $region5: #{decoder_block.3} parent=1 // loop_body
      %s28 = ssub.s32 %s23, 1
      %s29 = ssub.s32 %s23, 2
      %s42 = sadd.s32 1, %s33
      %p43 = scmp.ge.s32.totalorder %s42, 2
      %s44 = scalar_select %p43, 0, %s42
      %s45 = sadd.s32 1, %s32
      %s46 = scalar_select %p43, %s45, %s32
      %p47 = scmp.ge.s32.totalorder %s46, 4
      %s48 = scalar_select %p47, 0, %s46
      %s49 = sadd.s32 1, %s31
      %s50 = scalar_select %p47, %s49, %s31
      %p51 = scmp.ge.s32.totalorder %s50, 2
      %s52 = scalar_select %p51, 0, %s50
      %s53 = sadd.s32 1, %s30
      %s54 = scalar_select %p51, %s53, %s30
      %p55 = scmp.ge.s32.totalorder %s54, 2
      %s56 = scalar_select %p55, 0, %s54
      %s57 = ssub.s32 %s30, %s56
      %s58 = ssub.s32 %s32, %s48
      %s59 = sor.u32 %s57, %s58
      %s60 = ssub.s32 %s31, %s52
      %s61 = sor.u32 %s59, %s60
      %p62 = scmp.eq.s32.totalorder %s61, 0
      %s64 = sadd.s32 %s63, 1
      %s65 = scalar_select %p62, %s63, %s64
      %p68 = pneg %p62
      %p69 = scmp.eq.s32.totalorder %s23, 31
      %p70 = por %p68, %p69
      %p71 = scmp.ne.s32.totalorder %s63, %s66
      %p72 = scmp.eq.s32.totalorder %s23, 0
      %p73 = por %p71, %p72
      %p74 = scmp.ne.s32.totalorder %s63, %s66
      %p75 = scmp.eq.s32.totalorder %s28, 31
      %p76 = por %p74, %p75
      %p77 = scmp.ne.s32.totalorder %s66, %s67
      %p78 = scmp.eq.s32.totalorder %s28, 0
      %p79 = por %p77, %p78
      %p80 = scmp.ne.s32.totalorder %s66, %s67
      %p81 = scmp.eq.s32.totalorder %s29, 31
      %p82 = por %p80, %p81
      %p84 = scmp.ne.s32.totalorder %s67, %s83
      %p85 = scmp.eq.s32.totalorder %s29, 0
      %p86 = por %p84, %p85
      %s87 = ssub.s32 %s30, %s56
      %s88 = ssub.s32 %s32, %s48
      %s89 = sor.u32 %s87, %s88
      %s90 = ssub.s32 %s33, %s44
      %s91 = sor.u32 %s89, %s90
      %p92 = scmp.eq.s32.totalorder %s91, 0
      %s94 = sadd.s32 %s93, 1
      %s95 = scalar_select %p92, %s93, %s94
      %p98 = pneg %p92
      %p99 = scmp.eq.s32.totalorder %s23, 31
      %p100 = por %p98, %p99
      %p101 = scmp.ne.s32.totalorder %s93, %s96
      %p102 = scmp.eq.s32.totalorder %s23, 0
      %p103 = por %p101, %p102
      %p104 = scmp.ne.s32.totalorder %s93, %s96
      %p105 = scmp.eq.s32.totalorder %s28, 31
      %p106 = por %p104, %p105
      %p107 = scmp.ne.s32.totalorder %s96, %s97
      %p108 = scmp.eq.s32.totalorder %s28, 0
      %p109 = por %p107, %p108
      %p110 = scmp.ne.s32.totalorder %s96, %s97
      %p111 = scmp.eq.s32.totalorder %s29, 31
      %p112 = por %p110, %p111
      %p114 = scmp.ne.s32.totalorder %s97, %s113
      %p115 = scmp.eq.s32.totalorder %s29, 0
      %p116 = por %p114, %p115
      %s117 = ssub.s32 %s30, %s56
      %s118 = ssub.s32 %s32, %s48
      %s119 = sor.u32 %s117, %s118
      %s120 = ssub.s32 %s33, %s44
      %s121 = sor.u32 %s119, %s120
      %p122 = scmp.eq.s32.totalorder %s121, 0
      %s124 = sadd.s32 %s123, 1
      %s125 = scalar_select %p122, %s123, %s124
      %p128 = pneg %p122
      %p129 = scmp.eq.s32.totalorder %s23, 31
      %p130 = por %p128, %p129
      %p131 = scmp.ne.s32.totalorder %s123, %s126
      %p132 = scmp.eq.s32.totalorder %s23, 0
      %p133 = por %p131, %p132
      %p134 = scmp.ne.s32.totalorder %s123, %s126
      %p135 = scmp.eq.s32.totalorder %s28, 31
      %p136 = por %p134, %p135
      %p137 = scmp.ne.s32.totalorder %s126, %s127
      %p138 = scmp.eq.s32.totalorder %s28, 0
      %p139 = por %p137, %p138
      %p140 = scmp.ne.s32.totalorder %s126, %s127
      %p141 = scmp.eq.s32.totalorder %s29, 31
      %p142 = por %p140, %p141
      %p144 = scmp.ne.s32.totalorder %s127, %s143
      %p145 = scmp.eq.s32.totalorder %s29, 0
      %p146 = por %p144, %p145
      %s147 = ssub.s32 %s30, %s56
      %s148 = ssub.s32 %s31, %s52
      %s149 = sor.u32 %s147, %s148
      %p150 = scmp.eq.s32.totalorder %s149, 0
      %s152 = sadd.s32 %s151, 1
      %s153 = scalar_select %p150, %s151, %s152
      %p156 = pneg %p150
      %p157 = scmp.eq.s32.totalorder %s23, 31
      %p158 = por %p156, %p157
      %p159 = scmp.ne.s32.totalorder %s151, %s154
      %p160 = scmp.eq.s32.totalorder %s23, 0
      %p161 = por %p159, %p160
      %p162 = scmp.ne.s32.totalorder %s151, %s154
      %p163 = scmp.eq.s32.totalorder %s28, 31
      %p164 = por %p162, %p163
      %p165 = scmp.ne.s32.totalorder %s154, %s155
      %p166 = scmp.eq.s32.totalorder %s28, 0
      %p167 = por %p165, %p166
      %p168 = scmp.ne.s32.totalorder %s154, %s155
      %p169 = scmp.eq.s32.totalorder %s29, 31
      %p170 = por %p168, %p169
      %p172 = scmp.ne.s32.totalorder %s155, %s171
      %p173 = scmp.eq.s32.totalorder %s29, 0
      %p174 = por %p172, %p173
      %s175 = ssub.s32 %s32, %s48
      %p176 = scmp.eq.s32.totalorder %s175, 0
      %s178 = sadd.s32 %s177, 1
      %s179 = scalar_select %p176, %s177, %s178
      %p182 = pneg %p176
      %p183 = scmp.eq.s32.totalorder %s23, 31
      %p184 = por %p182, %p183
      %p185 = scmp.ne.s32.totalorder %s177, %s180
      %p186 = scmp.eq.s32.totalorder %s23, 0
      %p187 = por %p185, %p186
      %p188 = scmp.ne.s32.totalorder %s177, %s180
      %p189 = scmp.eq.s32.totalorder %s28, 31
      %p190 = por %p188, %p189
      %p191 = scmp.ne.s32.totalorder %s180, %s181
      %p192 = scmp.eq.s32.totalorder %s28, 0
      %p193 = por %p191, %p192
      %p194 = scmp.ne.s32.totalorder %s180, %s181
      %p195 = scmp.eq.s32.totalorder %s29, 31
      %p196 = por %p194, %p195
      %p198 = scmp.ne.s32.totalorder %s181, %s197
      %p199 = scmp.eq.s32.totalorder %s29, 0
      %p200 = por %p198, %p199
      %s202 = sadd.s32 %s201, 1
      %p205 = scmp.eq.s32.totalorder %s23, 31
      %p206 = scmp.ne.s32.totalorder %s201, %s203
      %p207 = scmp.eq.s32.totalorder %s23, 0
      %p208 = por %p206, %p207
      %p209 = scmp.ne.s32.totalorder %s201, %s203
      %p210 = scmp.eq.s32.totalorder %s28, 31
      %p211 = por %p209, %p210
      %p212 = scmp.ne.s32.totalorder %s203, %s204
      %p213 = scmp.eq.s32.totalorder %s28, 0
      %p214 = por %p212, %p213
      %p215 = scmp.ne.s32.totalorder %s203, %s204
      %p216 = scmp.eq.s32.totalorder %s29, 31
      %p217 = por %p215, %p216
      %p219 = scmp.ne.s32.totalorder %s204, %s218
      %p220 = scmp.eq.s32.totalorder %s29, 0
      %p221 = por %p219, %p220
      %s223 = sadd.s32 %s222, 1
      %p226 = scmp.eq.s32.totalorder %s23, 31
      %p227 = scmp.ne.s32.totalorder %s222, %s224
      %p228 = scmp.eq.s32.totalorder %s23, 0
      %p229 = por %p227, %p228
      %p230 = scmp.ne.s32.totalorder %s222, %s224
      %p231 = scmp.eq.s32.totalorder %s28, 31
      %p232 = por %p230, %p231
      %p233 = scmp.ne.s32.totalorder %s224, %s225
      %p234 = scmp.eq.s32.totalorder %s28, 0
      %p235 = por %p233, %p234
      %p236 = scmp.ne.s32.totalorder %s224, %s225
      %p237 = scmp.eq.s32.totalorder %s29, 31
      %p238 = por %p236, %p237
      %p240 = scmp.ne.s32.totalorder %s225, %s239
      %p241 = scmp.eq.s32.totalorder %s29, 0
      %p242 = por %p240, %p241
      %s244 = sadd.s32 %s243, 1
      %p247 = scmp.eq.s32.totalorder %s23, 31
      %p248 = scmp.ne.s32.totalorder %s243, %s245
      %p249 = scmp.eq.s32.totalorder %s23, 0
      %p250 = por %p248, %p249
      %p251 = scmp.ne.s32.totalorder %s243, %s245
      %p252 = scmp.eq.s32.totalorder %s28, 31
      %p253 = por %p251, %p252
      %p254 = scmp.ne.s32.totalorder %s245, %s246
      %p255 = scmp.eq.s32.totalorder %s28, 0
      %p256 = por %p254, %p255
      %p257 = scmp.ne.s32.totalorder %s245, %s246
      %p258 = scmp.eq.s32.totalorder %s29, 31
      %p259 = por %p257, %p258
      %p261 = scmp.ne.s32.totalorder %s246, %s260
      %p262 = scmp.eq.s32.totalorder %s29, 0
      %p263 = por %p261, %p262
      %s265 = sadd.s32 %s264, 1
      %p268 = scmp.eq.s32.totalorder %s23, 31
      %p269 = scmp.ne.s32.totalorder %s264, %s266
      %p270 = scmp.eq.s32.totalorder %s23, 0
      %p271 = por %p269, %p270
      %p272 = scmp.ne.s32.totalorder %s264, %s266
      %p273 = scmp.eq.s32.totalorder %s28, 31
      %p274 = por %p272, %p273
      %p275 = scmp.ne.s32.totalorder %s266, %s267
      %p276 = scmp.eq.s32.totalorder %s28, 0
      %p277 = por %p275, %p276
      %p278 = scmp.ne.s32.totalorder %s266, %s267
      %p279 = scmp.eq.s32.totalorder %s29, 31
      %p280 = por %p278, %p279
      %p282 = scmp.ne.s32.totalorder %s267, %s281
      %p283 = scmp.eq.s32.totalorder %s29, 0
      %p284 = por %p282, %p283
      %s286 = sadd.s32 %s285, 1
      %p289 = scmp.eq.s32.totalorder %s23, 31
      %p290 = scmp.ne.s32.totalorder %s285, %s287
      %p291 = scmp.eq.s32.totalorder %s23, 0
      %p292 = por %p290, %p291
      %p293 = scmp.ne.s32.totalorder %s285, %s287
      %p294 = scmp.eq.s32.totalorder %s28, 31
      %p295 = por %p293, %p294
      %p296 = scmp.ne.s32.totalorder %s287, %s288
      %p297 = scmp.eq.s32.totalorder %s28, 0
      %p298 = por %p296, %p297
      %p299 = scmp.ne.s32.totalorder %s287, %s288
      %p300 = scmp.eq.s32.totalorder %s29, 31
      %p301 = por %p299, %p300
      %p303 = scmp.ne.s32.totalorder %s288, %s302
      %p304 = scmp.eq.s32.totalorder %s29, 0
      %p305 = por %p303, %p304
      %s307 = sadd.s32 %s306, 1
      %p310 = scmp.eq.s32.totalorder %s23, 31
      %p311 = scmp.ne.s32.totalorder %s306, %s308
      %p312 = scmp.eq.s32.totalorder %s23, 0
      %p313 = por %p311, %p312
      %p314 = scmp.ne.s32.totalorder %s306, %s308
      %p315 = scmp.eq.s32.totalorder %s28, 31
      %p316 = por %p314, %p315
      %p317 = scmp.ne.s32.totalorder %s308, %s309
      %p318 = scmp.eq.s32.totalorder %s28, 0
      %p319 = por %p317, %p318
      %p320 = scmp.ne.s32.totalorder %s308, %s309
      %p321 = scmp.eq.s32.totalorder %s29, 31
      %p322 = por %p320, %p321
      %p324 = scmp.ne.s32.totalorder %s309, %s323
      %p325 = scmp.eq.s32.totalorder %s29, 0
      %p326 = por %p324, %p325
      %s328 = sadd.s32 %s327, 1
      %p331 = scmp.eq.s32.totalorder %s23, 31
      %p332 = scmp.ne.s32.totalorder %s327, %s329
      %p333 = scmp.eq.s32.totalorder %s23, 0
      %p334 = por %p332, %p333
      %p335 = scmp.ne.s32.totalorder %s327, %s329
      %p336 = scmp.eq.s32.totalorder %s28, 31
      %p337 = por %p335, %p336
      %p338 = scmp.ne.s32.totalorder %s329, %s330
      %p339 = scmp.eq.s32.totalorder %s28, 0
      %p340 = por %p338, %p339
      %p341 = scmp.ne.s32.totalorder %s329, %s330
      %p342 = scmp.eq.s32.totalorder %s29, 31
      %p343 = por %p341, %p342
      %p345 = scmp.ne.s32.totalorder %s330, %s344
      %p346 = scmp.eq.s32.totalorder %s29, 0
      %p347 = por %p345, %p346
      %s349 = sadd.s32 %s348, 1
      %p352 = scmp.eq.s32.totalorder %s23, 31
      %p353 = scmp.ne.s32.totalorder %s348, %s350
      %p354 = scmp.eq.s32.totalorder %s23, 0
      %p355 = por %p353, %p354
      %p356 = scmp.ne.s32.totalorder %s348, %s350
      %p357 = scmp.eq.s32.totalorder %s28, 31
      %p358 = por %p356, %p357
      %p359 = scmp.ne.s32.totalorder %s350, %s351
      %p360 = scmp.eq.s32.totalorder %s28, 0
      %p361 = por %p359, %p360
      %p362 = scmp.ne.s32.totalorder %s350, %s351
      %p363 = scmp.eq.s32.totalorder %s29, 31
      %p364 = por %p362, %p363
      %p366 = scmp.ne.s32.totalorder %s351, %s365
      %p367 = scmp.eq.s32.totalorder %s29, 0
      %p368 = por %p366, %p367
      %s370 = sadd.s32 %s369, 1
      %p373 = scmp.eq.s32.totalorder %s23, 31
      %p374 = scmp.ne.s32.totalorder %s369, %s371
      %p375 = scmp.eq.s32.totalorder %s23, 0
      %p376 = por %p374, %p375
      %p377 = scmp.ne.s32.totalorder %s369, %s371
      %p378 = scmp.eq.s32.totalorder %s28, 31
      %p379 = por %p377, %p378
      %p380 = scmp.ne.s32.totalorder %s371, %s372
      %p381 = scmp.eq.s32.totalorder %s28, 0
      %p382 = por %p380, %p381
      %p383 = scmp.ne.s32.totalorder %s371, %s372
      %p384 = scmp.eq.s32.totalorder %s29, 31
      %p385 = por %p383, %p384
      %p387 = scmp.ne.s32.totalorder %s372, %s386
      %p388 = scmp.eq.s32.totalorder %s29, 0
      %p389 = por %p387, %p388
      %s390 = ssub.s32 %s30, %s56
      %s391 = ssub.s32 %s31, %s52
      %s392 = sor.u32 %s390, %s391
      %p393 = scmp.eq.s32.totalorder %s392, 0
      %s395 = sadd.s32 %s394, 1
      %s396 = scalar_select %p393, %s394, %s395
      %p399 = pneg %p393
      %p400 = scmp.eq.s32.totalorder %s23, 31
      %p401 = por %p399, %p400
      %p402 = scmp.ne.s32.totalorder %s394, %s397
      %p403 = scmp.eq.s32.totalorder %s23, 0
      %p404 = por %p402, %p403
      %p405 = scmp.ne.s32.totalorder %s394, %s397
      %p406 = scmp.eq.s32.totalorder %s28, 31
      %p407 = por %p405, %p406
      %p408 = scmp.ne.s32.totalorder %s397, %s398
      %p409 = scmp.eq.s32.totalorder %s28, 0
      %p410 = por %p408, %p409
      %p411 = scmp.ne.s32.totalorder %s397, %s398
      %p412 = scmp.eq.s32.totalorder %s29, 31
      %p413 = por %p411, %p412
      %p415 = scmp.ne.s32.totalorder %s398, %s414
      %p416 = scmp.eq.s32.totalorder %s29, 0
      %p417 = por %p415, %p416
      %p418 = scmp.le.s32.totalorder 1, %s23
      %p419 = scmp.lt.s32.totalorder %s23, 33
      %p420 = pnand %p418, %p419
      %p421 = pneg %p420
      // Predicated region
      $region9: #{decoder_block.3} parent=5 // pred_check
        _
      $region10: #{decoder_block.3} parent=5 // pred_check_branch
        %423 = sbr.rel (%p420) target = $region12
      $region11: #{decoder_block.3} parent=5 // pred_region
        %s424 = ssub.s32 %s23, 1
        // Predicated region
        $region13: #{decoder_block.3} parent=11 // pred_check
          %p425 = pneg %p214
        $region14: #{decoder_block.3} parent=11 // pred_check_branch
          %427 = sbr.rel (%p425) target = $region16
        $region15: #{decoder_block.3} parent=11 // pred_region
          _
        $region16: #{decoder_block.3} parent=11 // pred_fallthru
          _
        // Predicated region
        $region17: #{decoder_block.3} parent=11 // pred_check
          %p428 = pneg %p235
        $region18: #{decoder_block.3} parent=11 // pred_check_branch
          %430 = sbr.rel (%p428) target = $region20
        $region19: #{decoder_block.3} parent=11 // pred_region
          _
        $region20: #{decoder_block.3} parent=11 // pred_fallthru
          _
        // Predicated region
        $region21: #{decoder_block.3} parent=11 // pred_check
          %p431 = pneg %p256
        $region22: #{decoder_block.3} parent=11 // pred_check_branch
          %433 = sbr.rel (%p431) target = $region24
        $region23: #{decoder_block.3} parent=11 // pred_region
          _
        $region24: #{decoder_block.3} parent=11 // pred_fallthru
          _
        // Predicated region
        $region25: #{decoder_block.3} parent=11 // pred_check
          %p434 = pneg %p277
        $region26: #{decoder_block.3} parent=11 // pred_check_branch
          %436 = sbr.rel (%p434) target = $region28
        $region27: #{decoder_block.3} parent=11 // pred_region
          _
        $region28: #{decoder_block.3} parent=11 // pred_fallthru
          _
        // Predicated region
        $region29: #{decoder_block.3} parent=11 // pred_check
          %p437 = pneg %p298
        $region30: #{decoder_block.3} parent=11 // pred_check_branch
          %439 = sbr.rel (%p437) target = $region32
        $region31: #{decoder_block.3} parent=11 // pred_region
          _
        $region32: #{decoder_block.3} parent=11 // pred_fallthru
          _
        // Predicated region
        $region33: #{decoder_block.3} parent=11 // pred_check
          %p440 = pneg %p319
        $region34: #{decoder_block.3} parent=11 // pred_check_branch
          %442 = sbr.rel (%p440) target = $region36
        $region35: #{decoder_block.3} parent=11 // pred_region
          _
        $region36: #{decoder_block.3} parent=11 // pred_fallthru
          _
        // Predicated region
        $region37: #{decoder_block.3} parent=11 // pred_check
          %p443 = pneg %p340
        $region38: #{decoder_block.3} parent=11 // pred_check_branch
          %445 = sbr.rel (%p443) target = $region40
        $region39: #{decoder_block.3} parent=11 // pred_region
          _
        $region40: #{decoder_block.3} parent=11 // pred_fallthru
          _
        // Predicated region
        $region41: #{decoder_block.3} parent=11 // pred_check
          %p446 = pneg %p361
        $region42: #{decoder_block.3} parent=11 // pred_check_branch
          %448 = sbr.rel (%p446) target = $region44
        $region43: #{decoder_block.3} parent=11 // pred_region
          _
        $region44: #{decoder_block.3} parent=11 // pred_fallthru
          _
        // Predicated region
        $region45: #{decoder_block.3} parent=11 // pred_check
          %p449 = pneg %p382
        $region46: #{decoder_block.3} parent=11 // pred_check_branch
          %451 = sbr.rel (%p449) target = $region48
        $region47: #{decoder_block.3} parent=11 // pred_region
          _
        $region48: #{decoder_block.3} parent=11 // pred_fallthru
          _
      $region12: #{decoder_block.3} parent=5 // pred_fallthru
        _
      %p452 = scmp.lt.s32.totalorder %s23, 32
      // Predicated region
      $region49: #{decoder_block.3} parent=5 // pred_check
        %p453 = pneg %p452
      $region50: #{decoder_block.3} parent=5 // pred_check_branch
        %455 = sbr.rel (%p453) target = $region52
      $region51: #{decoder_block.3} parent=5 // pred_region
        // Predicated region
        $region53: #{decoder_block.3} parent=51 // pred_check
          %p456 = pneg %p73
        $region54: #{decoder_block.3} parent=51 // pred_check_branch
          %458 = sbr.rel (%p456) target = $region56
        $region55: #{decoder_block.3} parent=51 // pred_region
          %s459 = smul.u32 16, %s31
          %p460 = scmp.lt.s32.totalorder %s30, 1
          %s461 = scalar_select %p460, %s30, 1
          %p462 = scmp.lt.s32.totalorder %s32, 3
          %s463 = scalar_select %p462, %s32, 3
          %p464 = scmp.lt.s32.totalorder %s459, 31
          %s465 = scalar_select %p464, %s459, 31
          %s466 = smul.addr %s463, 32
          %s467 = sadd.s32 %s465, %s466
          %s468 = smul.addr %s461, 128
          %s469 = sadd.s32 %s467, %s468
          %s470 = smul.addr %s469, 4
          %s471 = scalar_lea.vmem %s0, %s470
          %s472 = smul.u32 16, %s31
        $region56: #{decoder_block.3} parent=51 // pred_fallthru
          _
        // Predicated region
        $region57: #{decoder_block.3} parent=51 // pred_check
          %p473 = pneg %p103
        $region58: #{decoder_block.3} parent=51 // pred_check_branch
          %475 = sbr.rel (%p473) target = $region60
        $region59: #{decoder_block.3} parent=51 // pred_region
          %s476 = smul.u32 16, %s33
          %p477 = scmp.lt.s32.totalorder %s30, 1
          %s478 = scalar_select %p477, %s30, 1
          %p479 = scmp.lt.s32.totalorder %s32, 3
          %s480 = scalar_select %p479, %s32, 3
          %p481 = scmp.lt.s32.totalorder %s476, 31
          %s482 = scalar_select %p481, %s476, 31
          %s483 = smul.addr %s480, 32
          %s484 = sadd.s32 %s482, %s483
          %s485 = smul.addr %s478, 128
          %s486 = sadd.s32 %s484, %s485
          %s487 = smul.addr %s486, 4
          %s488 = scalar_lea.vmem %s1, %s487
          %s489 = smul.u32 16, %s33
        $region60: #{decoder_block.3} parent=51 // pred_fallthru
          _
        // Predicated region
        $region61: #{decoder_block.3} parent=51 // pred_check
          %p490 = pneg %p133
        $region62: #{decoder_block.3} parent=51 // pred_check_branch
          %492 = sbr.rel (%p490) target = $region64
        $region63: #{decoder_block.3} parent=51 // pred_region
          %s493 = smul.u32 16, %s33
          %p494 = scmp.lt.s32.totalorder %s30, 1
          %s495 = scalar_select %p494, %s30, 1
          %p496 = scmp.lt.s32.totalorder %s32, 3
          %s497 = scalar_select %p496, %s32, 3
          %p498 = scmp.lt.s32.totalorder %s493, 31
          %s499 = scalar_select %p498, %s493, 31
          %s500 = smul.addr %s497, 32
          %s501 = sadd.s32 %s499, %s500
          %s502 = smul.addr %s495, 128
          %s503 = sadd.s32 %s501, %s502
          %s504 = smul.addr %s503, 4
          %s505 = scalar_lea.vmem %s2, %s504
          %s506 = smul.u32 16, %s33
        $region64: #{decoder_block.3} parent=51 // pred_fallthru
          _
        // Predicated region
        $region65: #{decoder_block.3} parent=51 // pred_check
          %p507 = pneg %p161
        $region66: #{decoder_block.3} parent=51 // pred_check_branch
          %509 = sbr.rel (%p507) target = $region68
        $region67: #{decoder_block.3} parent=51 // pred_region
          %s510 = smul.u32 16, %s31
          %p511 = scmp.lt.s32.totalorder %s30, 1
          %s512 = scalar_select %p511, %s30, 1
          %p513 = scmp.lt.s32.totalorder %s510, 31
          %s514 = scalar_select %p513, %s510, 31
          %s515 = smul.addr %s512, 32
          %s516 = sadd.s32 %s514, %s515
          %s517 = smul.addr %s516, 8
          %s518 = scalar_lea.vmem %s3, %s517
          %s519 = smul.u32 16, %s31
        $region68: #{decoder_block.3} parent=51 // pred_fallthru
          _
        // Predicated region
        $region69: #{decoder_block.3} parent=51 // pred_check
          %p520 = pneg %p187
        $region70: #{decoder_block.3} parent=51 // pred_check_branch
          %522 = sbr.rel (%p520) target = $region72
        $region71: #{decoder_block.3} parent=51 // pred_region
          %p523 = scmp.lt.s32.totalorder %s32, 3
          %s524 = scalar_select %p523, %s32, 3
          %s525 = smul.addr %s524, 4
          %s526 = smul.addr %s525, 4
          %s527 = scalar_lea.vmem %s4, %s526
        $region72: #{decoder_block.3} parent=51 // pred_fallthru
          _
      $region52: #{decoder_block.3} parent=5 // pred_fallthru
        _
      %p528 = scmp.le.s32.totalorder 1, %s23
      %p529 = scmp.lt.s32.totalorder %s23, 33
      %p530 = pnand %p528, %p529
      %p531 = pneg %p530
      // Predicated region
      $region73: #{decoder_block.3} parent=5 // pred_check
        _
      $region74: #{decoder_block.3} parent=5 // pred_check_branch
        %533 = sbr.rel (%p530) target = $region76
      $region75: #{decoder_block.3} parent=5 // pred_region
        %s534 = ssub.s32 %s23, 1
        %s535 = smul.u32 16, %s35
        %p536 = scmp.lt.s32.totalorder %s34, 1
        %s537 = scalar_select %p536, %s34, 1
        %p538 = scmp.lt.s32.totalorder %s36, 3
        %s539 = scalar_select %p538, %s36, 3
        %p540 = scmp.lt.s32.totalorder %s535, 31
        %s541 = scalar_select %p540, %s535, 31
        %s542 = smul.addr %s539, 32
        %s543 = sadd.s32 %s541, %s542
        %s544 = smul.addr %s537, 128
        %s545 = sadd.s32 %s543, %s544
        %s546 = smul.addr %s545, 4
        %s547 = scalar_lea.vmem %s0, %s546
        %p548 = pneg %p79
        %p549 = pneg %p76
        %s550 = smul.u32 16, %s37
        %p551 = scmp.lt.s32.totalorder %s34, 1
        %s552 = scalar_select %p551, %s34, 1
        %p553 = scmp.lt.s32.totalorder %s36, 3
        %s554 = scalar_select %p553, %s36, 3
        %p555 = scmp.lt.s32.totalorder %s550, 31
        %s556 = scalar_select %p555, %s550, 31
        %s557 = smul.addr %s554, 32
        %s558 = sadd.s32 %s556, %s557
        %s559 = smul.addr %s552, 128
        %s560 = sadd.s32 %s558, %s559
        %s561 = smul.addr %s560, 4
        %s562 = scalar_lea.vmem %s1, %s561
        %p563 = pneg %p109
        %p564 = pneg %p106
        %s565 = smul.u32 16, %s37
        %p566 = scmp.lt.s32.totalorder %s34, 1
        %s567 = scalar_select %p566, %s34, 1
        %p568 = scmp.lt.s32.totalorder %s36, 3
        %s569 = scalar_select %p568, %s36, 3
        %p570 = scmp.lt.s32.totalorder %s565, 31
        %s571 = scalar_select %p570, %s565, 31
        %s572 = smul.addr %s569, 32
        %s573 = sadd.s32 %s571, %s572
        %s574 = smul.addr %s567, 128
        %s575 = sadd.s32 %s573, %s574
        %s576 = smul.addr %s575, 4
        %s577 = scalar_lea.vmem %s2, %s576
        %p578 = pneg %p139
        %p579 = pneg %p136
        %s580 = smul.u32 16, %s35
        %p581 = scmp.lt.s32.totalorder %s34, 1
        %s582 = scalar_select %p581, %s34, 1
        %p583 = scmp.lt.s32.totalorder %s580, 31
        %s584 = scalar_select %p583, %s580, 31
        %s585 = smul.addr %s582, 32
        %s586 = sadd.s32 %s584, %s585
        %s587 = smul.addr %s586, 8
        %s588 = scalar_lea.vmem %s3, %s587
        %p589 = pneg %p167
        %p590 = pneg %p164
        %p591 = scmp.lt.s32.totalorder %s36, 3
        %s592 = scalar_select %p591, %s36, 3
        %s593 = smul.addr %s592, 4
        %s594 = smul.addr %s593, 4
        %s595 = scalar_lea.vmem %s4, %s594
        %p596 = pneg %p193
        %p597 = pneg %p190
        %p598 = pneg %p214
        %p599 = pneg %p211
        %p600 = pneg %p235
        %p601 = pneg %p232
        %p602 = pneg %p256
        %p603 = pneg %p253
        %p604 = pneg %p277
        %p605 = pneg %p274
        %p606 = pneg %p298
        %p607 = pneg %p295
        %p608 = pneg %p319
        %p609 = pneg %p316
        %p610 = pneg %p340
        %p611 = pneg %p337
        %p612 = pneg %p361
        %p613 = pneg %p358
        %p614 = pneg %p382
        %p615 = pneg %p379
        %p616 = pneg %p410
        %p617 = pneg %p407
        %s618 = sand.u32 %s397, 1
        %s619 = scalar_lea.sflag [#allocation7], %s618
        %s620 = sand.u32 %s397, 1
        %s621 = smul.addr %s620, 128
        %s622 = scalar_lea.vmem [#allocation6], %s621
        %s623 = smul.u32 16, %s35
        %p624 = scmp.lt.s32.totalorder %s34, 1
        %s625 = scalar_select %p624, %s34, 1
        %p626 = scmp.lt.s32.totalorder %s36, 3
        %s627 = scalar_select %p626, %s36, 3
        %p628 = scmp.lt.s32.totalorder %s623, 31
        %s629 = scalar_select %p628, %s623, 31
        %s630 = smul.addr %s627, 32
        %s631 = sadd.s32 %s629, %s630
        %s632 = smul.addr %s625, 128
        %s633 = sadd.s32 %s631, %s632
        %s634 = smul.addr %s633, 4
        %s635 = scalar_lea.vmem %s0, %s634
        %s636 = smul.u32 16, %s35
        %s637 = smul.u32 16, %s37
        %p638 = scmp.lt.s32.totalorder %s34, 1
        %s639 = scalar_select %p638, %s34, 1
        %p640 = scmp.lt.s32.totalorder %s36, 3
        %s641 = scalar_select %p640, %s36, 3
        %p642 = scmp.lt.s32.totalorder %s637, 31
        %s643 = scalar_select %p642, %s637, 31
        %s644 = smul.addr %s641, 32
        %s645 = sadd.s32 %s643, %s644
        %s646 = smul.addr %s639, 128
        %s647 = sadd.s32 %s645, %s646
        %s648 = smul.addr %s647, 4
        %s649 = scalar_lea.vmem %s1, %s648
        %s650 = smul.u32 16, %s37
        %s651 = smul.u32 16, %s37
        %p652 = scmp.lt.s32.totalorder %s34, 1
        %s653 = scalar_select %p652, %s34, 1
        %p654 = scmp.lt.s32.totalorder %s36, 3
        %s655 = scalar_select %p654, %s36, 3
        %p656 = scmp.lt.s32.totalorder %s651, 31
        %s657 = scalar_select %p656, %s651, 31
        %s658 = smul.addr %s655, 32
        %s659 = sadd.s32 %s657, %s658
        %s660 = smul.addr %s653, 128
        %s661 = sadd.s32 %s659, %s660
        %s662 = smul.addr %s661, 4
        %s663 = scalar_lea.vmem %s2, %s662
        %s664 = smul.u32 16, %s37
        %s665 = smul.u32 16, %s35
        %p666 = scmp.lt.s32.totalorder %s34, 1
        %s667 = scalar_select %p666, %s34, 1
        %p668 = scmp.lt.s32.totalorder %s665, 31
        %s669 = scalar_select %p668, %s665, 31
        %s670 = smul.addr %s667, 32
        %s671 = sadd.s32 %s669, %s670
        %s672 = smul.addr %s671, 8
        %s673 = scalar_lea.vmem %s3, %s672
        %s674 = smul.u32 16, %s35
        %p675 = scmp.lt.s32.totalorder %s36, 3
        %s676 = scalar_select %p675, %s36, 3
        %s677 = smul.addr %s676, 4
        %s678 = smul.addr %s677, 4
        %s679 = scalar_lea.vmem %s4, %s678
        %s680 = smul.u32 16, %s35
        %p682 = scmp.eq.s32.totalorder %s36, 0
        %p683 = scmp.eq.s32.totalorder %s37, 0
        %p684 = pnand %p682, %p683
        %p685 = pneg %p684
        // Predicated region
        $region77: #{decoder_block.3} parent=75 // pred_check
          _
        $region78: #{decoder_block.3} parent=75 // pred_check_branch
          %687 = sbr.rel (%p684) target = $region80
        $region79: #{decoder_block.3} parent=75 // pred_region
          %688 = vst [vmem:[#allocation5] sm:$0xff] 0.0
          %689 = vst [vmem:[#allocation5 + $0x8] sm:$0xff] 0.0
          %690 = vst [vmem:[#allocation5 + $0x10] sm:$0xff] 0.0
          %691 = vst [vmem:[#allocation5 + $0x18] sm:$0xff] 0.0
          %692 = vst [vmem:[#allocation5 + $0x20] sm:$0xff] 0.0
          %693 = vst [vmem:[#allocation5 + $0x28] sm:$0xff] 0.0
          %694 = vst [vmem:[#allocation5 + $0x30] sm:$0xff] 0.0
          %695 = vst [vmem:[#allocation5 + $0x38] sm:$0xff] 0.0
          %696 = vst [vmem:[#allocation5 + $0x40] sm:$0xff] 0.0
          %697 = vst [vmem:[#allocation5 + $0x48] sm:$0xff] 0.0
          %698 = vst [vmem:[#allocation5 + $0x50] sm:$0xff] 0.0
          %699 = vst [vmem:[#allocation5 + $0x58] sm:$0xff] 0.0
          %700 = vst [vmem:[#allocation5 + $0x60] sm:$0xff] 0.0
          %701 = vst [vmem:[#allocation5 + $0x68] sm:$0xff] 0.0
          %702 = vst [vmem:[#allocation5 + $0x70] sm:$0xff] 0.0
          %703 = vst [vmem:[#allocation5 + $0x78] sm:$0xff] 0.0
        $region80: #{decoder_block.3} parent=75 // pred_fallthru
          _
        // Predicated region
        $region81: #{decoder_block.3} parent=75 // pred_check
          %p704 = pneg %p683
        $region82: #{decoder_block.3} parent=75 // pred_check_branch
          %706 = sbr.rel (%p704) target = $region84
        $region83: #{decoder_block.3} parent=75 // pred_region
          %vm707 = vcmask 7168
          %708 = vst.msk [vmem:[#allocation2] sm:$0xff] %vm707, -inf
          %709 = vst.msk [vmem:[#allocation2 + $0x8] sm:$0xff] %vm707, -inf
          %710 = vst.msk [vmem:[#allocation2 + $0x10] sm:$0xff] %vm707, -inf
          %711 = vst.msk [vmem:[#allocation2 + $0x18] sm:$0xff] %vm707, -inf
          %712 = vst.msk [vmem:[#allocation2 + $0x20] sm:$0xff] %vm707, -inf
          %713 = vst.msk [vmem:[#allocation2 + $0x28] sm:$0xff] %vm707, -inf
          %714 = vst.msk [vmem:[#allocation2 + $0x30] sm:$0xff] %vm707, -inf
          %715 = vst.msk [vmem:[#allocation2 + $0x38] sm:$0xff] %vm707, -inf
          %716 = vst.msk [vmem:[#allocation2 + $0x40] sm:$0xff] %vm707, -inf
          %717 = vst.msk [vmem:[#allocation2 + $0x48] sm:$0xff] %vm707, -inf
          %718 = vst.msk [vmem:[#allocation2 + $0x50] sm:$0xff] %vm707, -inf
          %719 = vst.msk [vmem:[#allocation2 + $0x58] sm:$0xff] %vm707, -inf
          %720 = vst.msk [vmem:[#allocation2 + $0x60] sm:$0xff] %vm707, -inf
          %721 = vst.msk [vmem:[#allocation2 + $0x68] sm:$0xff] %vm707, -inf
          %722 = vst.msk [vmem:[#allocation2 + $0x70] sm:$0xff] %vm707, -inf
          %723 = vst.msk [vmem:[#allocation2 + $0x78] sm:$0xff] %vm707, -inf
          %724 = vst.msk [vmem:[#allocation3] sm:$0xff] %vm707, 0.0
          %725 = vst.msk [vmem:[#allocation3 + $0x8] sm:$0xff] %vm707, 0.0
          %726 = vst.msk [vmem:[#allocation3 + $0x10] sm:$0xff] %vm707, 0.0
          %727 = vst.msk [vmem:[#allocation3 + $0x18] sm:$0xff] %vm707, 0.0
          %728 = vst.msk [vmem:[#allocation3 + $0x20] sm:$0xff] %vm707, 0.0
          %729 = vst.msk [vmem:[#allocation3 + $0x28] sm:$0xff] %vm707, 0.0
          %730 = vst.msk [vmem:[#allocation3 + $0x30] sm:$0xff] %vm707, 0.0
          %731 = vst.msk [vmem:[#allocation3 + $0x38] sm:$0xff] %vm707, 0.0
          %732 = vst.msk [vmem:[#allocation3 + $0x40] sm:$0xff] %vm707, 0.0
          %733 = vst.msk [vmem:[#allocation3 + $0x48] sm:$0xff] %vm707, 0.0
          %734 = vst.msk [vmem:[#allocation3 + $0x50] sm:$0xff] %vm707, 0.0
          %735 = vst.msk [vmem:[#allocation3 + $0x58] sm:$0xff] %vm707, 0.0
          %736 = vst.msk [vmem:[#allocation3 + $0x60] sm:$0xff] %vm707, 0.0
          %737 = vst.msk [vmem:[#allocation3 + $0x68] sm:$0xff] %vm707, 0.0
          %738 = vst.msk [vmem:[#allocation3 + $0x70] sm:$0xff] %vm707, 0.0
          %739 = vst.msk [vmem:[#allocation3 + $0x78] sm:$0xff] %vm707, 0.0
          %vm740 = vcmask 261120
          %741 = vst.msk [vmem:[#allocation4] sm:$0xff] %vm740, 0.0
          %742 = vst.msk [vmem:[#allocation4 + $0x8] sm:$0xff] %vm740, 0.0
          %743 = vst.msk [vmem:[#allocation4 + $0x10] sm:$0xff] %vm740, 0.0
          %744 = vst.msk [vmem:[#allocation4 + $0x18] sm:$0xff] %vm740, 0.0
          %745 = vst.msk [vmem:[#allocation4 + $0x20] sm:$0xff] %vm740, 0.0
          %746 = vst.msk [vmem:[#allocation4 + $0x28] sm:$0xff] %vm740, 0.0
          %747 = vst.msk [vmem:[#allocation4 + $0x30] sm:$0xff] %vm740, 0.0
          %748 = vst.msk [vmem:[#allocation4 + $0x38] sm:$0xff] %vm740, 0.0
          %749 = vst.msk [vmem:[#allocation4 + $0x40] sm:$0xff] %vm740, 0.0
          %750 = vst.msk [vmem:[#allocation4 + $0x48] sm:$0xff] %vm740, 0.0
          %751 = vst.msk [vmem:[#allocation4 + $0x50] sm:$0xff] %vm740, 0.0
          %752 = vst.msk [vmem:[#allocation4 + $0x58] sm:$0xff] %vm740, 0.0
          %753 = vst.msk [vmem:[#allocation4 + $0x60] sm:$0xff] %vm740, 0.0
          %754 = vst.msk [vmem:[#allocation4 + $0x68] sm:$0xff] %vm740, 0.0
          %755 = vst.msk [vmem:[#allocation4 + $0x70] sm:$0xff] %vm740, 0.0
          %756 = vst.msk [vmem:[#allocation4 + $0x78] sm:$0xff] %vm740, 0.0
        $region84: #{decoder_block.3} parent=75 // pred_fallthru
          _
        %v757 = vld [vmem:[%s635] sm:$0xf]
        %v758 = vld [vmem:[%s635 + $0x4] sm:$0xf]
        %v759 = vld [vmem:[%s635 + $0x8] sm:$0xf]
        %v760 = vld [vmem:[%s635 + $0xc] sm:$0xf]
        %v761 = vld [vmem:[%s635 + $0x10] sm:$0xf]
        %v762 = vld [vmem:[%s635 + $0x14] sm:$0xf]
        %v763 = vld [vmem:[%s635 + $0x18] sm:$0xf]
        %v764 = vld [vmem:[%s635 + $0x1c] sm:$0xf]
        %v765 = vld [vmem:[%s635 + $0x20] sm:$0xf]
        %v766 = vld [vmem:[%s635 + $0x24] sm:$0xf]
        %v767 = vld [vmem:[%s635 + $0x28] sm:$0xf]
        %v768 = vld [vmem:[%s635 + $0x2c] sm:$0xf]
        %v769 = vld [vmem:[%s635 + $0x30] sm:$0xf]
        %v770 = vld [vmem:[%s635 + $0x34] sm:$0xf]
        %v771 = vld [vmem:[%s635 + $0x38] sm:$0xf]
        %v772 = vld [vmem:[%s635 + $0x3c] sm:$0xf]
        %v773 = vld [vmem:[%s649] sm:$0xf]
        %v774 = vld [vmem:[%s649 + $0x4] sm:$0xf]
        %v775 = vld [vmem:[%s649 + $0x8] sm:$0xf]
        %v776 = vld [vmem:[%s649 + $0xc] sm:$0xf]
        %v777 = vld [vmem:[%s649 + $0x10] sm:$0xf]
        %v778 = vld [vmem:[%s649 + $0x14] sm:$0xf]
        %v779 = vld [vmem:[%s649 + $0x18] sm:$0xf]
        %v780 = vld [vmem:[%s649 + $0x1c] sm:$0xf]
        %v781 = vld [vmem:[%s649 + $0x20] sm:$0xf]
        %v782 = vld [vmem:[%s649 + $0x24] sm:$0xf]
        %v783 = vld [vmem:[%s649 + $0x28] sm:$0xf]
        %v784 = vld [vmem:[%s649 + $0x2c] sm:$0xf]
        %v785 = vld [vmem:[%s649 + $0x30] sm:$0xf]
        %v786 = vld [vmem:[%s649 + $0x34] sm:$0xf]
        %v787 = vld [vmem:[%s649 + $0x38] sm:$0xf]
        %v788 = vld [vmem:[%s649 + $0x3c] sm:$0xf]
        %v789 = vld [vmem:[%s663] sm:$0xf]
        %v790 = vld [vmem:[%s663 + $0x4] sm:$0xf]
        %v791 = vld [vmem:[%s663 + $0x8] sm:$0xf]
        %v792 = vld [vmem:[%s663 + $0xc] sm:$0xf]
        %v793 = vld [vmem:[%s663 + $0x10] sm:$0xf]
        %v794 = vld [vmem:[%s663 + $0x14] sm:$0xf]
        %v795 = vld [vmem:[%s663 + $0x18] sm:$0xf]
        %v796 = vld [vmem:[%s663 + $0x1c] sm:$0xf]
        %v797 = vld [vmem:[%s663 + $0x20] sm:$0xf]
        %v798 = vld [vmem:[%s663 + $0x24] sm:$0xf]
        %v799 = vld [vmem:[%s663 + $0x28] sm:$0xf]
        %v800 = vld [vmem:[%s663 + $0x2c] sm:$0xf]
        %v801 = vld [vmem:[%s663 + $0x30] sm:$0xf]
        %v802 = vld [vmem:[%s663 + $0x34] sm:$0xf]
        %v803 = vld [vmem:[%s663 + $0x38] sm:$0xf]
        %v804 = vld [vmem:[%s663 + $0x3c] sm:$0xf]
        %v821 = vunpack.c.l.b16 %v757
        %v822 = vunpack.c.l.b16 %v758
        %v823 = vunpack.c.l.b16 %v759
        %v824 = vunpack.c.l.b16 %v760
        %v825 = vunpack.c.l.b16 %v761
        %v826 = vunpack.c.l.b16 %v762
        %v827 = vunpack.c.l.b16 %v763
        %v828 = vunpack.c.l.b16 %v764
        %v829 = vunpack.c.l.b16 %v765
        %v830 = vunpack.c.l.b16 %v766
        %v831 = vunpack.c.l.b16 %v767
        %v832 = vunpack.c.l.b16 %v768
        %v833 = vunpack.c.l.b16 %v769
        %v834 = vunpack.c.l.b16 %v770
        %v835 = vunpack.c.l.b16 %v771
        %v836 = vunpack.c.l.b16 %v772
        %v837 = vpack.c.b16 %v822, %v821
        %v838 = vpack.c.b16 %v824, %v823
        %v839 = vpack.c.b16 %v826, %v825
        %v840 = vpack.c.b16 %v828, %v827
        %v841 = vpack.c.b16 %v830, %v829
        %v842 = vpack.c.b16 %v832, %v831
        %v843 = vpack.c.b16 %v834, %v833
        %v844 = vpack.c.b16 %v836, %v835
        %v861 = vunpack.c.l.b16 %v773
        %v862 = vunpack.c.l.b16 %v774
        %v863 = vunpack.c.l.b16 %v775
        %v864 = vunpack.c.l.b16 %v776
        %v865 = vunpack.c.l.b16 %v777
        %v866 = vunpack.c.l.b16 %v778
        %v867 = vunpack.c.l.b16 %v779
        %v868 = vunpack.c.l.b16 %v780
        %v869 = vunpack.c.l.b16 %v781
        %v870 = vunpack.c.l.b16 %v782
        %v871 = vunpack.c.l.b16 %v783
        %v872 = vunpack.c.l.b16 %v784
        %v873 = vunpack.c.l.b16 %v785
        %v874 = vunpack.c.l.b16 %v786
        %v875 = vunpack.c.l.b16 %v787
        %v876 = vunpack.c.l.b16 %v788
        %v877 = vpack.c.b16 %v862, %v861
        %v878 = vpack.c.b16 %v864, %v863
        %v879 = vpack.c.b16 %v866, %v865
        %v880 = vpack.c.b16 %v868, %v867
        %v881 = vpack.c.b16 %v870, %v869
        %v882 = vpack.c.b16 %v872, %v871
        %v883 = vpack.c.b16 %v874, %v873
        %v884 = vpack.c.b16 %v876, %v875
        %vm885 = vcmask 261120
        %v887 = vsel %vm885, %v837, 0
        %v890 = vsel %vm885, %v838, 0
        %v893 = vsel %vm885, %v839, 0
        %v896 = vsel %vm885, %v840, 0
        %v899 = vsel %vm885, %v841, 0
        %v902 = vsel %vm885, %v842, 0
        %v905 = vsel %vm885, %v843, 0
        %v908 = vsel %vm885, %v844, 0
        %v911 = vsel %vm885, %v877, 0
        %v914 = vsel %vm885, %v878, 0
        %v917 = vsel %vm885, %v879, 0
        %v920 = vsel %vm885, %v880, 0
        %v923 = vsel %vm885, %v881, 0
        %v926 = vsel %vm885, %v882, 0
        %v929 = vsel %vm885, %v883, 0
        %v932 = vsel %vm885, %v884, 0
        %934 = vmatprep.subr.bf16.mxu0 0
        %935 = vmatpush1.bf16.xpose.msra.mxu0 %v911
        %936 = vmatprep.subr.bf16.mxu0 0
        %937 = vmatpush1.bf16.xpose.msra.mxu0 %v914
        %938 = vmatprep.subr.bf16.mxu0 0
        %939 = vmatpush1.bf16.xpose.msra.mxu0 %v917
        %940 = vmatprep.subr.bf16.mxu0 0
        %941 = vmatpush1.bf16.xpose.msra.mxu0 %v920
        %942 = vmatprep.subr.bf16.mxu0 0
        %943 = vmatpush1.bf16.xpose.msra.mxu0 %v923
        %944 = vmatprep.subr.bf16.mxu0 0
        %945 = vmatpush1.bf16.xpose.msra.mxu0 %v926
        %946 = vmatprep.subr.bf16.mxu0 0
        %947 = vmatpush1.bf16.xpose.msra.mxu0 %v929
        %948 = vmatprep.subr.bf16.mxu0 0
        %949 = vmatpush1.bf16.xpose.msra.mxu0 %v932
        %950 = vmatprep.subr.bf16.mxu0 0
        %951 = vmatpush1.bf16.xpose.msra.mxu0 0
        %952 = vmatprep.subr.bf16.mxu0 0
        %953 = vmatpush1.bf16.xpose.msra.mxu0 0
        %954 = vmatprep.subr.bf16.mxu0 0
        %955 = vmatpush1.bf16.xpose.msra.mxu0 0
        %956 = vmatprep.subr.bf16.mxu0 0
        %957 = vmatpush1.bf16.xpose.msra.mxu0 0
        %958 = vmatprep.subr.bf16.mxu0 0
        %959 = vmatpush1.bf16.xpose.msra.mxu0 0
        %960 = vmatprep.subr.bf16.mxu0 0
        %961 = vmatpush1.bf16.xpose.msra.mxu0 0
        %962 = vmatprep.subr.bf16.mxu0 0
        %963 = vmatpush1.bf16.xpose.msra.mxu0 0
        %964 = vmatprep.subr.bf16.mxu0 0
        %965 = vmatpush1.bf16.xpose.msra.mxu0 0
        %966 = vmatprep.mubr.bf16.mxu0 0
        %967 = vmatmul.mubr.bf16.gmra.mrb[0].mxu0 %v887
        %v968 = vpop.f32.mrb[0].mxu0
        %v969 = vadd.f32 0.0, %v968
        %v970 = vpop.f32.mrb[0].mxu0
        %v971 = vpop.f32.mrb[0].mxu0
        %v972 = vadd.f32 0.0, %v971
        %v973 = vpop.f32.mrb[0].mxu0
        %974 = vmatprep.mubr.bf16.mxu0 0
        %975 = vmatmul.mubr.bf16.gmra.mrb[0].mxu0 %v890
        %v976 = vpop.f32.mrb[0].mxu0
        %v977 = vadd.f32 0.0, %v976
        %v978 = vpop.f32.mrb[0].mxu0
        %v979 = vpop.f32.mrb[0].mxu0
        %v980 = vadd.f32 0.0, %v979
        %v981 = vpop.f32.mrb[0].mxu0
        %982 = vmatprep.mubr.bf16.mxu0 0
        %983 = vmatmul.mubr.bf16.gmra.mrb[0].mxu0 %v893
        %v984 = vpop.f32.mrb[0].mxu0
        %v985 = vadd.f32 0.0, %v984
        %v986 = vpop.f32.mrb[0].mxu0
        %v987 = vpop.f32.mrb[0].mxu0
        %v988 = vadd.f32 0.0, %v987
        %v989 = vpop.f32.mrb[0].mxu0
        %990 = vmatprep.mubr.bf16.mxu0 0
        %991 = vmatmul.mubr.bf16.gmra.mrb[0].mxu0 %v896
        %v992 = vpop.f32.mrb[0].mxu0
        %v993 = vadd.f32 0.0, %v992
        %v994 = vpop.f32.mrb[0].mxu0
        %v995 = vpop.f32.mrb[0].mxu0
        %v996 = vadd.f32 0.0, %v995
        %v997 = vpop.f32.mrb[0].mxu0
        %998 = vmatprep.mubr.bf16.mxu0 0
        %999 = vmatmul.mubr.bf16.gmra.mrb[0].mxu0 %v899
        %v1000 = vpop.f32.mrb[0].mxu0
        %v1001 = vadd.f32 0.0, %v1000
        %v1002 = vpop.f32.mrb[0].mxu0
        %v1003 = vpop.f32.mrb[0].mxu0
        %v1004 = vadd.f32 0.0, %v1003
        %v1005 = vpop.f32.mrb[0].mxu0
        %1006 = vmatprep.mubr.bf16.mxu0 0
        %1007 = vmatmul.mubr.bf16.gmra.mrb[0].mxu0 %v902
        %v1008 = vpop.f32.mrb[0].mxu0
        %v1009 = vadd.f32 0.0, %v1008
        %v1010 = vpop.f32.mrb[0].mxu0
        %v1011 = vpop.f32.mrb[0].mxu0
        %v1012 = vadd.f32 0.0, %v1011
        %v1013 = vpop.f32.mrb[0].mxu0
        %1014 = vmatprep.mubr.bf16.mxu0 0
        %1015 = vmatmul.mubr.bf16.gmra.mrb[0].mxu0 %v905
        %v1016 = vpop.f32.mrb[0].mxu0
        %v1017 = vadd.f32 0.0, %v1016
        %v1018 = vpop.f32.mrb[0].mxu0
        %v1019 = vpop.f32.mrb[0].mxu0
        %v1020 = vadd.f32 0.0, %v1019
        %v1021 = vpop.f32.mrb[0].mxu0
        %1022 = vmatprep.mubr.bf16.mxu0 0
        %1023 = vmatmul.mubr.bf16.gmra.mrb[0].mxu0 %v908
        %v1024 = vpop.f32.mrb[0].mxu0
        %v1025 = vadd.f32 0.0, %v1024
        %v1026 = vpop.f32.mrb[0].mxu0
        %v1027 = vpop.f32.mrb[0].mxu0
        %v1028 = vadd.f32 0.0, %v1027
        %v1029 = vpop.f32.mrb[0].mxu0
        %1030 = vdwg.mxu0
        %v1031 = vmul.f32 %v969, 0.17677669
        %v1032 = vmul.f32 %v972, 0.17677669
        %v1033 = vmul.f32 %v977, 0.17677669
        %v1034 = vmul.f32 %v980, 0.17677669
        %v1035 = vmul.f32 %v985, 0.17677669
        %v1036 = vmul.f32 %v988, 0.17677669
        %v1037 = vmul.f32 %v993, 0.17677669
        %v1038 = vmul.f32 %v996, 0.17677669
        %v1039 = vmul.f32 %v1001, 0.17677669
        %v1040 = vmul.f32 %v1004, 0.17677669
        %v1041 = vmul.f32 %v1009, 0.17677669
        %v1042 = vmul.f32 %v1012, 0.17677669
        %v1043 = vmul.f32 %v1017, 0.17677669
        %v1044 = vmul.f32 %v1020, 0.17677669
        %v1045 = vmul.f32 %v1025, 0.17677669
        %v1046 = vmul.f32 %v1028, 0.17677669
        %v1047 = vld [vmem:[#allocation2] sm:$0xff]
        %v1048 = vld [vmem:[#allocation2 + $0x8] sm:$0xff]
        %v1049 = vld [vmem:[#allocation2 + $0x10] sm:$0xff]
        %v1050 = vld [vmem:[#allocation2 + $0x18] sm:$0xff]
        %v1051 = vld [vmem:[#allocation2 + $0x20] sm:$0xff]
        %v1052 = vld [vmem:[#allocation2 + $0x28] sm:$0xff]
        %v1053 = vld [vmem:[#allocation2 + $0x30] sm:$0xff]
        %v1054 = vld [vmem:[#allocation2 + $0x38] sm:$0xff]
        %v1055 = vld [vmem:[#allocation2 + $0x40] sm:$0xff]
        %v1056 = vld [vmem:[#allocation2 + $0x48] sm:$0xff]
        %v1057 = vld [vmem:[#allocation2 + $0x50] sm:$0xff]
        %v1058 = vld [vmem:[#allocation2 + $0x58] sm:$0xff]
        %v1059 = vld [vmem:[#allocation2 + $0x60] sm:$0xff]
        %v1060 = vld [vmem:[#allocation2 + $0x68] sm:$0xff]
        %v1061 = vld [vmem:[#allocation2 + $0x70] sm:$0xff]
        %v1062 = vld [vmem:[#allocation2 + $0x78] sm:$0xff]
        %1063 = vmax.xlane.f32.xlu0 %v1031
        %v1064 = vpop.xlane.xlu0 %1063
        %1065 = vmax.xlane.f32.xlu0 %v1032
        %v1066 = vpop.xlane.xlu0 %1065
        %1067 = vmax.xlane.f32.xlu0 %v1033
        %v1068 = vpop.xlane.xlu0 %1067
        %1069 = vmax.xlane.f32.xlu0 %v1034
        %v1070 = vpop.xlane.xlu0 %1069
        %1071 = vmax.xlane.f32.xlu0 %v1035
        %v1072 = vpop.xlane.xlu0 %1071
        %1073 = vmax.xlane.f32.xlu0 %v1036
        %v1074 = vpop.xlane.xlu0 %1073
        %1075 = vmax.xlane.f32.xlu0 %v1037
        %v1076 = vpop.xlane.xlu0 %1075
        %1077 = vmax.xlane.f32.xlu0 %v1038
        %v1078 = vpop.xlane.xlu0 %1077
        %1079 = vmax.xlane.f32.xlu0 %v1039
        %v1080 = vpop.xlane.xlu0 %1079
        %1081 = vmax.xlane.f32.xlu0 %v1040
        %v1082 = vpop.xlane.xlu0 %1081
        %1083 = vmax.xlane.f32.xlu0 %v1041
        %v1084 = vpop.xlane.xlu0 %1083
        %1085 = vmax.xlane.f32.xlu0 %v1042
        %v1086 = vpop.xlane.xlu0 %1085
        %1087 = vmax.xlane.f32.xlu0 %v1043
        %v1088 = vpop.xlane.xlu0 %1087
        %1089 = vmax.xlane.f32.xlu0 %v1044
        %v1090 = vpop.xlane.xlu0 %1089
        %1091 = vmax.xlane.f32.xlu0 %v1045
        %v1092 = vpop.xlane.xlu0 %1091
        %1093 = vmax.xlane.f32.xlu0 %v1046
        %v1094 = vpop.xlane.xlu0 %1093
        %v1095 = vmax.f32 %v1047, %v1064
        %v1096 = vmax.f32 %v1048, %v1066
        %v1097 = vmax.f32 %v1049, %v1068
        %v1098 = vmax.f32 %v1050, %v1070
        %v1099 = vmax.f32 %v1051, %v1072
        %v1100 = vmax.f32 %v1052, %v1074
        %v1101 = vmax.f32 %v1053, %v1076
        %v1102 = vmax.f32 %v1054, %v1078
        %v1103 = vmax.f32 %v1055, %v1080
        %v1104 = vmax.f32 %v1056, %v1082
        %v1105 = vmax.f32 %v1057, %v1084
        %v1106 = vmax.f32 %v1058, %v1086
        %v1107 = vmax.f32 %v1059, %v1088
        %v1108 = vmax.f32 %v1060, %v1090
        %v1109 = vmax.f32 %v1061, %v1092
        %v1110 = vmax.f32 %v1062, %v1094
        %v1111 = vsub.f32 %v1047, %v1095
        %v1112 = vsub.f32 %v1048, %v1096
        %v1113 = vsub.f32 %v1049, %v1097
        %v1114 = vsub.f32 %v1050, %v1098
        %v1115 = vsub.f32 %v1051, %v1099
        %v1116 = vsub.f32 %v1052, %v1100
        %v1117 = vsub.f32 %v1053, %v1101
        %v1118 = vsub.f32 %v1054, %v1102
        %v1119 = vsub.f32 %v1055, %v1103
        %v1120 = vsub.f32 %v1056, %v1104
        %v1121 = vsub.f32 %v1057, %v1105
        %v1122 = vsub.f32 %v1058, %v1106
        %v1123 = vsub.f32 %v1059, %v1107
        %v1124 = vsub.f32 %v1060, %v1108
        %v1125 = vsub.f32 %v1061, %v1109
        %v1126 = vsub.f32 %v1062, %v1110
        %v1127 = vmul.f32 %v1111, 1.442695
        %v1128 = vpow.pop %v1127
        %v1129 = vmul.f32 %v1112, 1.442695
        %v1130 = vpow.pop %v1129
        %v1131 = vmul.f32 %v1113, 1.442695
        %v1132 = vpow.pop %v1131
        %v1133 = vmul.f32 %v1114, 1.442695
        %v1134 = vpow.pop %v1133
        %v1135 = vmul.f32 %v1115, 1.442695
        %v1136 = vpow.pop %v1135
        %v1137 = vmul.f32 %v1116, 1.442695
        %v1138 = vpow.pop %v1137
        %v1139 = vmul.f32 %v1117, 1.442695
        %v1140 = vpow.pop %v1139
        %v1141 = vmul.f32 %v1118, 1.442695
        %v1142 = vpow.pop %v1141
        %v1143 = vmul.f32 %v1119, 1.442695
        %v1144 = vpow.pop %v1143
        %v1145 = vmul.f32 %v1120, 1.442695
        %v1146 = vpow.pop %v1145
        %v1147 = vmul.f32 %v1121, 1.442695
        %v1148 = vpow.pop %v1147
        %v1149 = vmul.f32 %v1122, 1.442695
        %v1150 = vpow.pop %v1149
        %v1151 = vmul.f32 %v1123, 1.442695
        %v1152 = vpow.pop %v1151
        %v1153 = vmul.f32 %v1124, 1.442695
        %v1154 = vpow.pop %v1153
        %v1155 = vmul.f32 %v1125, 1.442695
        %v1156 = vpow.pop %v1155
        %v1157 = vmul.f32 %v1126, 1.442695
        %v1158 = vpow.pop %v1157
        %1160 = vset.pattern.permute.xlu0 0
        %1161 = vperm.xlu0 %1160, %v1095
        %v1162 = vpop.permute.xlu0 %1161
        %1165 = vset.pattern.permute.xlu0 0
        %1166 = vperm.xlu0 %1165, %v1096
        %v1167 = vpop.permute.xlu0 %1166
        %1170 = vset.pattern.permute.xlu0 0
        %1171 = vperm.xlu0 %1170, %v1097
        %v1172 = vpop.permute.xlu0 %1171
        %1175 = vset.pattern.permute.xlu0 0
        %1176 = vperm.xlu0 %1175, %v1098
        %v1177 = vpop.permute.xlu0 %1176
        %1180 = vset.pattern.permute.xlu0 0
        %1181 = vperm.xlu0 %1180, %v1099
        %v1182 = vpop.permute.xlu0 %1181
        %1185 = vset.pattern.permute.xlu0 0
        %1186 = vperm.xlu0 %1185, %v1100
        %v1187 = vpop.permute.xlu0 %1186
        %1190 = vset.pattern.permute.xlu0 0
        %1191 = vperm.xlu0 %1190, %v1101
        %v1192 = vpop.permute.xlu0 %1191
        %1195 = vset.pattern.permute.xlu0 0
        %1196 = vperm.xlu0 %1195, %v1102
        %v1197 = vpop.permute.xlu0 %1196
        %1200 = vset.pattern.permute.xlu0 0
        %1201 = vperm.xlu0 %1200, %v1103
        %v1202 = vpop.permute.xlu0 %1201
        %1205 = vset.pattern.permute.xlu0 0
        %1206 = vperm.xlu0 %1205, %v1104
        %v1207 = vpop.permute.xlu0 %1206
        %1210 = vset.pattern.permute.xlu0 0
        %1211 = vperm.xlu0 %1210, %v1105
        %v1212 = vpop.permute.xlu0 %1211
        %1215 = vset.pattern.permute.xlu0 0
        %1216 = vperm.xlu0 %1215, %v1106
        %v1217 = vpop.permute.xlu0 %1216
        %1220 = vset.pattern.permute.xlu0 0
        %1221 = vperm.xlu0 %1220, %v1107
        %v1222 = vpop.permute.xlu0 %1221
        %1225 = vset.pattern.permute.xlu0 0
        %1226 = vperm.xlu0 %1225, %v1108
        %v1227 = vpop.permute.xlu0 %1226
        %1230 = vset.pattern.permute.xlu0 0
        %1231 = vperm.xlu0 %1230, %v1109
        %v1232 = vpop.permute.xlu0 %1231
        %1235 = vset.pattern.permute.xlu0 0
        %1236 = vperm.xlu0 %1235, %v1110
        %v1237 = vpop.permute.xlu0 %1236
        %v1239 = vsub.f32 %v1031, %v1162
        %v1240 = vsub.f32 %v1032, %v1167
        %v1241 = vsub.f32 %v1033, %v1172
        %v1242 = vsub.f32 %v1034, %v1177
        %v1243 = vsub.f32 %v1035, %v1182
        %v1244 = vsub.f32 %v1036, %v1187
        %v1245 = vsub.f32 %v1037, %v1192
        %v1246 = vsub.f32 %v1038, %v1197
        %v1247 = vsub.f32 %v1039, %v1202
        %v1248 = vsub.f32 %v1040, %v1207
        %v1249 = vsub.f32 %v1041, %v1212
        %v1250 = vsub.f32 %v1042, %v1217
        %v1251 = vsub.f32 %v1043, %v1222
        %v1252 = vsub.f32 %v1044, %v1227
        %v1253 = vsub.f32 %v1045, %v1232
        %v1254 = vsub.f32 %v1046, %v1237
        %v1255 = vmul.f32 %v1239, 1.442695
        %v1256 = vpow.pop %v1255
        %v1257 = vmul.f32 %v1240, 1.442695
        %v1258 = vpow.pop %v1257
        %v1259 = vmul.f32 %v1241, 1.442695
        %v1260 = vpow.pop %v1259
        %v1261 = vmul.f32 %v1242, 1.442695
        %v1262 = vpow.pop %v1261
        %v1263 = vmul.f32 %v1243, 1.442695
        %v1264 = vpow.pop %v1263
        %v1265 = vmul.f32 %v1244, 1.442695
        %v1266 = vpow.pop %v1265
        %v1267 = vmul.f32 %v1245, 1.442695
        %v1268 = vpow.pop %v1267
        %v1269 = vmul.f32 %v1246, 1.442695
        %v1270 = vpow.pop %v1269
        %v1271 = vmul.f32 %v1247, 1.442695
        %v1272 = vpow.pop %v1271
        %v1273 = vmul.f32 %v1248, 1.442695
        %v1274 = vpow.pop %v1273
        %v1275 = vmul.f32 %v1249, 1.442695
        %v1276 = vpow.pop %v1275
        %v1277 = vmul.f32 %v1250, 1.442695
        %v1278 = vpow.pop %v1277
        %v1279 = vmul.f32 %v1251, 1.442695
        %v1280 = vpow.pop %v1279
        %v1281 = vmul.f32 %v1252, 1.442695
        %v1282 = vpow.pop %v1281
        %v1283 = vmul.f32 %v1253, 1.442695
        %v1284 = vpow.pop %v1283
        %v1285 = vmul.f32 %v1254, 1.442695
        %v1286 = vpow.pop %v1285
        %v1287 = vld [vmem:[#allocation3] sm:$0xff]
        %v1288 = vld [vmem:[#allocation3 + $0x8] sm:$0xff]
        %v1289 = vld [vmem:[#allocation3 + $0x10] sm:$0xff]
        %v1290 = vld [vmem:[#allocation3 + $0x18] sm:$0xff]
        %v1291 = vld [vmem:[#allocation3 + $0x20] sm:$0xff]
        %v1292 = vld [vmem:[#allocation3 + $0x28] sm:$0xff]
        %v1293 = vld [vmem:[#allocation3 + $0x30] sm:$0xff]
        %v1294 = vld [vmem:[#allocation3 + $0x38] sm:$0xff]
        %v1295 = vld [vmem:[#allocation3 + $0x40] sm:$0xff]
        %v1296 = vld [vmem:[#allocation3 + $0x48] sm:$0xff]
        %v1297 = vld [vmem:[#allocation3 + $0x50] sm:$0xff]
        %v1298 = vld [vmem:[#allocation3 + $0x58] sm:$0xff]
        %v1299 = vld [vmem:[#allocation3 + $0x60] sm:$0xff]
        %v1300 = vld [vmem:[#allocation3 + $0x68] sm:$0xff]
        %v1301 = vld [vmem:[#allocation3 + $0x70] sm:$0xff]
        %v1302 = vld [vmem:[#allocation3 + $0x78] sm:$0xff]
        %v1303 = vmul.f32 %v1128, %v1287
        %v1304 = vmul.f32 %v1130, %v1288
        %v1305 = vmul.f32 %v1132, %v1289
        %v1306 = vmul.f32 %v1134, %v1290
        %v1307 = vmul.f32 %v1136, %v1291
        %v1308 = vmul.f32 %v1138, %v1292
        %v1309 = vmul.f32 %v1140, %v1293
        %v1310 = vmul.f32 %v1142, %v1294
        %v1311 = vmul.f32 %v1144, %v1295
        %v1312 = vmul.f32 %v1146, %v1296
        %v1313 = vmul.f32 %v1148, %v1297
        %v1314 = vmul.f32 %v1150, %v1298
        %v1315 = vmul.f32 %v1152, %v1299
        %v1316 = vmul.f32 %v1154, %v1300
        %v1317 = vmul.f32 %v1156, %v1301
        %v1318 = vmul.f32 %v1158, %v1302
        %1319 = vadd.xlane.f32.xlu0 %v1256
        %v1320 = vpop.xlane.xlu0 %1319
        %1321 = vadd.xlane.f32.xlu0 %v1258
        %v1322 = vpop.xlane.xlu0 %1321
        %1323 = vadd.xlane.f32.xlu0 %v1260
        %v1324 = vpop.xlane.xlu0 %1323
        %1325 = vadd.xlane.f32.xlu0 %v1262
        %v1326 = vpop.xlane.xlu0 %1325
        %1327 = vadd.xlane.f32.xlu0 %v1264
        %v1328 = vpop.xlane.xlu0 %1327
        %1329 = vadd.xlane.f32.xlu0 %v1266
        %v1330 = vpop.xlane.xlu0 %1329
        %1331 = vadd.xlane.f32.xlu0 %v1268
        %v1332 = vpop.xlane.xlu0 %1331
        %1333 = vadd.xlane.f32.xlu0 %v1270
        %v1334 = vpop.xlane.xlu0 %1333
        %1335 = vadd.xlane.f32.xlu0 %v1272
        %v1336 = vpop.xlane.xlu0 %1335
        %1337 = vadd.xlane.f32.xlu0 %v1274
        %v1338 = vpop.xlane.xlu0 %1337
        %1339 = vadd.xlane.f32.xlu0 %v1276
        %v1340 = vpop.xlane.xlu0 %1339
        %1341 = vadd.xlane.f32.xlu0 %v1278
        %v1342 = vpop.xlane.xlu0 %1341
        %1343 = vadd.xlane.f32.xlu0 %v1280
        %v1344 = vpop.xlane.xlu0 %1343
        %1345 = vadd.xlane.f32.xlu0 %v1282
        %v1346 = vpop.xlane.xlu0 %1345
        %1347 = vadd.xlane.f32.xlu0 %v1284
        %v1348 = vpop.xlane.xlu0 %1347
        %1349 = vadd.xlane.f32.xlu0 %v1286
        %v1350 = vpop.xlane.xlu0 %1349
        %v1351 = vadd.f32 %v1303, %v1320
        %v1352 = vadd.f32 %v1304, %v1322
        %v1353 = vadd.f32 %v1305, %v1324
        %v1354 = vadd.f32 %v1306, %v1326
        %v1355 = vadd.f32 %v1307, %v1328
        %v1356 = vadd.f32 %v1308, %v1330
        %v1357 = vadd.f32 %v1309, %v1332
        %v1358 = vadd.f32 %v1310, %v1334
        %v1359 = vadd.f32 %v1311, %v1336
        %v1360 = vadd.f32 %v1312, %v1338
        %v1361 = vadd.f32 %v1313, %v1340
        %v1362 = vadd.f32 %v1314, %v1342
        %v1363 = vadd.f32 %v1315, %v1344
        %v1364 = vadd.f32 %v1316, %v1346
        %v1365 = vadd.f32 %v1317, %v1348
        %v1366 = vadd.f32 %v1318, %v1350
        %vm1367 = vcmask 7168
        %1368 = vst.msk [vmem:[#allocation3] sm:$0xff] %vm1367, %v1351
        %1369 = vst.msk [vmem:[#allocation3 + $0x8] sm:$0xff] %vm1367, %v1352
        %1370 = vst.msk [vmem:[#allocation3 + $0x10] sm:$0xff] %vm1367, %v1353
        %1371 = vst.msk [vmem:[#allocation3 + $0x18] sm:$0xff] %vm1367, %v1354
        %1372 = vst.msk [vmem:[#allocation3 + $0x20] sm:$0xff] %vm1367, %v1355
        %1373 = vst.msk [vmem:[#allocation3 + $0x28] sm:$0xff] %vm1367, %v1356
        %1374 = vst.msk [vmem:[#allocation3 + $0x30] sm:$0xff] %vm1367, %v1357
        %1375 = vst.msk [vmem:[#allocation3 + $0x38] sm:$0xff] %vm1367, %v1358
        %1376 = vst.msk [vmem:[#allocation3 + $0x40] sm:$0xff] %vm1367, %v1359
        %1377 = vst.msk [vmem:[#allocation3 + $0x48] sm:$0xff] %vm1367, %v1360
        %1378 = vst.msk [vmem:[#allocation3 + $0x50] sm:$0xff] %vm1367, %v1361
        %1379 = vst.msk [vmem:[#allocation3 + $0x58] sm:$0xff] %vm1367, %v1362
        %1380 = vst.msk [vmem:[#allocation3 + $0x60] sm:$0xff] %vm1367, %v1363
        %1381 = vst.msk [vmem:[#allocation3 + $0x68] sm:$0xff] %vm1367, %v1364
        %1382 = vst.msk [vmem:[#allocation3 + $0x70] sm:$0xff] %vm1367, %v1365
        %1383 = vst.msk [vmem:[#allocation3 + $0x78] sm:$0xff] %vm1367, %v1366
        %v1384 = vld [vmem:[#allocation4] sm:$0xff]
        %v1385 = vld [vmem:[#allocation4 + $0x8] sm:$0xff]
        %v1386 = vld [vmem:[#allocation4 + $0x10] sm:$0xff]
        %v1387 = vld [vmem:[#allocation4 + $0x18] sm:$0xff]
        %v1388 = vld [vmem:[#allocation4 + $0x20] sm:$0xff]
        %v1389 = vld [vmem:[#allocation4 + $0x28] sm:$0xff]
        %v1390 = vld [vmem:[#allocation4 + $0x30] sm:$0xff]
        %v1391 = vld [vmem:[#allocation4 + $0x38] sm:$0xff]
        %v1392 = vld [vmem:[#allocation4 + $0x40] sm:$0xff]
        %v1393 = vld [vmem:[#allocation4 + $0x48] sm:$0xff]
        %v1394 = vld [vmem:[#allocation4 + $0x50] sm:$0xff]
        %v1395 = vld [vmem:[#allocation4 + $0x58] sm:$0xff]
        %v1396 = vld [vmem:[#allocation4 + $0x60] sm:$0xff]
        %v1397 = vld [vmem:[#allocation4 + $0x68] sm:$0xff]
        %v1398 = vld [vmem:[#allocation4 + $0x70] sm:$0xff]
        %v1399 = vld [vmem:[#allocation4 + $0x78] sm:$0xff]
        %1401 = vset.pattern.permute.xlu0 0
        %1402 = vperm.xlu0 %1401, %v1128
        %v1403 = vpop.permute.xlu0 %1402
        %1406 = vset.pattern.permute.xlu0 0
        %1407 = vperm.xlu0 %1406, %v1130
        %v1408 = vpop.permute.xlu0 %1407
        %1411 = vset.pattern.permute.xlu0 0
        %1412 = vperm.xlu0 %1411, %v1132
        %v1413 = vpop.permute.xlu0 %1412
        %1416 = vset.pattern.permute.xlu0 0
        %1417 = vperm.xlu0 %1416, %v1134
        %v1418 = vpop.permute.xlu0 %1417
        %1421 = vset.pattern.permute.xlu0 0
        %1422 = vperm.xlu0 %1421, %v1136
        %v1423 = vpop.permute.xlu0 %1422
        %1426 = vset.pattern.permute.xlu0 0
        %1427 = vperm.xlu0 %1426, %v1138
        %v1428 = vpop.permute.xlu0 %1427
        %1431 = vset.pattern.permute.xlu0 0
        %1432 = vperm.xlu0 %1431, %v1140
        %v1433 = vpop.permute.xlu0 %1432
        %1436 = vset.pattern.permute.xlu0 0
        %1437 = vperm.xlu0 %1436, %v1142
        %v1438 = vpop.permute.xlu0 %1437
        %1441 = vset.pattern.permute.xlu0 0
        %1442 = vperm.xlu0 %1441, %v1144
        %v1443 = vpop.permute.xlu0 %1442
        %1446 = vset.pattern.permute.xlu0 0
        %1447 = vperm.xlu0 %1446, %v1146
        %v1448 = vpop.permute.xlu0 %1447
        %1451 = vset.pattern.permute.xlu0 0
        %1452 = vperm.xlu0 %1451, %v1148
        %v1453 = vpop.permute.xlu0 %1452
        %1456 = vset.pattern.permute.xlu0 0
        %1457 = vperm.xlu0 %1456, %v1150
        %v1458 = vpop.permute.xlu0 %1457
        %1461 = vset.pattern.permute.xlu0 0
        %1462 = vperm.xlu0 %1461, %v1152
        %v1463 = vpop.permute.xlu0 %1462
        %1466 = vset.pattern.permute.xlu0 0
        %1467 = vperm.xlu0 %1466, %v1154
        %v1468 = vpop.permute.xlu0 %1467
        %1471 = vset.pattern.permute.xlu0 0
        %1472 = vperm.xlu0 %1471, %v1156
        %v1473 = vpop.permute.xlu0 %1472
        %1476 = vset.pattern.permute.xlu0 0
        %1477 = vperm.xlu0 %1476, %v1158
        %v1478 = vpop.permute.xlu0 %1477
        %v1480 = vmul.f32 %v1403, %v1384
        %v1481 = vmul.f32 %v1408, %v1385
        %v1482 = vmul.f32 %v1413, %v1386
        %v1483 = vmul.f32 %v1418, %v1387
        %v1484 = vmul.f32 %v1423, %v1388
        %v1485 = vmul.f32 %v1428, %v1389
        %v1486 = vmul.f32 %v1433, %v1390
        %v1487 = vmul.f32 %v1438, %v1391
        %v1488 = vmul.f32 %v1443, %v1392
        %v1489 = vmul.f32 %v1448, %v1393
        %v1490 = vmul.f32 %v1453, %v1394
        %v1491 = vmul.f32 %v1458, %v1395
        %v1492 = vmul.f32 %v1463, %v1396
        %v1493 = vmul.f32 %v1468, %v1397
        %v1494 = vmul.f32 %v1473, %v1398
        %v1495 = vmul.f32 %v1478, %v1399
        %v1496 = vpack.c.bf16 %v1258, %v1256
        %v1497 = vpack.c.bf16 %v1262, %v1260
        %v1498 = vpack.c.bf16 %v1266, %v1264
        %v1499 = vpack.c.bf16 %v1270, %v1268
        %v1500 = vpack.c.bf16 %v1274, %v1272
        %v1501 = vpack.c.bf16 %v1278, %v1276
        %v1502 = vpack.c.bf16 %v1282, %v1280
        %v1503 = vpack.c.bf16 %v1286, %v1284
        %v1520 = vunpack.c.l.b16 %v789
        %v1521 = vunpack.c.l.b16 %v790
        %v1522 = vunpack.c.l.b16 %v791
        %v1523 = vunpack.c.l.b16 %v792
        %v1524 = vunpack.c.l.b16 %v793
        %v1525 = vunpack.c.l.b16 %v794
        %v1526 = vunpack.c.l.b16 %v795
        %v1527 = vunpack.c.l.b16 %v796
        %v1528 = vunpack.c.l.b16 %v797
        %v1529 = vunpack.c.l.b16 %v798
        %v1530 = vunpack.c.l.b16 %v799
        %v1531 = vunpack.c.l.b16 %v800
        %v1532 = vunpack.c.l.b16 %v801
        %v1533 = vunpack.c.l.b16 %v802
        %v1534 = vunpack.c.l.b16 %v803
        %v1535 = vunpack.c.l.b16 %v804
        %v1536 = vpack.c.b16 %v1521, %v1520
        %v1537 = vpack.c.b16 %v1523, %v1522
        %v1538 = vpack.c.b16 %v1525, %v1524
        %v1539 = vpack.c.b16 %v1527, %v1526
        %v1540 = vpack.c.b16 %v1529, %v1528
        %v1541 = vpack.c.b16 %v1531, %v1530
        %v1542 = vpack.c.b16 %v1533, %v1532
        %v1543 = vpack.c.b16 %v1535, %v1534
        %1552 = vmatprep.subr.bf16.mxu0 0
        %1553 = vmatpush1.bf16.msra.mxu0 %v1536
        %1554 = vmatprep.subr.bf16.mxu0 0
        %1555 = vmatpush1.bf16.msra.mxu0 %v1537
        %1556 = vmatprep.subr.bf16.mxu0 0
        %1557 = vmatpush1.bf16.msra.mxu0 %v1538
        %1558 = vmatprep.subr.bf16.mxu0 0
        %1559 = vmatpush1.bf16.msra.mxu0 %v1539
        %1560 = vmatprep.subr.bf16.mxu0 0
        %1561 = vmatpush1.bf16.msra.mxu0 %v1540
        %1562 = vmatprep.subr.bf16.mxu0 0
        %1563 = vmatpush1.bf16.msra.mxu0 %v1541
        %1564 = vmatprep.subr.bf16.mxu0 0
        %1565 = vmatpush1.bf16.msra.mxu0 %v1542
        %1566 = vmatprep.subr.bf16.mxu0 0
        %1567 = vmatpush1.bf16.msra.mxu0 %v1543
        %1568 = vmatprep.subr.bf16.mxu0 0
        %1569 = vmatpush1.bf16.msra.mxu0 0
        %1570 = vmatprep.subr.bf16.mxu0 0
        %1571 = vmatpush1.bf16.msra.mxu0 0
        %1572 = vmatprep.subr.bf16.mxu0 0
        %1573 = vmatpush1.bf16.msra.mxu0 0
        %1574 = vmatprep.subr.bf16.mxu0 0
        %1575 = vmatpush1.bf16.msra.mxu0 0
        %1576 = vmatprep.subr.bf16.mxu0 0
        %1577 = vmatpush1.bf16.msra.mxu0 0
        %1578 = vmatprep.subr.bf16.mxu0 0
        %1579 = vmatpush1.bf16.msra.mxu0 0
        %1580 = vmatprep.subr.bf16.mxu0 0
        %1581 = vmatpush1.bf16.msra.mxu0 0
        %1582 = vmatprep.subr.bf16.mxu0 0
        %1583 = vmatpush1.bf16.msra.mxu0 0
        %1584 = vmatprep.mubr.bf16.mxu0 0
        %1585 = vmatmul.mubr.bf16.gmra.mrb[0].mxu0 %v1496
        %v1586 = vpop.f32.mrb[0].mxu0
        %v1587 = vadd.f32 0.0, %v1586
        %v1588 = vpop.f32.mrb[0].mxu0
        %v1589 = vpop.f32.mrb[0].mxu0
        %v1590 = vadd.f32 0.0, %v1589
        %v1591 = vpop.f32.mrb[0].mxu0
        %1592 = vmatprep.mubr.bf16.mxu0 0
        %1593 = vmatmul.mubr.bf16.gmra.mrb[0].mxu0 %v1497
        %v1594 = vpop.f32.mrb[0].mxu0
        %v1595 = vadd.f32 0.0, %v1594
        %v1596 = vpop.f32.mrb[0].mxu0
        %v1597 = vpop.f32.mrb[0].mxu0
        %v1598 = vadd.f32 0.0, %v1597
        %v1599 = vpop.f32.mrb[0].mxu0
        %1600 = vmatprep.mubr.bf16.mxu0 0
        %1601 = vmatmul.mubr.bf16.gmra.mrb[0].mxu0 %v1498
        %v1602 = vpop.f32.mrb[0].mxu0
        %v1603 = vadd.f32 0.0, %v1602
        %v1604 = vpop.f32.mrb[0].mxu0
        %v1605 = vpop.f32.mrb[0].mxu0
        %v1606 = vadd.f32 0.0, %v1605
        %v1607 = vpop.f32.mrb[0].mxu0
        %1608 = vmatprep.mubr.bf16.mxu0 0
        %1609 = vmatmul.mubr.bf16.gmra.mrb[0].mxu0 %v1499
        %v1610 = vpop.f32.mrb[0].mxu0
        %v1611 = vadd.f32 0.0, %v1610
        %v1612 = vpop.f32.mrb[0].mxu0
        %v1613 = vpop.f32.mrb[0].mxu0
        %v1614 = vadd.f32 0.0, %v1613
        %v1615 = vpop.f32.mrb[0].mxu0
        %1616 = vmatprep.mubr.bf16.mxu0 0
        %1617 = vmatmul.mubr.bf16.gmra.mrb[0].mxu0 %v1500
        %v1618 = vpop.f32.mrb[0].mxu0
        %v1619 = vadd.f32 0.0, %v1618
        %v1620 = vpop.f32.mrb[0].mxu0
        %v1621 = vpop.f32.mrb[0].mxu0
        %v1622 = vadd.f32 0.0, %v1621
        %v1623 = vpop.f32.mrb[0].mxu0
        %1624 = vmatprep.mubr.bf16.mxu0 0
        %1625 = vmatmul.mubr.bf16.gmra.mrb[0].mxu0 %v1501
        %v1626 = vpop.f32.mrb[0].mxu0
        %v1627 = vadd.f32 0.0, %v1626
        %v1628 = vpop.f32.mrb[0].mxu0
        %v1629 = vpop.f32.mrb[0].mxu0
        %v1630 = vadd.f32 0.0, %v1629
        %v1631 = vpop.f32.mrb[0].mxu0
        %1632 = vmatprep.mubr.bf16.mxu0 0
        %1633 = vmatmul.mubr.bf16.gmra.mrb[0].mxu0 %v1502
        %v1634 = vpop.f32.mrb[0].mxu0
        %v1635 = vadd.f32 0.0, %v1634
        %v1636 = vpop.f32.mrb[0].mxu0
        %v1637 = vpop.f32.mrb[0].mxu0
        %v1638 = vadd.f32 0.0, %v1637
        %v1639 = vpop.f32.mrb[0].mxu0
        %1640 = vmatprep.mubr.bf16.mxu0 0
        %1641 = vmatmul.mubr.bf16.gmra.mrb[0].mxu0 %v1503
        %v1642 = vpop.f32.mrb[0].mxu0
        %v1643 = vadd.f32 0.0, %v1642
        %v1644 = vpop.f32.mrb[0].mxu0
        %v1645 = vpop.f32.mrb[0].mxu0
        %v1646 = vadd.f32 0.0, %v1645
        %v1647 = vpop.f32.mrb[0].mxu0
        %1648 = vdwg.mxu0
        %v1649 = vadd.f32 %v1480, %v1587
        %v1650 = vadd.f32 %v1481, %v1590
        %v1651 = vadd.f32 %v1482, %v1595
        %v1652 = vadd.f32 %v1483, %v1598
        %v1653 = vadd.f32 %v1484, %v1603
        %v1654 = vadd.f32 %v1485, %v1606
        %v1655 = vadd.f32 %v1486, %v1611
        %v1656 = vadd.f32 %v1487, %v1614
        %v1657 = vadd.f32 %v1488, %v1619
        %v1658 = vadd.f32 %v1489, %v1622
        %v1659 = vadd.f32 %v1490, %v1627
        %v1660 = vadd.f32 %v1491, %v1630
        %v1661 = vadd.f32 %v1492, %v1635
        %v1662 = vadd.f32 %v1493, %v1638
        %v1663 = vadd.f32 %v1494, %v1643
        %v1664 = vadd.f32 %v1495, %v1646
        %1665 = vst.msk [vmem:[#allocation4] sm:$0xff] %vm885, %v1649
        %1666 = vst.msk [vmem:[#allocation4 + $0x8] sm:$0xff] %vm885, %v1650
        %1667 = vst.msk [vmem:[#allocation4 + $0x10] sm:$0xff] %vm885, %v1651
        %1668 = vst.msk [vmem:[#allocation4 + $0x18] sm:$0xff] %vm885, %v1652
        %1669 = vst.msk [vmem:[#allocation4 + $0x20] sm:$0xff] %vm885, %v1653
        %1670 = vst.msk [vmem:[#allocation4 + $0x28] sm:$0xff] %vm885, %v1654
        %1671 = vst.msk [vmem:[#allocation4 + $0x30] sm:$0xff] %vm885, %v1655
        %1672 = vst.msk [vmem:[#allocation4 + $0x38] sm:$0xff] %vm885, %v1656
        %1673 = vst.msk [vmem:[#allocation4 + $0x40] sm:$0xff] %vm885, %v1657
        %1674 = vst.msk [vmem:[#allocation4 + $0x48] sm:$0xff] %vm885, %v1658
        %1675 = vst.msk [vmem:[#allocation4 + $0x50] sm:$0xff] %vm885, %v1659
        %1676 = vst.msk [vmem:[#allocation4 + $0x58] sm:$0xff] %vm885, %v1660
        %1677 = vst.msk [vmem:[#allocation4 + $0x60] sm:$0xff] %vm885, %v1661
        %1678 = vst.msk [vmem:[#allocation4 + $0x68] sm:$0xff] %vm885, %v1662
        %1679 = vst.msk [vmem:[#allocation4 + $0x70] sm:$0xff] %vm885, %v1663
        %1680 = vst.msk [vmem:[#allocation4 + $0x78] sm:$0xff] %vm885, %v1664
        %1681 = vst.msk [vmem:[#allocation2] sm:$0xff] %vm1367, %v1095
        %1682 = vst.msk [vmem:[#allocation2 + $0x8] sm:$0xff] %vm1367, %v1096
        %1683 = vst.msk [vmem:[#allocation2 + $0x10] sm:$0xff] %vm1367, %v1097
        %1684 = vst.msk [vmem:[#allocation2 + $0x18] sm:$0xff] %vm1367, %v1098
        %1685 = vst.msk [vmem:[#allocation2 + $0x20] sm:$0xff] %vm1367, %v1099
        %1686 = vst.msk [vmem:[#allocation2 + $0x28] sm:$0xff] %vm1367, %v1100
        %1687 = vst.msk [vmem:[#allocation2 + $0x30] sm:$0xff] %vm1367, %v1101
        %1688 = vst.msk [vmem:[#allocation2 + $0x38] sm:$0xff] %vm1367, %v1102
        %1689 = vst.msk [vmem:[#allocation2 + $0x40] sm:$0xff] %vm1367, %v1103
        %1690 = vst.msk [vmem:[#allocation2 + $0x48] sm:$0xff] %vm1367, %v1104
        %1691 = vst.msk [vmem:[#allocation2 + $0x50] sm:$0xff] %vm1367, %v1105
        %1692 = vst.msk [vmem:[#allocation2 + $0x58] sm:$0xff] %vm1367, %v1106
        %1693 = vst.msk [vmem:[#allocation2 + $0x60] sm:$0xff] %vm1367, %v1107
        %1694 = vst.msk [vmem:[#allocation2 + $0x68] sm:$0xff] %vm1367, %v1108
        %1695 = vst.msk [vmem:[#allocation2 + $0x70] sm:$0xff] %vm1367, %v1109
        %1696 = vst.msk [vmem:[#allocation2 + $0x78] sm:$0xff] %vm1367, %v1110
        %p1697 = scmp.eq.s32.totalorder %s37, 1
        // Predicated region
        $region85: #{decoder_block.3} parent=75 // pred_check
          %p1698 = pneg %p1697
        $region86: #{decoder_block.3} parent=75 // pred_check_branch
          %1700 = sbr.rel (%p1698) target = $region88
        $region87: #{decoder_block.3} parent=75 // pred_region
          %v1701 = vld [vmem:[#allocation4] sm:$0xff]
          %v1702 = vld [vmem:[#allocation4 + $0x8] sm:$0xff]
          %v1703 = vld [vmem:[#allocation4 + $0x10] sm:$0xff]
          %v1704 = vld [vmem:[#allocation4 + $0x18] sm:$0xff]
          %v1705 = vld [vmem:[#allocation4 + $0x20] sm:$0xff]
          %v1706 = vld [vmem:[#allocation4 + $0x28] sm:$0xff]
          %v1707 = vld [vmem:[#allocation4 + $0x30] sm:$0xff]
          %v1708 = vld [vmem:[#allocation4 + $0x38] sm:$0xff]
          %v1709 = vld [vmem:[#allocation4 + $0x40] sm:$0xff]
          %v1710 = vld [vmem:[#allocation4 + $0x48] sm:$0xff]
          %v1711 = vld [vmem:[#allocation4 + $0x50] sm:$0xff]
          %v1712 = vld [vmem:[#allocation4 + $0x58] sm:$0xff]
          %v1713 = vld [vmem:[#allocation4 + $0x60] sm:$0xff]
          %v1714 = vld [vmem:[#allocation4 + $0x68] sm:$0xff]
          %v1715 = vld [vmem:[#allocation4 + $0x70] sm:$0xff]
          %v1716 = vld [vmem:[#allocation4 + $0x78] sm:$0xff]
          %v1717 = vld [vmem:[#allocation3] sm:$0xff]
          %v1718 = vld [vmem:[#allocation3 + $0x8] sm:$0xff]
          %v1719 = vld [vmem:[#allocation3 + $0x10] sm:$0xff]
          %v1720 = vld [vmem:[#allocation3 + $0x18] sm:$0xff]
          %v1721 = vld [vmem:[#allocation3 + $0x20] sm:$0xff]
          %v1722 = vld [vmem:[#allocation3 + $0x28] sm:$0xff]
          %v1723 = vld [vmem:[#allocation3 + $0x30] sm:$0xff]
          %v1724 = vld [vmem:[#allocation3 + $0x38] sm:$0xff]
          %v1725 = vld [vmem:[#allocation3 + $0x40] sm:$0xff]
          %v1726 = vld [vmem:[#allocation3 + $0x48] sm:$0xff]
          %v1727 = vld [vmem:[#allocation3 + $0x50] sm:$0xff]
          %v1728 = vld [vmem:[#allocation3 + $0x58] sm:$0xff]
          %v1729 = vld [vmem:[#allocation3 + $0x60] sm:$0xff]
          %v1730 = vld [vmem:[#allocation3 + $0x68] sm:$0xff]
          %v1731 = vld [vmem:[#allocation3 + $0x70] sm:$0xff]
          %v1732 = vld [vmem:[#allocation3 + $0x78] sm:$0xff]
          %v1733 = vrcp.pop %v1717
          %v1734 = vrcp.pop %v1718
          %v1735 = vrcp.pop %v1719
          %v1736 = vrcp.pop %v1720
          %v1737 = vrcp.pop %v1721
          %v1738 = vrcp.pop %v1722
          %v1739 = vrcp.pop %v1723
          %v1740 = vrcp.pop %v1724
          %v1741 = vrcp.pop %v1725
          %v1742 = vrcp.pop %v1726
          %v1743 = vrcp.pop %v1727
          %v1744 = vrcp.pop %v1728
          %v1745 = vrcp.pop %v1729
          %v1746 = vrcp.pop %v1730
          %v1747 = vrcp.pop %v1731
          %v1748 = vrcp.pop %v1732
          %1750 = vset.pattern.permute.xlu0 0
          %1751 = vperm.xlu0 %1750, %v1733
          %v1752 = vpop.permute.xlu0 %1751
          %1755 = vset.pattern.permute.xlu0 0
          %1756 = vperm.xlu0 %1755, %v1734
          %v1757 = vpop.permute.xlu0 %1756
          %1760 = vset.pattern.permute.xlu0 0
          %1761 = vperm.xlu0 %1760, %v1735
          %v1762 = vpop.permute.xlu0 %1761
          %1765 = vset.pattern.permute.xlu0 0
          %1766 = vperm.xlu0 %1765, %v1736
          %v1767 = vpop.permute.xlu0 %1766
          %1770 = vset.pattern.permute.xlu0 0
          %1771 = vperm.xlu0 %1770, %v1737
          %v1772 = vpop.permute.xlu0 %1771
          %1775 = vset.pattern.permute.xlu0 0
          %1776 = vperm.xlu0 %1775, %v1738
          %v1777 = vpop.permute.xlu0 %1776
          %1780 = vset.pattern.permute.xlu0 0
          %1781 = vperm.xlu0 %1780, %v1739
          %v1782 = vpop.permute.xlu0 %1781
          %1785 = vset.pattern.permute.xlu0 0
          %1786 = vperm.xlu0 %1785, %v1740
          %v1787 = vpop.permute.xlu0 %1786
          %1790 = vset.pattern.permute.xlu0 0
          %1791 = vperm.xlu0 %1790, %v1741
          %v1792 = vpop.permute.xlu0 %1791
          %1795 = vset.pattern.permute.xlu0 0
          %1796 = vperm.xlu0 %1795, %v1742
          %v1797 = vpop.permute.xlu0 %1796
          %1800 = vset.pattern.permute.xlu0 0
          %1801 = vperm.xlu0 %1800, %v1743
          %v1802 = vpop.permute.xlu0 %1801
          %1805 = vset.pattern.permute.xlu0 0
          %1806 = vperm.xlu0 %1805, %v1744
          %v1807 = vpop.permute.xlu0 %1806
          %1810 = vset.pattern.permute.xlu0 0
          %1811 = vperm.xlu0 %1810, %v1745
          %v1812 = vpop.permute.xlu0 %1811
          %1815 = vset.pattern.permute.xlu0 0
          %1816 = vperm.xlu0 %1815, %v1746
          %v1817 = vpop.permute.xlu0 %1816
          %1820 = vset.pattern.permute.xlu0 0
          %1821 = vperm.xlu0 %1820, %v1747
          %v1822 = vpop.permute.xlu0 %1821
          %1825 = vset.pattern.permute.xlu0 0
          %1826 = vperm.xlu0 %1825, %v1748
          %v1827 = vpop.permute.xlu0 %1826
          %v1829 = vmul.f32 %v1701, %v1752
          %v1830 = vmul.f32 %v1702, %v1757
          %v1831 = vmul.f32 %v1703, %v1762
          %v1832 = vmul.f32 %v1704, %v1767
          %v1833 = vmul.f32 %v1705, %v1772
          %v1834 = vmul.f32 %v1706, %v1777
          %v1835 = vmul.f32 %v1707, %v1782
          %v1836 = vmul.f32 %v1708, %v1787
          %v1837 = vmul.f32 %v1709, %v1792
          %v1838 = vmul.f32 %v1710, %v1797
          %v1839 = vmul.f32 %v1711, %v1802
          %v1840 = vmul.f32 %v1712, %v1807
          %v1841 = vmul.f32 %v1713, %v1812
          %v1842 = vmul.f32 %v1714, %v1817
          %v1843 = vmul.f32 %v1715, %v1822
          %v1844 = vmul.f32 %v1716, %v1827
          %v1845 = vld [vmem:[#allocation5] sm:$0xff]
          %v1846 = vld [vmem:[#allocation5 + $0x8] sm:$0xff]
          %v1847 = vld [vmem:[#allocation5 + $0x10] sm:$0xff]
          %v1848 = vld [vmem:[#allocation5 + $0x18] sm:$0xff]
          %v1849 = vld [vmem:[#allocation5 + $0x20] sm:$0xff]
          %v1850 = vld [vmem:[#allocation5 + $0x28] sm:$0xff]
          %v1851 = vld [vmem:[#allocation5 + $0x30] sm:$0xff]
          %v1852 = vld [vmem:[#allocation5 + $0x38] sm:$0xff]
          %v1853 = vld [vmem:[#allocation5 + $0x40] sm:$0xff]
          %v1854 = vld [vmem:[#allocation5 + $0x48] sm:$0xff]
          %v1855 = vld [vmem:[#allocation5 + $0x50] sm:$0xff]
          %v1856 = vld [vmem:[#allocation5 + $0x58] sm:$0xff]
          %v1857 = vld [vmem:[#allocation5 + $0x60] sm:$0xff]
          %v1858 = vld [vmem:[#allocation5 + $0x68] sm:$0xff]
          %v1859 = vld [vmem:[#allocation5 + $0x70] sm:$0xff]
          %v1860 = vld [vmem:[#allocation5 + $0x78] sm:$0xff]
          %v1861 = vpack.c.bf16 %v1830, %v1829
          %v1862 = vpack.c.bf16 %v1832, %v1831
          %v1863 = vpack.c.bf16 %v1834, %v1833
          %v1864 = vpack.c.bf16 %v1836, %v1835
          %v1865 = vpack.c.bf16 %v1838, %v1837
          %v1866 = vpack.c.bf16 %v1840, %v1839
          %v1867 = vpack.c.bf16 %v1842, %v1841
          %v1868 = vpack.c.bf16 %v1844, %v1843
          %v1869 = vld [vmem:[%s679] sm:$0xf]
          %v1870 = vld [vmem:[%s679 + $0x4] sm:$0xf]
          %v1871 = vld [vmem:[%s679 + $0x8] sm:$0xf]
          %v1872 = vld [vmem:[%s679 + $0xc] sm:$0xf]
          %v1877 = vunpack.c.l.b16 %v1869
          %v1878 = vunpack.c.l.b16 %v1870
          %v1879 = vunpack.c.l.b16 %v1871
          %v1880 = vunpack.c.l.b16 %v1872
          %v1881 = vpack.c.b16 %v1878, %v1877
          %v1882 = vpack.c.b16 %v1880, %v1879
          %v1886 = vsel %vm885, %v1861, 0
          %v1889 = vsel %vm885, %v1862, 0
          %v1892 = vsel %vm885, %v1863, 0
          %v1895 = vsel %vm885, %v1864, 0
          %v1898 = vsel %vm885, %v1865, 0
          %v1901 = vsel %vm885, %v1866, 0
          %v1904 = vsel %vm885, %v1867, 0
          %v1907 = vsel %vm885, %v1868, 0
          %1909 = vmatprep.subr.bf16.mxu0 0
          %1910 = vmatpush1.bf16.msra.mxu0 %v1881
          %1911 = vmatprep.subr.bf16.mxu0 0
          %1912 = vmatpush1.bf16.msra.mxu0 %v1882
          %1913 = vmatprep.subr.bf16.mxu0 0
          %1914 = vmatpush1.bf16.msra.mxu0 0
          %1915 = vmatprep.subr.bf16.mxu0 0
          %1916 = vmatpush1.bf16.msra.mxu0 0
          %1917 = vmatprep.subr.bf16.mxu0 0
          %1918 = vmatpush1.bf16.msra.mxu0 0
          %1919 = vmatprep.subr.bf16.mxu0 0
          %1920 = vmatpush1.bf16.msra.mxu0 0
          %1921 = vmatprep.subr.bf16.mxu0 0
          %1922 = vmatpush1.bf16.msra.mxu0 0
          %1923 = vmatprep.subr.bf16.mxu0 0
          %1924 = vmatpush1.bf16.msra.mxu0 0
          %1925 = vmatprep.subr.bf16.mxu0 0
          %1926 = vmatpush1.bf16.msra.mxu0 0
          %1927 = vmatprep.subr.bf16.mxu0 0
          %1928 = vmatpush1.bf16.msra.mxu0 0
          %1929 = vmatprep.subr.bf16.mxu0 0
          %1930 = vmatpush1.bf16.msra.mxu0 0
          %1931 = vmatprep.subr.bf16.mxu0 0
          %1932 = vmatpush1.bf16.msra.mxu0 0
          %1933 = vmatprep.subr.bf16.mxu0 0
          %1934 = vmatpush1.bf16.msra.mxu0 0
          %1935 = vmatprep.subr.bf16.mxu0 0
          %1936 = vmatpush1.bf16.msra.mxu0 0
          %1937 = vmatprep.subr.bf16.mxu0 0
          %1938 = vmatpush1.bf16.msra.mxu0 0
          %1939 = vmatprep.subr.bf16.mxu0 0
          %1940 = vmatpush1.bf16.msra.mxu0 0
          %1941 = vmatprep.mubr.bf16.mxu0 0
          %1942 = vmatmul.mubr.bf16.gmra.mrb[0].mxu0 %v1886
          %v1943 = vpop.f32.mrb[0].mxu0
          %v1944 = vadd.f32 0.0, %v1943
          %v1945 = vpop.f32.mrb[0].mxu0
          %v1946 = vpop.f32.mrb[0].mxu0
          %v1947 = vadd.f32 0.0, %v1946
          %v1948 = vpop.f32.mrb[0].mxu0
          %1949 = vmatprep.mubr.bf16.mxu0 0
          %1950 = vmatmul.mubr.bf16.gmra.mrb[0].mxu0 %v1889
          %v1951 = vpop.f32.mrb[0].mxu0
          %v1952 = vadd.f32 0.0, %v1951
          %v1953 = vpop.f32.mrb[0].mxu0
          %v1954 = vpop.f32.mrb[0].mxu0
          %v1955 = vadd.f32 0.0, %v1954
          %v1956 = vpop.f32.mrb[0].mxu0
          %1957 = vmatprep.mubr.bf16.mxu0 0
          %1958 = vmatmul.mubr.bf16.gmra.mrb[0].mxu0 %v1892
          %v1959 = vpop.f32.mrb[0].mxu0
          %v1960 = vadd.f32 0.0, %v1959
          %v1961 = vpop.f32.mrb[0].mxu0
          %v1962 = vpop.f32.mrb[0].mxu0
          %v1963 = vadd.f32 0.0, %v1962
          %v1964 = vpop.f32.mrb[0].mxu0
          %1965 = vmatprep.mubr.bf16.mxu0 0
          %1966 = vmatmul.mubr.bf16.gmra.mrb[0].mxu0 %v1895
          %v1967 = vpop.f32.mrb[0].mxu0
          %v1968 = vadd.f32 0.0, %v1967
          %v1969 = vpop.f32.mrb[0].mxu0
          %v1970 = vpop.f32.mrb[0].mxu0
          %v1971 = vadd.f32 0.0, %v1970
          %v1972 = vpop.f32.mrb[0].mxu0
          %1973 = vmatprep.mubr.bf16.mxu0 0
          %1974 = vmatmul.mubr.bf16.gmra.mrb[0].mxu0 %v1898
          %v1975 = vpop.f32.mrb[0].mxu0
          %v1976 = vadd.f32 0.0, %v1975
          %v1977 = vpop.f32.mrb[0].mxu0
          %v1978 = vpop.f32.mrb[0].mxu0
          %v1979 = vadd.f32 0.0, %v1978
          %v1980 = vpop.f32.mrb[0].mxu0
          %1981 = vmatprep.mubr.bf16.mxu0 0
          %1982 = vmatmul.mubr.bf16.gmra.mrb[0].mxu0 %v1901
          %v1983 = vpop.f32.mrb[0].mxu0
          %v1984 = vadd.f32 0.0, %v1983
          %v1985 = vpop.f32.mrb[0].mxu0
          %v1986 = vpop.f32.mrb[0].mxu0
          %v1987 = vadd.f32 0.0, %v1986
          %v1988 = vpop.f32.mrb[0].mxu0
          %1989 = vmatprep.mubr.bf16.mxu0 0
          %1990 = vmatmul.mubr.bf16.gmra.mrb[0].mxu0 %v1904
          %v1991 = vpop.f32.mrb[0].mxu0
          %v1992 = vadd.f32 0.0, %v1991
          %v1993 = vpop.f32.mrb[0].mxu0
          %v1994 = vpop.f32.mrb[0].mxu0
          %v1995 = vadd.f32 0.0, %v1994
          %v1996 = vpop.f32.mrb[0].mxu0
          %1997 = vmatprep.mubr.bf16.mxu0 0
          %1998 = vmatmul.mubr.bf16.gmra.mrb[0].mxu0 %v1907
          %v1999 = vpop.f32.mrb[0].mxu0
          %v2000 = vadd.f32 0.0, %v1999
          %v2001 = vpop.f32.mrb[0].mxu0
          %v2002 = vpop.f32.mrb[0].mxu0
          %v2003 = vadd.f32 0.0, %v2002
          %v2004 = vpop.f32.mrb[0].mxu0
          %2005 = vdwg.mxu0
          %v2006 = vadd.f32 %v1845, %v1944
          %v2007 = vadd.f32 %v1846, %v1947
          %v2008 = vadd.f32 %v1847, %v1952
          %v2009 = vadd.f32 %v1848, %v1955
          %v2010 = vadd.f32 %v1849, %v1960
          %v2011 = vadd.f32 %v1850, %v1963
          %v2012 = vadd.f32 %v1851, %v1968
          %v2013 = vadd.f32 %v1852, %v1971
          %v2014 = vadd.f32 %v1853, %v1976
          %v2015 = vadd.f32 %v1854, %v1979
          %v2016 = vadd.f32 %v1855, %v1984
          %v2017 = vadd.f32 %v1856, %v1987
          %v2018 = vadd.f32 %v1857, %v1992
          %v2019 = vadd.f32 %v1858, %v1995
          %v2020 = vadd.f32 %v1859, %v2000
          %v2021 = vadd.f32 %v1860, %v2003
          %2022 = vst [vmem:[#allocation5] sm:$0xff] %v2006
          %2023 = vst [vmem:[#allocation5 + $0x8] sm:$0xff] %v2007
          %2024 = vst [vmem:[#allocation5 + $0x10] sm:$0xff] %v2008
          %2025 = vst [vmem:[#allocation5 + $0x18] sm:$0xff] %v2009
          %2026 = vst [vmem:[#allocation5 + $0x20] sm:$0xff] %v2010
          %2027 = vst [vmem:[#allocation5 + $0x28] sm:$0xff] %v2011
          %2028 = vst [vmem:[#allocation5 + $0x30] sm:$0xff] %v2012
          %2029 = vst [vmem:[#allocation5 + $0x38] sm:$0xff] %v2013
          %2030 = vst [vmem:[#allocation5 + $0x40] sm:$0xff] %v2014
          %2031 = vst [vmem:[#allocation5 + $0x48] sm:$0xff] %v2015
          %2032 = vst [vmem:[#allocation5 + $0x50] sm:$0xff] %v2016
          %2033 = vst [vmem:[#allocation5 + $0x58] sm:$0xff] %v2017
          %2034 = vst [vmem:[#allocation5 + $0x60] sm:$0xff] %v2018
          %2035 = vst [vmem:[#allocation5 + $0x68] sm:$0xff] %v2019
          %2036 = vst [vmem:[#allocation5 + $0x70] sm:$0xff] %v2020
          %2037 = vst [vmem:[#allocation5 + $0x78] sm:$0xff] %v2021
        $region88: #{decoder_block.3} parent=75 // pred_fallthru
          _
        %p2038 = scmp.eq.s32.totalorder %s36, 3
        %p2039 = pnand %p2038, %p1697
        %p2040 = pneg %p2039
        // Predicated region
        $region89: #{decoder_block.3} parent=75 // pred_check
          _
        $region90: #{decoder_block.3} parent=75 // pred_check_branch
          %2042 = sbr.rel (%p2039) target = $region92
        $region91: #{decoder_block.3} parent=75 // pred_region
          %v2043 = vld [vmem:[%s673] sm:$0xff]
          %v2044 = vld [vmem:[%s673 + $0x8] sm:$0xff]
          %v2045 = vld [vmem:[%s673 + $0x10] sm:$0xff]
          %v2046 = vld [vmem:[%s673 + $0x18] sm:$0xff]
          %v2047 = vld [vmem:[%s673 + $0x20] sm:$0xff]
          %v2048 = vld [vmem:[%s673 + $0x28] sm:$0xff]
          %v2049 = vld [vmem:[%s673 + $0x30] sm:$0xff]
          %v2050 = vld [vmem:[%s673 + $0x38] sm:$0xff]
          %v2051 = vld [vmem:[%s673 + $0x40] sm:$0xff]
          %v2052 = vld [vmem:[%s673 + $0x48] sm:$0xff]
          %v2053 = vld [vmem:[%s673 + $0x50] sm:$0xff]
          %v2054 = vld [vmem:[%s673 + $0x58] sm:$0xff]
          %v2055 = vld [vmem:[%s673 + $0x60] sm:$0xff]
          %v2056 = vld [vmem:[%s673 + $0x68] sm:$0xff]
          %v2057 = vld [vmem:[%s673 + $0x70] sm:$0xff]
          %v2058 = vld [vmem:[%s673 + $0x78] sm:$0xff]
          %v2059 = vld [vmem:[#allocation5] sm:$0xff]
          %v2060 = vld [vmem:[#allocation5 + $0x8] sm:$0xff]
          %v2061 = vld [vmem:[#allocation5 + $0x10] sm:$0xff]
          %v2062 = vld [vmem:[#allocation5 + $0x18] sm:$0xff]
          %v2063 = vld [vmem:[#allocation5 + $0x20] sm:$0xff]
          %v2064 = vld [vmem:[#allocation5 + $0x28] sm:$0xff]
          %v2065 = vld [vmem:[#allocation5 + $0x30] sm:$0xff]
          %v2066 = vld [vmem:[#allocation5 + $0x38] sm:$0xff]
          %v2067 = vld [vmem:[#allocation5 + $0x40] sm:$0xff]
          %v2068 = vld [vmem:[#allocation5 + $0x48] sm:$0xff]
          %v2069 = vld [vmem:[#allocation5 + $0x50] sm:$0xff]
          %v2070 = vld [vmem:[#allocation5 + $0x58] sm:$0xff]
          %v2071 = vld [vmem:[#allocation5 + $0x60] sm:$0xff]
          %v2072 = vld [vmem:[#allocation5 + $0x68] sm:$0xff]
          %v2073 = vld [vmem:[#allocation5 + $0x70] sm:$0xff]
          %v2074 = vld [vmem:[#allocation5 + $0x78] sm:$0xff]
          %v2075 = vld [vmem:[%s5] sm:$0x1]
          %v2077 = vlaneseq
          %v2078 = vshrl.u32 %v2077, 7
          %v2079 = vsub.s32 0, %v2078
          %v2080 = vrot.slane %v2075, %v2079
          %v2082 = vadd.f32 %v2059, %v2080
          %v2083 = vadd.f32 %v2060, %v2080
          %v2084 = vadd.f32 %v2061, %v2080
          %v2085 = vadd.f32 %v2062, %v2080
          %v2086 = vadd.f32 %v2063, %v2080
          %v2087 = vadd.f32 %v2064, %v2080
          %v2088 = vadd.f32 %v2065, %v2080
          %v2089 = vadd.f32 %v2066, %v2080
          %v2090 = vadd.f32 %v2067, %v2080
          %v2091 = vadd.f32 %v2068, %v2080
          %v2092 = vadd.f32 %v2069, %v2080
          %v2093 = vadd.f32 %v2070, %v2080
          %v2094 = vadd.f32 %v2071, %v2080
          %v2095 = vadd.f32 %v2072, %v2080
          %v2096 = vadd.f32 %v2073, %v2080
          %v2097 = vadd.f32 %v2074, %v2080
          %v2098 = vadd.f32 %v2043, %v2082
          %v2099 = vadd.f32 %v2044, %v2083
          %v2100 = vadd.f32 %v2045, %v2084
          %v2101 = vadd.f32 %v2046, %v2085
          %v2102 = vadd.f32 %v2047, %v2086
          %v2103 = vadd.f32 %v2048, %v2087
          %v2104 = vadd.f32 %v2049, %v2088
          %v2105 = vadd.f32 %v2050, %v2089
          %v2106 = vadd.f32 %v2051, %v2090
          %v2107 = vadd.f32 %v2052, %v2091
          %v2108 = vadd.f32 %v2053, %v2092
          %v2109 = vadd.f32 %v2054, %v2093
          %v2110 = vadd.f32 %v2055, %v2094
          %v2111 = vadd.f32 %v2056, %v2095
          %v2112 = vadd.f32 %v2057, %v2096
          %v2113 = vadd.f32 %v2058, %v2097
          %v2114 = vld [vmem:[%s6] sm:$0x1]
          %v2115 = vld [vmem:[%s7] sm:$0x1]
          %2116 = vadd.xlane.f32.xlu0 %v2098
          %v2117 = vpop.xlane.xlu0 %2116
          %2118 = vadd.xlane.f32.xlu0 %v2099
          %v2119 = vpop.xlane.xlu0 %2118
          %2120 = vadd.xlane.f32.xlu0 %v2100
          %v2121 = vpop.xlane.xlu0 %2120
          %2122 = vadd.xlane.f32.xlu0 %v2101
          %v2123 = vpop.xlane.xlu0 %2122
          %2124 = vadd.xlane.f32.xlu0 %v2102
          %v2125 = vpop.xlane.xlu0 %2124
          %2126 = vadd.xlane.f32.xlu0 %v2103
          %v2127 = vpop.xlane.xlu0 %2126
          %2128 = vadd.xlane.f32.xlu0 %v2104
          %v2129 = vpop.xlane.xlu0 %2128
          %2130 = vadd.xlane.f32.xlu0 %v2105
          %v2131 = vpop.xlane.xlu0 %2130
          %2132 = vadd.xlane.f32.xlu0 %v2106
          %v2133 = vpop.xlane.xlu0 %2132
          %2134 = vadd.xlane.f32.xlu0 %v2107
          %v2135 = vpop.xlane.xlu0 %2134
          %2136 = vadd.xlane.f32.xlu0 %v2108
          %v2137 = vpop.xlane.xlu0 %2136
          %2138 = vadd.xlane.f32.xlu0 %v2109
          %v2139 = vpop.xlane.xlu0 %2138
          %2140 = vadd.xlane.f32.xlu0 %v2110
          %v2141 = vpop.xlane.xlu0 %2140
          %2142 = vadd.xlane.f32.xlu0 %v2111
          %v2143 = vpop.xlane.xlu0 %2142
          %2144 = vadd.xlane.f32.xlu0 %v2112
          %v2145 = vpop.xlane.xlu0 %2144
          %2146 = vadd.xlane.f32.xlu0 %v2113
          %v2147 = vpop.xlane.xlu0 %2146
          %v2148 = vrcp.pop 128.0
          %v2149 = vmul.f32 %v2117, %v2148
          %v2150 = vmul.f32 %v2119, %v2148
          %v2151 = vmul.f32 %v2121, %v2148
          %v2152 = vmul.f32 %v2123, %v2148
          %v2153 = vmul.f32 %v2125, %v2148
          %v2154 = vmul.f32 %v2127, %v2148
          %v2155 = vmul.f32 %v2129, %v2148
          %v2156 = vmul.f32 %v2131, %v2148
          %v2157 = vmul.f32 %v2133, %v2148
          %v2158 = vmul.f32 %v2135, %v2148
          %v2159 = vmul.f32 %v2137, %v2148
          %v2160 = vmul.f32 %v2139, %v2148
          %v2161 = vmul.f32 %v2141, %v2148
          %v2162 = vmul.f32 %v2143, %v2148
          %v2163 = vmul.f32 %v2145, %v2148
          %v2164 = vmul.f32 %v2147, %v2148
          %v2165 = vsub.f32 %v2098, %v2149
          %v2166 = vsub.f32 %v2099, %v2150
          %v2167 = vsub.f32 %v2100, %v2151
          %v2168 = vsub.f32 %v2101, %v2152
          %v2169 = vsub.f32 %v2102, %v2153
          %v2170 = vsub.f32 %v2103, %v2154
          %v2171 = vsub.f32 %v2104, %v2155
          %v2172 = vsub.f32 %v2105, %v2156
          %v2173 = vsub.f32 %v2106, %v2157
          %v2174 = vsub.f32 %v2107, %v2158
          %v2175 = vsub.f32 %v2108, %v2159
          %v2176 = vsub.f32 %v2109, %v2160
          %v2177 = vsub.f32 %v2110, %v2161
          %v2178 = vsub.f32 %v2111, %v2162
          %v2179 = vsub.f32 %v2112, %v2163
          %v2180 = vsub.f32 %v2113, %v2164
          %v2181 = vmul.f32 %v2165, %v2165
          %v2182 = vmul.f32 %v2166, %v2166
          %v2183 = vmul.f32 %v2167, %v2167
          %v2184 = vmul.f32 %v2168, %v2168
          %v2185 = vmul.f32 %v2169, %v2169
          %v2186 = vmul.f32 %v2170, %v2170
          %v2187 = vmul.f32 %v2171, %v2171
          %v2188 = vmul.f32 %v2172, %v2172
          %v2189 = vmul.f32 %v2173, %v2173
          %v2190 = vmul.f32 %v2174, %v2174
          %v2191 = vmul.f32 %v2175, %v2175
          %v2192 = vmul.f32 %v2176, %v2176
          %v2193 = vmul.f32 %v2177, %v2177
          %v2194 = vmul.f32 %v2178, %v2178
          %v2195 = vmul.f32 %v2179, %v2179
          %v2196 = vmul.f32 %v2180, %v2180
          %2197 = vadd.xlane.f32.xlu0 %v2181
          %v2198 = vpop.xlane.xlu0 %2197
          %2199 = vadd.xlane.f32.xlu0 %v2182
          %v2200 = vpop.xlane.xlu0 %2199
          %2201 = vadd.xlane.f32.xlu0 %v2183
          %v2202 = vpop.xlane.xlu0 %2201
          %2203 = vadd.xlane.f32.xlu0 %v2184
          %v2204 = vpop.xlane.xlu0 %2203
          %2205 = vadd.xlane.f32.xlu0 %v2185
          %v2206 = vpop.xlane.xlu0 %2205
          %2207 = vadd.xlane.f32.xlu0 %v2186
          %v2208 = vpop.xlane.xlu0 %2207
          %2209 = vadd.xlane.f32.xlu0 %v2187
          %v2210 = vpop.xlane.xlu0 %2209
          %2211 = vadd.xlane.f32.xlu0 %v2188
          %v2212 = vpop.xlane.xlu0 %2211
          %2213 = vadd.xlane.f32.xlu0 %v2189
          %v2214 = vpop.xlane.xlu0 %2213
          %2215 = vadd.xlane.f32.xlu0 %v2190
          %v2216 = vpop.xlane.xlu0 %2215
          %2217 = vadd.xlane.f32.xlu0 %v2191
          %v2218 = vpop.xlane.xlu0 %2217
          %2219 = vadd.xlane.f32.xlu0 %v2192
          %v2220 = vpop.xlane.xlu0 %2219
          %2221 = vadd.xlane.f32.xlu0 %v2193
          %v2222 = vpop.xlane.xlu0 %2221
          %2223 = vadd.xlane.f32.xlu0 %v2194
          %v2224 = vpop.xlane.xlu0 %2223
          %2225 = vadd.xlane.f32.xlu0 %v2195
          %v2226 = vpop.xlane.xlu0 %2225
          %2227 = vadd.xlane.f32.xlu0 %v2196
          %v2228 = vpop.xlane.xlu0 %2227
          %v2229 = vmul.f32 %v2198, %v2148
          %v2230 = vmul.f32 %v2200, %v2148
          %v2231 = vmul.f32 %v2202, %v2148
          %v2232 = vmul.f32 %v2204, %v2148
          %v2233 = vmul.f32 %v2206, %v2148
          %v2234 = vmul.f32 %v2208, %v2148
          %v2235 = vmul.f32 %v2210, %v2148
          %v2236 = vmul.f32 %v2212, %v2148
          %v2237 = vmul.f32 %v2214, %v2148
          %v2238 = vmul.f32 %v2216, %v2148
          %v2239 = vmul.f32 %v2218, %v2148
          %v2240 = vmul.f32 %v2220, %v2148
          %v2241 = vmul.f32 %v2222, %v2148
          %v2242 = vmul.f32 %v2224, %v2148
          %v2243 = vmul.f32 %v2226, %v2148
          %v2244 = vmul.f32 %v2228, %v2148
          %v2245 = vadd.f32 %v2229, 1e-05
          %v2246 = vadd.f32 %v2230, 1e-05
          %v2247 = vadd.f32 %v2231, 1e-05
          %v2248 = vadd.f32 %v2232, 1e-05
          %v2249 = vadd.f32 %v2233, 1e-05
          %v2250 = vadd.f32 %v2234, 1e-05
          %v2251 = vadd.f32 %v2235, 1e-05
          %v2252 = vadd.f32 %v2236, 1e-05
          %v2253 = vadd.f32 %v2237, 1e-05
          %v2254 = vadd.f32 %v2238, 1e-05
          %v2255 = vadd.f32 %v2239, 1e-05
          %v2256 = vadd.f32 %v2240, 1e-05
          %v2257 = vadd.f32 %v2241, 1e-05
          %v2258 = vadd.f32 %v2242, 1e-05
          %v2259 = vadd.f32 %v2243, 1e-05
          %v2260 = vadd.f32 %v2244, 1e-05
          %v2261 = vrsqrt.pop %v2245
          %v2262 = vrsqrt.pop %v2246
          %v2263 = vrsqrt.pop %v2247
          %v2264 = vrsqrt.pop %v2248
          %v2265 = vrsqrt.pop %v2249
          %v2266 = vrsqrt.pop %v2250
          %v2267 = vrsqrt.pop %v2251
          %v2268 = vrsqrt.pop %v2252
          %v2269 = vrsqrt.pop %v2253
          %v2270 = vrsqrt.pop %v2254
          %v2271 = vrsqrt.pop %v2255
          %v2272 = vrsqrt.pop %v2256
          %v2273 = vrsqrt.pop %v2257
          %v2274 = vrsqrt.pop %v2258
          %v2275 = vrsqrt.pop %v2259
          %v2276 = vrsqrt.pop %v2260
          %v2277 = vmul.f32 %v2165, %v2261
          %v2278 = vmul.f32 %v2166, %v2262
          %v2279 = vmul.f32 %v2167, %v2263
          %v2280 = vmul.f32 %v2168, %v2264
          %v2281 = vmul.f32 %v2169, %v2265
          %v2282 = vmul.f32 %v2170, %v2266
          %v2283 = vmul.f32 %v2171, %v2267
          %v2284 = vmul.f32 %v2172, %v2268
          %v2285 = vmul.f32 %v2173, %v2269
          %v2286 = vmul.f32 %v2174, %v2270
          %v2287 = vmul.f32 %v2175, %v2271
          %v2288 = vmul.f32 %v2176, %v2272
          %v2289 = vmul.f32 %v2177, %v2273
          %v2290 = vmul.f32 %v2178, %v2274
          %v2291 = vmul.f32 %v2179, %v2275
          %v2292 = vmul.f32 %v2180, %v2276
          %v2294 = vlaneseq
          %v2295 = vshrl.u32 %v2294, 7
          %v2296 = vsub.s32 0, %v2295
          %v2297 = vrot.slane %v2114, %v2296
          %v2299 = vmul.f32 %v2277, %v2297
          %v2300 = vmul.f32 %v2278, %v2297
          %v2301 = vmul.f32 %v2279, %v2297
          %v2302 = vmul.f32 %v2280, %v2297
          %v2303 = vmul.f32 %v2281, %v2297
          %v2304 = vmul.f32 %v2282, %v2297
          %v2305 = vmul.f32 %v2283, %v2297
          %v2306 = vmul.f32 %v2284, %v2297
          %v2307 = vmul.f32 %v2285, %v2297
          %v2308 = vmul.f32 %v2286, %v2297
          %v2309 = vmul.f32 %v2287, %v2297
          %v2310 = vmul.f32 %v2288, %v2297
          %v2311 = vmul.f32 %v2289, %v2297
          %v2312 = vmul.f32 %v2290, %v2297
          %v2313 = vmul.f32 %v2291, %v2297
          %v2314 = vmul.f32 %v2292, %v2297
          %v2316 = vlaneseq
          %v2317 = vshrl.u32 %v2316, 7
          %v2318 = vsub.s32 0, %v2317
          %v2319 = vrot.slane %v2115, %v2318
          %v2321 = vadd.f32 %v2299, %v2319
          %v2322 = vadd.f32 %v2300, %v2319
          %v2323 = vadd.f32 %v2301, %v2319
          %v2324 = vadd.f32 %v2302, %v2319
          %v2325 = vadd.f32 %v2303, %v2319
          %v2326 = vadd.f32 %v2304, %v2319
          %v2327 = vadd.f32 %v2305, %v2319
          %v2328 = vadd.f32 %v2306, %v2319
          %v2329 = vadd.f32 %v2307, %v2319
          %v2330 = vadd.f32 %v2308, %v2319
          %v2331 = vadd.f32 %v2309, %v2319
          %v2332 = vadd.f32 %v2310, %v2319
          %v2333 = vadd.f32 %v2311, %v2319
          %v2334 = vadd.f32 %v2312, %v2319
          %v2335 = vadd.f32 %v2313, %v2319
          %v2336 = vadd.f32 %v2314, %v2319
          %v2337 = vpack.c.bf16 %v2322, %v2321
          %v2338 = vpack.c.bf16 %v2324, %v2323
          %v2339 = vpack.c.bf16 %v2326, %v2325
          %v2340 = vpack.c.bf16 %v2328, %v2327
          %v2341 = vpack.c.bf16 %v2330, %v2329
          %v2342 = vpack.c.bf16 %v2332, %v2331
          %v2343 = vpack.c.bf16 %v2334, %v2333
          %v2344 = vpack.c.bf16 %v2336, %v2335
          %v2345 = vld [vmem:[%s8] sm:$0xff]
          %v2346 = vld [vmem:[%s8 + $0x8] sm:$0xff]
          %v2347 = vld [vmem:[%s8 + $0x10] sm:$0xff]
          %v2348 = vld [vmem:[%s8 + $0x18] sm:$0xff]
          %v2349 = vld [vmem:[%s8 + $0x20] sm:$0xff]
          %v2350 = vld [vmem:[%s8 + $0x28] sm:$0xff]
          %v2351 = vld [vmem:[%s8 + $0x30] sm:$0xff]
          %v2352 = vld [vmem:[%s8 + $0x38] sm:$0xff]
          %v2353 = vld [vmem:[%s8 + $0x40] sm:$0xff]
          %v2354 = vld [vmem:[%s8 + $0x48] sm:$0xff]
          %v2355 = vld [vmem:[%s8 + $0x50] sm:$0xff]
          %v2356 = vld [vmem:[%s8 + $0x58] sm:$0xff]
          %v2357 = vld [vmem:[%s8 + $0x60] sm:$0xff]
          %v2358 = vld [vmem:[%s8 + $0x68] sm:$0xff]
          %v2359 = vld [vmem:[%s8 + $0x70] sm:$0xff]
          %v2360 = vld [vmem:[%s8 + $0x78] sm:$0xff]
          %v2361 = vld [vmem:[%s9] sm:$0x3]
          %v2363 = vlaneseq
          %v2364 = vshrl.u32 %v2363, 7
          %v2365 = vsub.s32 0, %v2364
          %v2366 = vrot.slane %v2361, %v2365
          %v2367 = vlaneseq
          %v2368 = vshrl.u32 %v2367, 7
          %v2369 = vsub.s32 1, %v2368
          %v2370 = vrot.slane %v2361, %v2369
          %v2389 = vunpack.c.l.b16 %v2345
          %v2390 = vunpack.c.h.b16 %v2345
          %v2391 = vunpack.c.l.b16 %v2346
          %v2392 = vunpack.c.h.b16 %v2346
          %v2393 = vunpack.c.l.b16 %v2347
          %v2394 = vunpack.c.h.b16 %v2347
          %v2395 = vunpack.c.l.b16 %v2348
          %v2396 = vunpack.c.h.b16 %v2348
          %v2397 = vunpack.c.l.b16 %v2349
          %v2398 = vunpack.c.h.b16 %v2349
          %v2399 = vunpack.c.l.b16 %v2350
          %v2400 = vunpack.c.h.b16 %v2350
          %v2401 = vunpack.c.l.b16 %v2351
          %v2402 = vunpack.c.h.b16 %v2351
          %v2403 = vunpack.c.l.b16 %v2352
          %v2404 = vunpack.c.h.b16 %v2352
          %v2405 = vunpack.c.l.b16 %v2353
          %v2406 = vunpack.c.h.b16 %v2353
          %v2407 = vunpack.c.l.b16 %v2354
          %v2408 = vunpack.c.h.b16 %v2354
          %v2409 = vunpack.c.l.b16 %v2355
          %v2410 = vunpack.c.h.b16 %v2355
          %v2411 = vunpack.c.l.b16 %v2356
          %v2412 = vunpack.c.h.b16 %v2356
          %v2413 = vunpack.c.l.b16 %v2357
          %v2414 = vunpack.c.h.b16 %v2357
          %v2415 = vunpack.c.l.b16 %v2358
          %v2416 = vunpack.c.h.b16 %v2358
          %v2417 = vunpack.c.l.b16 %v2359
          %v2418 = vunpack.c.h.b16 %v2359
          %v2419 = vunpack.c.l.b16 %v2360
          %v2420 = vunpack.c.h.b16 %v2360
          %v2421 = vpack.c.b16 %v2391, %v2389
          %v2422 = vpack.c.b16 %v2392, %v2390
          %v2423 = vpack.c.b16 %v2395, %v2393
          %v2424 = vpack.c.b16 %v2396, %v2394
          %v2425 = vpack.c.b16 %v2399, %v2397
          %v2426 = vpack.c.b16 %v2400, %v2398
          %v2427 = vpack.c.b16 %v2403, %v2401
          %v2428 = vpack.c.b16 %v2404, %v2402
          %v2429 = vpack.c.b16 %v2407, %v2405
          %v2430 = vpack.c.b16 %v2408, %v2406
          %v2431 = vpack.c.b16 %v2411, %v2409
          %v2432 = vpack.c.b16 %v2412, %v2410
          %v2433 = vpack.c.b16 %v2415, %v2413
          %v2434 = vpack.c.b16 %v2416, %v2414
          %v2435 = vpack.c.b16 %v2419, %v2417
          %v2436 = vpack.c.b16 %v2420, %v2418
          %2453 = vmatprep.subr.bf16.mxu0 %v2422
          %2454 = vmatpush1.bf16.msra.mxu0 %v2421
          %2455 = vmatprep.subr.bf16.mxu0 %v2424
          %2456 = vmatpush1.bf16.msra.mxu0 %v2423
          %2457 = vmatprep.subr.bf16.mxu0 %v2426
          %2458 = vmatpush1.bf16.msra.mxu0 %v2425
          %2459 = vmatprep.subr.bf16.mxu0 %v2428
          %2460 = vmatpush1.bf16.msra.mxu0 %v2427
          %2461 = vmatprep.subr.bf16.mxu0 %v2430
          %2462 = vmatpush1.bf16.msra.mxu0 %v2429
          %2463 = vmatprep.subr.bf16.mxu0 %v2432
          %2464 = vmatpush1.bf16.msra.mxu0 %v2431
          %2465 = vmatprep.subr.bf16.mxu0 %v2434
          %2466 = vmatpush1.bf16.msra.mxu0 %v2433
          %2467 = vmatprep.subr.bf16.mxu0 %v2436
          %2468 = vmatpush1.bf16.msra.mxu0 %v2435
          %2469 = vmatprep.subr.bf16.mxu0 0
          %2470 = vmatpush1.bf16.msra.mxu0 0
          %2471 = vmatprep.subr.bf16.mxu0 0
          %2472 = vmatpush1.bf16.msra.mxu0 0
          %2473 = vmatprep.subr.bf16.mxu0 0
          %2474 = vmatpush1.bf16.msra.mxu0 0
          %2475 = vmatprep.subr.bf16.mxu0 0
          %2476 = vmatpush1.bf16.msra.mxu0 0
          %2477 = vmatprep.subr.bf16.mxu0 0
          %2478 = vmatpush1.bf16.msra.mxu0 0
          %2479 = vmatprep.subr.bf16.mxu0 0
          %2480 = vmatpush1.bf16.msra.mxu0 0
          %2481 = vmatprep.subr.bf16.mxu0 0
          %2482 = vmatpush1.bf16.msra.mxu0 0
          %2483 = vmatprep.subr.bf16.mxu0 0
          %2484 = vmatpush1.bf16.msra.mxu0 0
          %2485 = vmatprep.mubr.bf16.mxu0 0
          %2486 = vmatmul.mubr.bf16.gmra.mrb[0].mxu0 %v2337
          %v2487 = vpop.f32.mrb[0].mxu0
          %v2488 = vadd.f32 %v2366, %v2487
          %v2489 = vpop.f32.mrb[0].mxu0
          %v2490 = vadd.f32 %v2370, %v2489
          %v2491 = vpop.f32.mrb[0].mxu0
          %v2492 = vadd.f32 %v2366, %v2491
          %v2493 = vpop.f32.mrb[0].mxu0
          %v2494 = vadd.f32 %v2370, %v2493
          %2495 = vmatprep.mubr.bf16.mxu0 0
          %2496 = vmatmul.mubr.bf16.gmra.mrb[0].mxu0 %v2338
          %v2497 = vpop.f32.mrb[0].mxu0
          %v2498 = vadd.f32 %v2366, %v2497
          %v2499 = vpop.f32.mrb[0].mxu0
          %v2500 = vadd.f32 %v2370, %v2499
          %v2501 = vpop.f32.mrb[0].mxu0
          %v2502 = vadd.f32 %v2366, %v2501
          %v2503 = vpop.f32.mrb[0].mxu0
          %v2504 = vadd.f32 %v2370, %v2503
          %2505 = vmatprep.mubr.bf16.mxu0 0
          %2506 = vmatmul.mubr.bf16.gmra.mrb[0].mxu0 %v2339
          %v2507 = vpop.f32.mrb[0].mxu0
          %v2508 = vadd.f32 %v2366, %v2507
          %v2509 = vpop.f32.mrb[0].mxu0
          %v2510 = vadd.f32 %v2370, %v2509
          %v2511 = vpop.f32.mrb[0].mxu0
          %v2512 = vadd.f32 %v2366, %v2511
          %v2513 = vpop.f32.mrb[0].mxu0
          %v2514 = vadd.f32 %v2370, %v2513
          %2515 = vmatprep.mubr.bf16.mxu0 0
          %2516 = vmatmul.mubr.bf16.gmra.mrb[0].mxu0 %v2340
          %v2517 = vpop.f32.mrb[0].mxu0
          %v2518 = vadd.f32 %v2366, %v2517
          %v2519 = vpop.f32.mrb[0].mxu0
          %v2520 = vadd.f32 %v2370, %v2519
          %v2521 = vpop.f32.mrb[0].mxu0
          %v2522 = vadd.f32 %v2366, %v2521
          %v2523 = vpop.f32.mrb[0].mxu0
          %v2524 = vadd.f32 %v2370, %v2523
          %2525 = vmatprep.mubr.bf16.mxu0 0
          %2526 = vmatmul.mubr.bf16.gmra.mrb[0].mxu0 %v2341
          %v2527 = vpop.f32.mrb[0].mxu0
          %v2528 = vadd.f32 %v2366, %v2527
          %v2529 = vpop.f32.mrb[0].mxu0
          %v2530 = vadd.f32 %v2370, %v2529
          %v2531 = vpop.f32.mrb[0].mxu0
          %v2532 = vadd.f32 %v2366, %v2531
          %v2533 = vpop.f32.mrb[0].mxu0
          %v2534 = vadd.f32 %v2370, %v2533
          %2535 = vmatprep.mubr.bf16.mxu0 0
          %2536 = vmatmul.mubr.bf16.gmra.mrb[0].mxu0 %v2342
          %v2537 = vpop.f32.mrb[0].mxu0
          %v2538 = vadd.f32 %v2366, %v2537
          %v2539 = vpop.f32.mrb[0].mxu0
          %v2540 = vadd.f32 %v2370, %v2539
          %v2541 = vpop.f32.mrb[0].mxu0
          %v2542 = vadd.f32 %v2366, %v2541
          %v2543 = vpop.f32.mrb[0].mxu0
          %v2544 = vadd.f32 %v2370, %v2543
          %2545 = vmatprep.mubr.bf16.mxu0 0
          %2546 = vmatmul.mubr.bf16.gmra.mrb[0].mxu0 %v2343
          %v2547 = vpop.f32.mrb[0].mxu0
          %v2548 = vadd.f32 %v2366, %v2547
          %v2549 = vpop.f32.mrb[0].mxu0
          %v2550 = vadd.f32 %v2370, %v2549
          %v2551 = vpop.f32.mrb[0].mxu0
          %v2552 = vadd.f32 %v2366, %v2551
          %v2553 = vpop.f32.mrb[0].mxu0
          %v2554 = vadd.f32 %v2370, %v2553
          %2555 = vmatprep.mubr.bf16.mxu0 0
          %2556 = vmatmul.mubr.bf16.gmra.mrb[0].mxu0 %v2344
          %v2557 = vpop.f32.mrb[0].mxu0
          %v2558 = vadd.f32 %v2366, %v2557
          %v2559 = vpop.f32.mrb[0].mxu0
          %v2560 = vadd.f32 %v2370, %v2559
          %v2561 = vpop.f32.mrb[0].mxu0
          %v2562 = vadd.f32 %v2366, %v2561
          %v2563 = vpop.f32.mrb[0].mxu0
          %v2564 = vadd.f32 %v2370, %v2563
          %2565 = vdwg.mxu0
          %v2566 = vmax.f32 %v2488, 0.0
          %v2567 = vmax.f32 %v2490, 0.0
          %v2568 = vmax.f32 %v2492, 0.0
          %v2569 = vmax.f32 %v2494, 0.0
          %v2570 = vmax.f32 %v2498, 0.0
          %v2571 = vmax.f32 %v2500, 0.0
          %v2572 = vmax.f32 %v2502, 0.0
          %v2573 = vmax.f32 %v2504, 0.0
          %v2574 = vmax.f32 %v2508, 0.0
          %v2575 = vmax.f32 %v2510, 0.0
          %v2576 = vmax.f32 %v2512, 0.0
          %v2577 = vmax.f32 %v2514, 0.0
          %v2578 = vmax.f32 %v2518, 0.0
          %v2579 = vmax.f32 %v2520, 0.0
          %v2580 = vmax.f32 %v2522, 0.0
          %v2581 = vmax.f32 %v2524, 0.0
          %v2582 = vmax.f32 %v2528, 0.0
          %v2583 = vmax.f32 %v2530, 0.0
          %v2584 = vmax.f32 %v2532, 0.0
          %v2585 = vmax.f32 %v2534, 0.0
          %v2586 = vmax.f32 %v2538, 0.0
          %v2587 = vmax.f32 %v2540, 0.0
          %v2588 = vmax.f32 %v2542, 0.0
          %v2589 = vmax.f32 %v2544, 0.0
          %v2590 = vmax.f32 %v2548, 0.0
          %v2591 = vmax.f32 %v2550, 0.0
          %v2592 = vmax.f32 %v2552, 0.0
          %v2593 = vmax.f32 %v2554, 0.0
          %v2594 = vmax.f32 %v2558, 0.0
          %v2595 = vmax.f32 %v2560, 0.0
          %v2596 = vmax.f32 %v2562, 0.0
          %v2597 = vmax.f32 %v2564, 0.0
          %v2598 = vpack.c.bf16 %v2568, %v2566
          %v2599 = vpack.c.bf16 %v2569, %v2567
          %v2600 = vpack.c.bf16 %v2572, %v2570
          %v2601 = vpack.c.bf16 %v2573, %v2571
          %v2602 = vpack.c.bf16 %v2576, %v2574
          %v2603 = vpack.c.bf16 %v2577, %v2575
          %v2604 = vpack.c.bf16 %v2580, %v2578
          %v2605 = vpack.c.bf16 %v2581, %v2579
          %v2606 = vpack.c.bf16 %v2584, %v2582
          %v2607 = vpack.c.bf16 %v2585, %v2583
          %v2608 = vpack.c.bf16 %v2588, %v2586
          %v2609 = vpack.c.bf16 %v2589, %v2587
          %v2610 = vpack.c.bf16 %v2592, %v2590
          %v2611 = vpack.c.bf16 %v2593, %v2591
          %v2612 = vpack.c.bf16 %v2596, %v2594
          %v2613 = vpack.c.bf16 %v2597, %v2595
          %v2614 = vld [vmem:[%s10] sm:$0xf]
          %v2615 = vld [vmem:[%s10 + $0x4] sm:$0xf]
          %v2616 = vld [vmem:[%s10 + $0x8] sm:$0xf]
          %v2617 = vld [vmem:[%s10 + $0xc] sm:$0xf]
          %v2618 = vld [vmem:[%s10 + $0x10] sm:$0xf]
          %v2619 = vld [vmem:[%s10 + $0x14] sm:$0xf]
          %v2620 = vld [vmem:[%s10 + $0x18] sm:$0xf]
          %v2621 = vld [vmem:[%s10 + $0x1c] sm:$0xf]
          %v2622 = vld [vmem:[%s10 + $0x20] sm:$0xf]
          %v2623 = vld [vmem:[%s10 + $0x24] sm:$0xf]
          %v2624 = vld [vmem:[%s10 + $0x28] sm:$0xf]
          %v2625 = vld [vmem:[%s10 + $0x2c] sm:$0xf]
          %v2626 = vld [vmem:[%s10 + $0x30] sm:$0xf]
          %v2627 = vld [vmem:[%s10 + $0x34] sm:$0xf]
          %v2628 = vld [vmem:[%s10 + $0x38] sm:$0xf]
          %v2629 = vld [vmem:[%s10 + $0x3c] sm:$0xf]
          %v2630 = vld [vmem:[%s10 + $0x40] sm:$0xf]
          %v2631 = vld [vmem:[%s10 + $0x44] sm:$0xf]
          %v2632 = vld [vmem:[%s10 + $0x48] sm:$0xf]
          %v2633 = vld [vmem:[%s10 + $0x4c] sm:$0xf]
          %v2634 = vld [vmem:[%s10 + $0x50] sm:$0xf]
          %v2635 = vld [vmem:[%s10 + $0x54] sm:$0xf]
          %v2636 = vld [vmem:[%s10 + $0x58] sm:$0xf]
          %v2637 = vld [vmem:[%s10 + $0x5c] sm:$0xf]
          %v2638 = vld [vmem:[%s10 + $0x60] sm:$0xf]
          %v2639 = vld [vmem:[%s10 + $0x64] sm:$0xf]
          %v2640 = vld [vmem:[%s10 + $0x68] sm:$0xf]
          %v2641 = vld [vmem:[%s10 + $0x6c] sm:$0xf]
          %v2642 = vld [vmem:[%s10 + $0x70] sm:$0xf]
          %v2643 = vld [vmem:[%s10 + $0x74] sm:$0xf]
          %v2644 = vld [vmem:[%s10 + $0x78] sm:$0xf]
          %v2645 = vld [vmem:[%s10 + $0x7c] sm:$0xf]
          %v2646 = vld [vmem:[%s11] sm:$0x1]
          %v2648 = vlaneseq
          %v2649 = vshrl.u32 %v2648, 7
          %v2650 = vsub.s32 0, %v2649
          %v2651 = vrot.slane %v2646, %v2650
          %v2685 = vunpack.c.l.b16 %v2614
          %v2686 = vunpack.c.l.b16 %v2615
          %v2687 = vunpack.c.l.b16 %v2616
          %v2688 = vunpack.c.l.b16 %v2617
          %v2689 = vunpack.c.l.b16 %v2618
          %v2690 = vunpack.c.l.b16 %v2619
          %v2691 = vunpack.c.l.b16 %v2620
          %v2692 = vunpack.c.l.b16 %v2621
          %v2693 = vunpack.c.l.b16 %v2622
          %v2694 = vunpack.c.l.b16 %v2623
          %v2695 = vunpack.c.l.b16 %v2624
          %v2696 = vunpack.c.l.b16 %v2625
          %v2697 = vunpack.c.l.b16 %v2626
          %v2698 = vunpack.c.l.b16 %v2627
          %v2699 = vunpack.c.l.b16 %v2628
          %v2700 = vunpack.c.l.b16 %v2629
          %v2701 = vunpack.c.l.b16 %v2630
          %v2702 = vunpack.c.l.b16 %v2631
          %v2703 = vunpack.c.l.b16 %v2632
          %v2704 = vunpack.c.l.b16 %v2633
          %v2705 = vunpack.c.l.b16 %v2634
          %v2706 = vunpack.c.l.b16 %v2635
          %v2707 = vunpack.c.l.b16 %v2636
          %v2708 = vunpack.c.l.b16 %v2637
          %v2709 = vunpack.c.l.b16 %v2638
          %v2710 = vunpack.c.l.b16 %v2639
          %v2711 = vunpack.c.l.b16 %v2640
          %v2712 = vunpack.c.l.b16 %v2641
          %v2713 = vunpack.c.l.b16 %v2642
          %v2714 = vunpack.c.l.b16 %v2643
          %v2715 = vunpack.c.l.b16 %v2644
          %v2716 = vunpack.c.l.b16 %v2645
          %v2717 = vpack.c.b16 %v2686, %v2685
          %v2718 = vpack.c.b16 %v2688, %v2687
          %v2719 = vpack.c.b16 %v2690, %v2689
          %v2720 = vpack.c.b16 %v2692, %v2691
          %v2721 = vpack.c.b16 %v2694, %v2693
          %v2722 = vpack.c.b16 %v2696, %v2695
          %v2723 = vpack.c.b16 %v2698, %v2697
          %v2724 = vpack.c.b16 %v2700, %v2699
          %v2725 = vpack.c.b16 %v2702, %v2701
          %v2726 = vpack.c.b16 %v2704, %v2703
          %v2727 = vpack.c.b16 %v2706, %v2705
          %v2728 = vpack.c.b16 %v2708, %v2707
          %v2729 = vpack.c.b16 %v2710, %v2709
          %v2730 = vpack.c.b16 %v2712, %v2711
          %v2731 = vpack.c.b16 %v2714, %v2713
          %v2732 = vpack.c.b16 %v2716, %v2715
          %2749 = vmatprep.subr.bf16.mxu0 0
          %2750 = vmatpush1.bf16.msra.mxu0 %v2717
          %2751 = vmatprep.subr.bf16.mxu0 0
          %2752 = vmatpush1.bf16.msra.mxu0 %v2718
          %2753 = vmatprep.subr.bf16.mxu0 0
          %2754 = vmatpush1.bf16.msra.mxu0 %v2719
          %2755 = vmatprep.subr.bf16.mxu0 0
          %2756 = vmatpush1.bf16.msra.mxu0 %v2720
          %2757 = vmatprep.subr.bf16.mxu0 0
          %2758 = vmatpush1.bf16.msra.mxu0 %v2721
          %2759 = vmatprep.subr.bf16.mxu0 0
          %2760 = vmatpush1.bf16.msra.mxu0 %v2722
          %2761 = vmatprep.subr.bf16.mxu0 0
          %2762 = vmatpush1.bf16.msra.mxu0 %v2723
          %2763 = vmatprep.subr.bf16.mxu0 0
          %2764 = vmatpush1.bf16.msra.mxu0 %v2724
          %2765 = vmatprep.subr.bf16.mxu0 0
          %2766 = vmatpush1.bf16.msra.mxu0 %v2725
          %2767 = vmatprep.subr.bf16.mxu0 0
          %2768 = vmatpush1.bf16.msra.mxu0 %v2726
          %2769 = vmatprep.subr.bf16.mxu0 0
          %2770 = vmatpush1.bf16.msra.mxu0 %v2727
          %2771 = vmatprep.subr.bf16.mxu0 0
          %2772 = vmatpush1.bf16.msra.mxu0 %v2728
          %2773 = vmatprep.subr.bf16.mxu0 0
          %2774 = vmatpush1.bf16.msra.mxu0 %v2729
          %2775 = vmatprep.subr.bf16.mxu0 0
          %2776 = vmatpush1.bf16.msra.mxu0 %v2730
          %2777 = vmatprep.subr.bf16.mxu0 0
          %2778 = vmatpush1.bf16.msra.mxu0 %v2731
          %2779 = vmatprep.subr.bf16.mxu0 0
          %2780 = vmatpush1.bf16.msra.mxu0 %v2732
          %2781 = vmatprep.mubr.bf16.mxu0 %v2599
          %2782 = vmatmul.mubr.bf16.gmra.mrb[0].mxu0 %v2598
          %v2783 = vpop.f32.mrb[0].mxu0
          %v2784 = vadd.f32 %v2651, %v2783
          %v2785 = vpop.f32.mrb[0].mxu0
          %v2786 = vpop.f32.mrb[0].mxu0
          %v2787 = vadd.f32 %v2651, %v2786
          %v2788 = vpop.f32.mrb[0].mxu0
          %2789 = vmatprep.mubr.bf16.mxu0 %v2601
          %2790 = vmatmul.mubr.bf16.gmra.mrb[0].mxu0 %v2600
          %v2791 = vpop.f32.mrb[0].mxu0
          %v2792 = vadd.f32 %v2651, %v2791
          %v2793 = vpop.f32.mrb[0].mxu0
          %v2794 = vpop.f32.mrb[0].mxu0
          %v2795 = vadd.f32 %v2651, %v2794
          %v2796 = vpop.f32.mrb[0].mxu0
          %2797 = vmatprep.mubr.bf16.mxu0 %v2603
          %2798 = vmatmul.mubr.bf16.gmra.mrb[0].mxu0 %v2602
          %v2799 = vpop.f32.mrb[0].mxu0
          %v2800 = vadd.f32 %v2651, %v2799
          %v2801 = vpop.f32.mrb[0].mxu0
          %v2802 = vpop.f32.mrb[0].mxu0
          %v2803 = vadd.f32 %v2651, %v2802
          %v2804 = vpop.f32.mrb[0].mxu0
          %2805 = vmatprep.mubr.bf16.mxu0 %v2605
          %2806 = vmatmul.mubr.bf16.gmra.mrb[0].mxu0 %v2604
          %v2807 = vpop.f32.mrb[0].mxu0
          %v2808 = vadd.f32 %v2651, %v2807
          %v2809 = vpop.f32.mrb[0].mxu0
          %v2810 = vpop.f32.mrb[0].mxu0
          %v2811 = vadd.f32 %v2651, %v2810
          %v2812 = vpop.f32.mrb[0].mxu0
          %2813 = vmatprep.mubr.bf16.mxu0 %v2607
          %2814 = vmatmul.mubr.bf16.gmra.mrb[0].mxu0 %v2606
          %v2815 = vpop.f32.mrb[0].mxu0
          %v2816 = vadd.f32 %v2651, %v2815
          %v2817 = vpop.f32.mrb[0].mxu0
          %v2818 = vpop.f32.mrb[0].mxu0
          %v2819 = vadd.f32 %v2651, %v2818
          %v2820 = vpop.f32.mrb[0].mxu0
          %2821 = vmatprep.mubr.bf16.mxu0 %v2609
          %2822 = vmatmul.mubr.bf16.gmra.mrb[0].mxu0 %v2608
          %v2823 = vpop.f32.mrb[0].mxu0
          %v2824 = vadd.f32 %v2651, %v2823
          %v2825 = vpop.f32.mrb[0].mxu0
          %v2826 = vpop.f32.mrb[0].mxu0
          %v2827 = vadd.f32 %v2651, %v2826
          %v2828 = vpop.f32.mrb[0].mxu0
          %2829 = vmatprep.mubr.bf16.mxu0 %v2611
          %2830 = vmatmul.mubr.bf16.gmra.mrb[0].mxu0 %v2610
          %v2831 = vpop.f32.mrb[0].mxu0
          %v2832 = vadd.f32 %v2651, %v2831
          %v2833 = vpop.f32.mrb[0].mxu0
          %v2834 = vpop.f32.mrb[0].mxu0
          %v2835 = vadd.f32 %v2651, %v2834
          %v2836 = vpop.f32.mrb[0].mxu0
          %2837 = vmatprep.mubr.bf16.mxu0 %v2613
          %2838 = vmatmul.mubr.bf16.gmra.mrb[0].mxu0 %v2612
          %v2839 = vpop.f32.mrb[0].mxu0
          %v2840 = vadd.f32 %v2651, %v2839
          %v2841 = vpop.f32.mrb[0].mxu0
          %v2842 = vpop.f32.mrb[0].mxu0
          %v2843 = vadd.f32 %v2651, %v2842
          %v2844 = vpop.f32.mrb[0].mxu0
          %2845 = vdwg.mxu0
          %v2846 = vadd.f32 %v2321, %v2784
          %v2847 = vadd.f32 %v2322, %v2787
          %v2848 = vadd.f32 %v2323, %v2792
          %v2849 = vadd.f32 %v2324, %v2795
          %v2850 = vadd.f32 %v2325, %v2800
          %v2851 = vadd.f32 %v2326, %v2803
          %v2852 = vadd.f32 %v2327, %v2808
          %v2853 = vadd.f32 %v2328, %v2811
          %v2854 = vadd.f32 %v2329, %v2816
          %v2855 = vadd.f32 %v2330, %v2819
          %v2856 = vadd.f32 %v2331, %v2824
          %v2857 = vadd.f32 %v2332, %v2827
          %v2858 = vadd.f32 %v2333, %v2832
          %v2859 = vadd.f32 %v2334, %v2835
          %v2860 = vadd.f32 %v2335, %v2840
          %v2861 = vadd.f32 %v2336, %v2843
          %v2862 = vld [vmem:[%s12] sm:$0x1]
          %v2863 = vld [vmem:[%s13] sm:$0x1]
          %2864 = vadd.xlane.f32.xlu0 %v2846
          %v2865 = vpop.xlane.xlu0 %2864
          %2866 = vadd.xlane.f32.xlu0 %v2847
          %v2867 = vpop.xlane.xlu0 %2866
          %2868 = vadd.xlane.f32.xlu0 %v2848
          %v2869 = vpop.xlane.xlu0 %2868
          %2870 = vadd.xlane.f32.xlu0 %v2849
          %v2871 = vpop.xlane.xlu0 %2870
          %2872 = vadd.xlane.f32.xlu0 %v2850
          %v2873 = vpop.xlane.xlu0 %2872
          %2874 = vadd.xlane.f32.xlu0 %v2851
          %v2875 = vpop.xlane.xlu0 %2874
          %2876 = vadd.xlane.f32.xlu0 %v2852
          %v2877 = vpop.xlane.xlu0 %2876
          %2878 = vadd.xlane.f32.xlu0 %v2853
          %v2879 = vpop.xlane.xlu0 %2878
          %2880 = vadd.xlane.f32.xlu0 %v2854
          %v2881 = vpop.xlane.xlu0 %2880
          %2882 = vadd.xlane.f32.xlu0 %v2855
          %v2883 = vpop.xlane.xlu0 %2882
          %2884 = vadd.xlane.f32.xlu0 %v2856
          %v2885 = vpop.xlane.xlu0 %2884
          %2886 = vadd.xlane.f32.xlu0 %v2857
          %v2887 = vpop.xlane.xlu0 %2886
          %2888 = vadd.xlane.f32.xlu0 %v2858
          %v2889 = vpop.xlane.xlu0 %2888
          %2890 = vadd.xlane.f32.xlu0 %v2859
          %v2891 = vpop.xlane.xlu0 %2890
          %2892 = vadd.xlane.f32.xlu0 %v2860
          %v2893 = vpop.xlane.xlu0 %2892
          %2894 = vadd.xlane.f32.xlu0 %v2861
          %v2895 = vpop.xlane.xlu0 %2894
          %v2896 = vmul.f32 %v2865, %v2148
          %v2897 = vmul.f32 %v2867, %v2148
          %v2898 = vmul.f32 %v2869, %v2148
          %v2899 = vmul.f32 %v2871, %v2148
          %v2900 = vmul.f32 %v2873, %v2148
          %v2901 = vmul.f32 %v2875, %v2148
          %v2902 = vmul.f32 %v2877, %v2148
          %v2903 = vmul.f32 %v2879, %v2148
          %v2904 = vmul.f32 %v2881, %v2148
          %v2905 = vmul.f32 %v2883, %v2148
          %v2906 = vmul.f32 %v2885, %v2148
          %v2907 = vmul.f32 %v2887, %v2148
          %v2908 = vmul.f32 %v2889, %v2148
          %v2909 = vmul.f32 %v2891, %v2148
          %v2910 = vmul.f32 %v2893, %v2148
          %v2911 = vmul.f32 %v2895, %v2148
          %v2912 = vsub.f32 %v2846, %v2896
          %v2913 = vsub.f32 %v2847, %v2897
          %v2914 = vsub.f32 %v2848, %v2898
          %v2915 = vsub.f32 %v2849, %v2899
          %v2916 = vsub.f32 %v2850, %v2900
          %v2917 = vsub.f32 %v2851, %v2901
          %v2918 = vsub.f32 %v2852, %v2902
          %v2919 = vsub.f32 %v2853, %v2903
          %v2920 = vsub.f32 %v2854, %v2904
          %v2921 = vsub.f32 %v2855, %v2905
          %v2922 = vsub.f32 %v2856, %v2906
          %v2923 = vsub.f32 %v2857, %v2907
          %v2924 = vsub.f32 %v2858, %v2908
          %v2925 = vsub.f32 %v2859, %v2909
          %v2926 = vsub.f32 %v2860, %v2910
          %v2927 = vsub.f32 %v2861, %v2911
          %v2928 = vmul.f32 %v2912, %v2912
          %v2929 = vmul.f32 %v2913, %v2913
          %v2930 = vmul.f32 %v2914, %v2914
          %v2931 = vmul.f32 %v2915, %v2915
          %v2932 = vmul.f32 %v2916, %v2916
          %v2933 = vmul.f32 %v2917, %v2917
          %v2934 = vmul.f32 %v2918, %v2918
          %v2935 = vmul.f32 %v2919, %v2919
          %v2936 = vmul.f32 %v2920, %v2920
          %v2937 = vmul.f32 %v2921, %v2921
          %v2938 = vmul.f32 %v2922, %v2922
          %v2939 = vmul.f32 %v2923, %v2923
          %v2940 = vmul.f32 %v2924, %v2924
          %v2941 = vmul.f32 %v2925, %v2925
          %v2942 = vmul.f32 %v2926, %v2926
          %v2943 = vmul.f32 %v2927, %v2927
          %2944 = vadd.xlane.f32.xlu0 %v2928
          %v2945 = vpop.xlane.xlu0 %2944
          %2946 = vadd.xlane.f32.xlu0 %v2929
          %v2947 = vpop.xlane.xlu0 %2946
          %2948 = vadd.xlane.f32.xlu0 %v2930
          %v2949 = vpop.xlane.xlu0 %2948
          %2950 = vadd.xlane.f32.xlu0 %v2931
          %v2951 = vpop.xlane.xlu0 %2950
          %2952 = vadd.xlane.f32.xlu0 %v2932
          %v2953 = vpop.xlane.xlu0 %2952
          %2954 = vadd.xlane.f32.xlu0 %v2933
          %v2955 = vpop.xlane.xlu0 %2954
          %2956 = vadd.xlane.f32.xlu0 %v2934
          %v2957 = vpop.xlane.xlu0 %2956
          %2958 = vadd.xlane.f32.xlu0 %v2935
          %v2959 = vpop.xlane.xlu0 %2958
          %2960 = vadd.xlane.f32.xlu0 %v2936
          %v2961 = vpop.xlane.xlu0 %2960
          %2962 = vadd.xlane.f32.xlu0 %v2937
          %v2963 = vpop.xlane.xlu0 %2962
          %2964 = vadd.xlane.f32.xlu0 %v2938
          %v2965 = vpop.xlane.xlu0 %2964
          %2966 = vadd.xlane.f32.xlu0 %v2939
          %v2967 = vpop.xlane.xlu0 %2966
          %2968 = vadd.xlane.f32.xlu0 %v2940
          %v2969 = vpop.xlane.xlu0 %2968
          %2970 = vadd.xlane.f32.xlu0 %v2941
          %v2971 = vpop.xlane.xlu0 %2970
          %2972 = vadd.xlane.f32.xlu0 %v2942
          %v2973 = vpop.xlane.xlu0 %2972
          %2974 = vadd.xlane.f32.xlu0 %v2943
          %v2975 = vpop.xlane.xlu0 %2974
          %v2976 = vmul.f32 %v2945, %v2148
          %v2977 = vmul.f32 %v2947, %v2148
          %v2978 = vmul.f32 %v2949, %v2148
          %v2979 = vmul.f32 %v2951, %v2148
          %v2980 = vmul.f32 %v2953, %v2148
          %v2981 = vmul.f32 %v2955, %v2148
          %v2982 = vmul.f32 %v2957, %v2148
          %v2983 = vmul.f32 %v2959, %v2148
          %v2984 = vmul.f32 %v2961, %v2148
          %v2985 = vmul.f32 %v2963, %v2148
          %v2986 = vmul.f32 %v2965, %v2148
          %v2987 = vmul.f32 %v2967, %v2148
          %v2988 = vmul.f32 %v2969, %v2148
          %v2989 = vmul.f32 %v2971, %v2148
          %v2990 = vmul.f32 %v2973, %v2148
          %v2991 = vmul.f32 %v2975, %v2148
          %v2992 = vadd.f32 %v2976, 1e-05
          %v2993 = vadd.f32 %v2977, 1e-05
          %v2994 = vadd.f32 %v2978, 1e-05
          %v2995 = vadd.f32 %v2979, 1e-05
          %v2996 = vadd.f32 %v2980, 1e-05
          %v2997 = vadd.f32 %v2981, 1e-05
          %v2998 = vadd.f32 %v2982, 1e-05
          %v2999 = vadd.f32 %v2983, 1e-05
          %v3000 = vadd.f32 %v2984, 1e-05
          %v3001 = vadd.f32 %v2985, 1e-05
          %v3002 = vadd.f32 %v2986, 1e-05
          %v3003 = vadd.f32 %v2987, 1e-05
          %v3004 = vadd.f32 %v2988, 1e-05
          %v3005 = vadd.f32 %v2989, 1e-05
          %v3006 = vadd.f32 %v2990, 1e-05
          %v3007 = vadd.f32 %v2991, 1e-05
          %v3008 = vrsqrt.pop %v2992
          %v3009 = vrsqrt.pop %v2993
          %v3010 = vrsqrt.pop %v2994
          %v3011 = vrsqrt.pop %v2995
          %v3012 = vrsqrt.pop %v2996
          %v3013 = vrsqrt.pop %v2997
          %v3014 = vrsqrt.pop %v2998
          %v3015 = vrsqrt.pop %v2999
          %v3016 = vrsqrt.pop %v3000
          %v3017 = vrsqrt.pop %v3001
          %v3018 = vrsqrt.pop %v3002
          %v3019 = vrsqrt.pop %v3003
          %v3020 = vrsqrt.pop %v3004
          %v3021 = vrsqrt.pop %v3005
          %v3022 = vrsqrt.pop %v3006
          %v3023 = vrsqrt.pop %v3007
          %v3024 = vmul.f32 %v2912, %v3008
          %v3025 = vmul.f32 %v2913, %v3009
          %v3026 = vmul.f32 %v2914, %v3010
          %v3027 = vmul.f32 %v2915, %v3011
          %v3028 = vmul.f32 %v2916, %v3012
          %v3029 = vmul.f32 %v2917, %v3013
          %v3030 = vmul.f32 %v2918, %v3014
          %v3031 = vmul.f32 %v2919, %v3015
          %v3032 = vmul.f32 %v2920, %v3016
          %v3033 = vmul.f32 %v2921, %v3017
          %v3034 = vmul.f32 %v2922, %v3018
          %v3035 = vmul.f32 %v2923, %v3019
          %v3036 = vmul.f32 %v2924, %v3020
          %v3037 = vmul.f32 %v2925, %v3021
          %v3038 = vmul.f32 %v2926, %v3022
          %v3039 = vmul.f32 %v2927, %v3023
          %v3041 = vlaneseq
          %v3042 = vshrl.u32 %v3041, 7
          %v3043 = vsub.s32 0, %v3042
          %v3044 = vrot.slane %v2862, %v3043
          %v3046 = vmul.f32 %v3024, %v3044
          %v3047 = vmul.f32 %v3025, %v3044
          %v3048 = vmul.f32 %v3026, %v3044
          %v3049 = vmul.f32 %v3027, %v3044
          %v3050 = vmul.f32 %v3028, %v3044
          %v3051 = vmul.f32 %v3029, %v3044
          %v3052 = vmul.f32 %v3030, %v3044
          %v3053 = vmul.f32 %v3031, %v3044
          %v3054 = vmul.f32 %v3032, %v3044
          %v3055 = vmul.f32 %v3033, %v3044
          %v3056 = vmul.f32 %v3034, %v3044
          %v3057 = vmul.f32 %v3035, %v3044
          %v3058 = vmul.f32 %v3036, %v3044
          %v3059 = vmul.f32 %v3037, %v3044
          %v3060 = vmul.f32 %v3038, %v3044
          %v3061 = vmul.f32 %v3039, %v3044
          %v3063 = vlaneseq
          %v3064 = vshrl.u32 %v3063, 7
          %v3065 = vsub.s32 0, %v3064
          %v3066 = vrot.slane %v2863, %v3065
          %v3068 = vadd.f32 %v3046, %v3066
          %v3069 = vadd.f32 %v3047, %v3066
          %v3070 = vadd.f32 %v3048, %v3066
          %v3071 = vadd.f32 %v3049, %v3066
          %v3072 = vadd.f32 %v3050, %v3066
          %v3073 = vadd.f32 %v3051, %v3066
          %v3074 = vadd.f32 %v3052, %v3066
          %v3075 = vadd.f32 %v3053, %v3066
          %v3076 = vadd.f32 %v3054, %v3066
          %v3077 = vadd.f32 %v3055, %v3066
          %v3078 = vadd.f32 %v3056, %v3066
          %v3079 = vadd.f32 %v3057, %v3066
          %v3080 = vadd.f32 %v3058, %v3066
          %v3081 = vadd.f32 %v3059, %v3066
          %v3082 = vadd.f32 %v3060, %v3066
          %v3083 = vadd.f32 %v3061, %v3066
          %3084 = vst [vmem:[%s622] sm:$0xff] %v3068
          %3085 = vst [vmem:[%s622 + $0x8] sm:$0xff] %v3069
          %3086 = vst [vmem:[%s622 + $0x10] sm:$0xff] %v3070
          %3087 = vst [vmem:[%s622 + $0x18] sm:$0xff] %v3071
          %3088 = vst [vmem:[%s622 + $0x20] sm:$0xff] %v3072
          %3089 = vst [vmem:[%s622 + $0x28] sm:$0xff] %v3073
          %3090 = vst [vmem:[%s622 + $0x30] sm:$0xff] %v3074
          %3091 = vst [vmem:[%s622 + $0x38] sm:$0xff] %v3075
          %3092 = vst [vmem:[%s622 + $0x40] sm:$0xff] %v3076
          %3093 = vst [vmem:[%s622 + $0x48] sm:$0xff] %v3077
          %3094 = vst [vmem:[%s622 + $0x50] sm:$0xff] %v3078
          %3095 = vst [vmem:[%s622 + $0x58] sm:$0xff] %v3079
          %3096 = vst [vmem:[%s622 + $0x60] sm:$0xff] %v3080
          %3097 = vst [vmem:[%s622 + $0x68] sm:$0xff] %v3081
          %3098 = vst [vmem:[%s622 + $0x70] sm:$0xff] %v3082
          %3099 = vst [vmem:[%s622 + $0x78] sm:$0xff] %v3083
        $region92: #{decoder_block.3} parent=75 // pred_fallthru
          _
        %s3100 = sand.u32 %s397, 1
        %s3101 = scalar_lea.sflag [#allocation7], %s3100
        %s3102 = sand.u32 %s397, 1
        %s3103 = smul.addr %s3102, 128
        %s3104 = scalar_lea.vmem [#allocation6], %s3103
        // Predicated region
        $region93: #{decoder_block.3} parent=75 // pred_check
          %p3105 = pneg %p407
        $region94: #{decoder_block.3} parent=75 // pred_check_branch
          %3107 = sbr.rel (%p3105) target = $region96
        $region95: #{decoder_block.3} parent=75 // pred_region
          %s3108 = smul.u32 16, %s35
          %s3110 = ssub.s32 2048, 2048
          %3111 = vsyncadd %s3101, %s3110
          %s3112 = smul.addr %s34, 32
          %s3113 = sadd.s32 %s3108, %s3112
          %s3114 = smul.addr %s3113, 128
          %s3115 = scalar_lea.hbm %s14, %s3114
          %s3116 = sshll.u32 %s3104, 4
          %s3117 = int_to_ptr.vmem [resolvable:$true] %s3116
          %3122 = dma.vmem_to_hbm [thread:$0]  %s3117, 2048, %s3115, %s3101, 128, 128, 8
        $region96: #{decoder_block.3} parent=75 // pred_fallthru
          _
      $region76: #{decoder_block.3} parent=5 // pred_fallthru
        _
      %p3123 = scmp.le.s32.totalorder 2, %s23
      // Predicated region
      $region97: #{decoder_block.3} parent=5 // pred_check
        %p3124 = pneg %p3123
      $region98: #{decoder_block.3} parent=5 // pred_check_branch
        %3126 = sbr.rel (%p3124) target = $region100
      $region99: #{decoder_block.3} parent=5 // pred_region
        %s3127 = ssub.s32 %s23, 2
        // Predicated region
        $region101: #{decoder_block.3} parent=99 // pred_check
          %p3128 = pneg %p413
        $region102: #{decoder_block.3} parent=99 // pred_check_branch
          %3130 = sbr.rel (%p3128) target = $region104
        $region103: #{decoder_block.3} parent=99 // pred_region
          %s3131 = sand.u32 %s398, 1
          %s3132 = scalar_lea.sflag [#allocation7], %s3131
          %s3133 = sand.u32 %s398, 1
          %s3134 = smul.addr %s3133, 128
          %s3135 = scalar_lea.vmem [#allocation6], %s3134
          %3136 = dma.done %s3132, 2048
        $region104: #{decoder_block.3} parent=99 // pred_fallthru
          _
      $region100: #{decoder_block.3} parent=5 // pred_fallthru
        _
    $region6: #{decoder_block.3} parent=1 // loop_footer
      %s27 = sadd.s32 1, %s23
    $region7: #{decoder_block.3} parent=1 // loop_footer_branch
      %22 = sbr.rel target = $region3
    $region8: #{decoder_block.3} parent=1 // loop_exit
      _
    %3137 = vsyncpa [#allocation7], 1
    %s3138 = scalar_lea.sflag [#allocation7], 1
    %3139 = vsyncpa %s3138, 1

</llo_original>
